<compile_context>
chip_gen: v7x
topology: tpu7x:2x2x1
jax: 0.10.0
libtpu: 0.0.40
codegen_flags: <defaults>
</compile_context>

<pallas_src>
import functools
import math

import jax
import jax.numpy as jnp
from jax.experimental import pallas as pl
from jax.experimental.pallas import tpu as pltpu


# ----------------------------------------------------------------------------
# Kernel
# ----------------------------------------------------------------------------
def _layer_norm(x, w, b, eps=1e-5):
    mu = jnp.mean(x, axis=-1, keepdims=True)
    var = jnp.mean((x - mu) ** 2, axis=-1, keepdims=True)
    return (x - mu) * jax.lax.rsqrt(var + eps) * w + b


def _fused_temporal_transformer_kernel(
        x_ref, w_in_ref, b_in_ref, pe_ref,
        ln1w_ref, ln1b_ref, wqkv_ref, bqkv_ref, wo_ref, bo_ref,
        ln2w_ref, ln2b_ref, w1_ref, b1_ref, w2_ref, b2_ref,
        o_ref,
        *, num_heads, batch_block, seq_len, compute_dtype, approx_recip):
    """Grid = (batch_blocks, num_layers); o_ref is the VMEM-resident activation."""
    layer = pl.program_id(1)
    BS, D = o_ref.shape                      # BS = batch_block * seq_len
    hd = D // num_heads
    scale = 1.0 / math.sqrt(hd)
    cdt = compute_dtype

    # ---- input projection + positional encoding (first layer step only) ----
    @pl.when(layer == 0)
    def _():
        xin = x_ref[...].astype(cdt)                                      # (BS, In)
        a = jnp.dot(xin, w_in_ref[...],
                    preferred_element_type=jnp.float32) + b_in_ref[...]   # (BS, D) f32
        # broadcast-add the (S, D) positional encoding over batch_block sequences
        a = a.reshape(batch_block, seq_len, D) + pe_ref[...][None, :, :]
        o_ref[...] = a.reshape(BS, D)
        # TODO(synk): positional-encoding dropout skipped (eval mode).

    x = o_ref[...]                                                        # (BS, D) f32

    # ---- multi-head self-attention (pre-norm, per-sequence attention) ----
    xn = _layer_norm(x, ln1w_ref[...], ln1b_ref[...])
    qkv = jnp.dot(xn.astype(cdt), wqkv_ref[...],
                  preferred_element_type=jnp.float32) + bqkv_ref[...]     # (BS, 3D) f32
    qkv_c = qkv.astype(cdt)                                               # one cast
    wo = wo_ref[...]                                                      # (D, D)

    attn = jnp.zeros((BS, D), jnp.float32)
    for h in range(num_heads):               # static; each head's attention is per-seq
        q_h = qkv_c[:, h * hd:(h + 1) * hd].reshape(batch_block, seq_len, hd)
        k_h = qkv_c[:, D + h * hd:D + (h + 1) * hd].reshape(batch_block, seq_len, hd)
        v_h = qkv_c[:, 2 * D + h * hd:2 * D + (h + 1) * hd].reshape(batch_block, seq_len, hd)
        s = jnp.einsum("bqd,bkd->bqk", q_h, k_h,
                       preferred_element_type=jnp.float32) * scale        # (bb, S, S)
        s = s - jnp.max(s, axis=-1, keepdims=True)
        p = jnp.exp(s)
        p = p * pl.reciprocal(jnp.sum(p, axis=-1, keepdims=True), approx=approx_recip)
        # TODO(synk): attention-weight dropout skipped (eval mode).
        o_h = jnp.einsum("bqk,bkd->bqd", p.astype(cdt), v_h,
                         preferred_element_type=jnp.float32)              # (bb, S, hd)
        # Fold the head concat into the output projection: sum_h o_h @ Wo[h].
        attn = attn + jnp.dot(o_h.reshape(BS, hd).astype(cdt),
                              wo[h * hd:(h + 1) * hd, :],
                              preferred_element_type=jnp.float32)
    x = x + attn + bo_ref[...]
    # TODO(synk): residual dropout1 skipped (eval mode).

    # ---- feed-forward network (pre-norm) ----
    xn = _layer_norm(x, ln2w_ref[...], ln2b_ref[...])
    h1 = jnp.dot(xn.astype(cdt), w1_ref[...],
                 preferred_element_type=jnp.float32) + b1_ref[...]        # (BS, F) f32
    h1 = jnp.maximum(h1, 0.0)                                             # ReLU
    h2 = jnp.dot(h1.astype(cdt), w2_ref[...],
                 preferred_element_type=jnp.float32) + b2_ref[...]        # (BS, D) f32
    o_ref[...] = x + h2
    # TODO(synk): FFN / residual dropout2 skipped (eval mode).


# ----------------------------------------------------------------------------
# VMEM / generation sizing helpers
# ----------------------------------------------------------------------------
def _device_limits():
    """Best-effort (vmem_cap_bytes, num_tensorcores) for the local TPU generation."""
    kind = ""
    try:
        kind = jax.devices()[0].device_kind.lower()
    except Exception:
        pass
    is_v7 = "v7" in kind
    vmem_phys = (64 << 20) if is_v7 else (128 << 20)
    try:
        vmem_phys = min(vmem_phys, int(pltpu.get_tpu_info().vmem_capacity_bytes))
    except Exception:
        pass
    if is_v7:
        vmem_cap = vmem_phys - (8 << 20)            # ~56 MiB on v7x
    else:
        vmem_cap = min(100 << 20, vmem_phys - (16 << 20))   # v5e/v6e: up to ~100 MiB
    num_tc = 2 if is_v7 else 1
    return max(vmem_cap, 24 << 20), num_tc


def _vmem_estimate(batch_block, S, In, D, F, w_bytes):
    """Approximate VMEM footprint: double-buffered layer weights + IO + transients."""
    f32 = 4
    BS = batch_block * S
    layer_w = w_bytes * (D * 3 * D + D * D + D * F + F * D) \
        + f32 * (3 * D + D + F + D + 4 * D)                 # biases + LN params (f32)
    weights = 2 * layer_w                                   # double-buffered stream
    consts = 2 * (w_bytes * In * D + f32 * (D + S * D))     # w_in, b_in, pe
    io = 2 * f32 * BS * (In + D)                            # x-in / resident activation
    trans = f32 * BS * (2 * D + 3 * D + D + F + D) \
        + w_bytes * BS * (3 * D + F) \
        + 4 * f32 * batch_block * S * S                     # scores / probs (+margin)
    return weights + consts + io + trans


# ----------------------------------------------------------------------------
# Wrapper: stack / pre-transpose weights and launch one fused pallas_call
# ----------------------------------------------------------------------------
def temporal_transformer_forward(x, params, *, num_heads,
                                 batch_block=None, compute_dtype=jnp.bfloat16):
    B, S, In = x.shape
    D = params["w_in"].shape[0]
    F = params["layers"][0]["w1"].shape[0]
    L = len(params["layers"])
    assert D % num_heads == 0
    assert S <= params["pe"].shape[0]
    pe = params["pe"][:S].astype(jnp.float32)                # (S, D)

    cdt = compute_dtype
    w_bytes = jnp.dtype(cdt).itemsize
    vmem_cap, num_tc = _device_limits()

    # Pick the largest batch block (rows folded into the MXU M dim) that fits the
    # generation's VMEM budget and still gives every TensorCore a grid step.
    if batch_block is None:
        divisors = [d for d in range(B, 0, -1) if B % d == 0]
        valid = [bb for bb in divisors if bb == B or (bb * S) % 8 == 0]
        fitting = [bb for bb in valid
                   if _vmem_estimate(bb, S, In, D, F, w_bytes) + (6 << 20) <= vmem_cap]
        prefer = [bb for bb in fitting if (B // bb) >= num_tc]
        batch_block = (prefer or fitting or [min(valid)])[0]
    assert B % batch_block == 0
    assert batch_block == B or (batch_block * S) % 8 == 0, \
        "batch_block * seq_len must be a multiple of 8 (sublane tiling)"
    NB = B // batch_block
    BS = batch_block * S

    vmem_budget = int(min(
        vmem_cap,
        max(32 << 20, _vmem_estimate(batch_block, S, In, D, F, w_bytes) + (8 << 20))))

    # Pre-transpose weights once to (in, out); matmul weights in compute dtype,
    # biases / LayerNorm params stay f32 (added after the f32-accumulated matmuls).
    w_in_t = params["w_in"].T.astype(cdt)                    # (In, D)
    b_in = params["b_in"].astype(jnp.float32)                # (1, D)
    stack_f32 = lambda k: jnp.stack(
        [lp[k] for lp in params["layers"]]).astype(jnp.float32)
    stack_wt = lambda k: jnp.stack(
        [lp[k].T for lp in params["layers"]]).astype(cdt)

    ln1w, ln1b = stack_f32("ln1_w"), stack_f32("ln1_b")      # (L, 1, D)
    wqkv, bqkv = stack_wt("w_qkv"), stack_f32("b_qkv")       # (L, D, 3D) / (L, 1, 3D)
    wo, bo = stack_wt("w_o"), stack_f32("b_o")               # (L, D, D)  / (L, 1, D)
    ln2w, ln2b = stack_f32("ln2_w"), stack_f32("ln2_b")
    w1, b1 = stack_wt("w1"), stack_f32("b1")                 # (L, D, F)  / (L, 1, F)
    w2, b2 = stack_wt("w2"), stack_f32("b2")                 # (L, F, D)  / (L, 1, D)

    x2 = x.reshape(B * S, In).astype(jnp.float32)

    def const_spec(r, c):      # whole array, same block at every grid step
        return pl.BlockSpec((r, c), lambda nb, l: (0, 0))

    def layer_spec(r, c):      # (L, r, c): layer l's slice, leading dim squeezed
        return pl.BlockSpec((None, r, c), lambda nb, l: (l, 0, 0))

    kernel = functools.partial(
        _fused_temporal_transformer_kernel,
        num_heads=num_heads, batch_block=batch_block, seq_len=S,
        compute_dtype=cdt,
        approx_recip=(jnp.dtype(cdt) != jnp.dtype(jnp.float32)))

    y = pl.pallas_call(
        kernel,
        grid=(NB, L),
        in_specs=[
            pl.BlockSpec((BS, In), lambda nb, l: (nb, 0)),           # x rows of block
            const_spec(In, D), const_spec(1, D), const_spec(S, D),   # w_in, b_in, pe
            layer_spec(1, D), layer_spec(1, D),                      # ln1 w, b
            layer_spec(D, 3 * D), layer_spec(1, 3 * D),              # qkv proj
            layer_spec(D, D), layer_spec(1, D),                      # out proj
            layer_spec(1, D), layer_spec(1, D),                      # ln2 w, b
            layer_spec(D, F), layer_spec(1, F),                      # ffn linear 1
            layer_spec(F, D), layer_spec(1, D),                      # ffn linear 2
        ],
        # Output block constant across the layer axis -> VMEM-resident activation,
        # written back to HBM once per batch block.
        out_specs=pl.BlockSpec((BS, D), lambda nb, l: (nb, 0)),
        out_shape=jax.ShapeDtypeStruct((B * S, D), jnp.float32),
        compiler_params=pltpu.CompilerParams(
            dimension_semantics=("parallel", "arbitrary"),
            vmem_limit_bytes=vmem_budget),
    )(x2, w_in_t, b_in, pe,
      ln1w, ln1b, wqkv, bqkv, wo, bo, ln2w, ln2b, w1, b1, w2, b2)

    return y.reshape(B, S, D)


# ----------------------------------------------------------------------------
# Deterministic parameter construction (PyTorch-style shapes, W:(out,in))
# ----------------------------------------------------------------------------
def _linear_init(key, out_f, in_f):
    kw, kb = jax.random.split(key)
    bound = 1.0 / math.sqrt(in_f)
    w = jax.random.uniform(kw, (out_f, in_f), jnp.float32, -bound, bound)
    b = jax.random.uniform(kb, (1, out_f), jnp.float32, -bound, bound)
    return w, b


def make_params(key, input_size, d_model, num_layers, dim_feedforward, max_seq_length):
    keys = jax.random.split(key, 1 + num_layers)

    # sinusoidal positional encoding
    position = jnp.arange(max_seq_length, dtype=jnp.float32)[:, None]
    div_term = jnp.exp(jnp.arange(0, d_model, 2, dtype=jnp.float32)
                       * (-math.log(10000.0) / d_model))
    pe = jnp.zeros((max_seq_length, d_model), jnp.float32)
    pe = pe.at[:, 0::2].set(jnp.sin(position * div_term))
    pe = pe.at[:, 1::2].set(jnp.cos(position * div_term))

    if input_size == d_model:
        # nn.Identity() in the original module: identity projection, zero bias.
        w_in = jnp.eye(d_model, dtype=jnp.float32)
        b_in = jnp.zeros((1, d_model), jnp.float32)
    else:
        w_in, b_in = _linear_init(keys[0], d_model, input_size)

    layers = []
    for li in range(num_layers):
        lk = jax.random.split(keys[1 + li], 4)
        w_qkv, b_qkv = _linear_init(lk[0], 3 * d_model, d_model)
        w_o, b_o = _linear_init(lk[1], d_model, d_model)
        w1, b1 = _linear_init(lk[2], dim_feedforward, d_model)
        w2, b2 = _linear_init(lk[3], d_model, dim_feedforward)
        layers.append(dict(
            ln1_w=jnp.ones((1, d_model), jnp.float32),
            ln1_b=jnp.zeros((1, d_model), jnp.float32),
            w_qkv=w_qkv, b_qkv=b_qkv, w_o=w_o, b_o=b_o,
            ln2_w=jnp.ones((1, d_model), jnp.float32),
            ln2_b=jnp.zeros((1, d_model), jnp.float32),
            w1=w1, b1=b1, w2=w2, b2=b2,
        ))
    return dict(w_in=w_in, b_in=b_in, pe=pe, layers=layers)


# ----------------------------------------------------------------------------
# Pure-JAX reference for validation
# ----------------------------------------------------------------------------
def reference_forward(x, params, *, num_heads):
    def ln(v, w, b):
        mu = jnp.mean(v, -1, keepdims=True)
        var = jnp.mean((v - mu) ** 2, -1, keepdims=True)
        return (v - mu) / jnp.sqrt(var + 1e-5) * w + b

    B, S, _ = x.shape
    D = params["w_in"].shape[0]
    hd = D // num_heads
    y = x @ params["w_in"].T + params["b_in"] + params["pe"][:S]
    for lp in params["layers"]:
        xn = ln(y, lp["ln1_w"], lp["ln1_b"])
        qkv = xn @ lp["w_qkv"].T + lp["b_qkv"]
        qkv = qkv.reshape(B, S, 3, num_heads, hd).transpose(2, 0, 3, 1, 4)
        q, k, v = qkv[0], qkv[1], qkv[2]
        s = jnp.einsum("bhqd,bhkd->bhqk", q, k) / math.sqrt(hd)
        p = jax.nn.softmax(s, axis=-1)
        o = jnp.einsum("bhqk,bhkd->bhqd", p, v).transpose(0, 2, 1, 3).reshape(B, S, D)
        y = y + (o @ lp["w_o"].T + lp["b_o"])
        xn = ln(y, lp["ln2_w"], lp["ln2_b"])
        h = jnp.maximum(xn @ lp["w1"].T + lp["b1"], 0.0)
        y = y + (h @ lp["w2"].T + lp["b2"])
    return y


# ----------------------------------------------------------------------------
if __name__ == "__main__":
    B, S = 2, 8
    input_size, d_model, nhead = 16, 32, 4
    num_layers, dim_feedforward, max_seq = 2, 64, 10

    key = jax.random.PRNGKey(0)
    kx, kp = jax.random.split(key)
    x = jax.random.normal(kx, (B, S, input_size), jnp.float32)
    params = make_params(kp, input_size, d_model, num_layers, dim_feedforward, max_seq)

    # Reference at the highest matmul precision (pure-JAX f32).
    with jax.default_matmul_precision("highest"):
        ref = jax.block_until_ready(reference_forward(x, params, num_heads=nhead))

    # f32 matmul path (exact-reciprocal softmax): tighter correctness check.
    out_f32 = temporal_transformer_forward(x, params, num_heads=nhead,
                                           compute_dtype=jnp.float32)
    out_f32 = jax.block_until_ready(out_f32)
    assert out_f32.shape == (B, S, d_model)
    assert jnp.allclose(out_f32, ref, atol=2e-2, rtol=2e-2), "f32 mismatch vs reference"

    # Default bf16 MXU fast path (f32 accumulation, approx-reciprocal softmax).
    out_bf16 = temporal_transformer_forward(x, params, num_heads=nhead)
    out_bf16 = jax.block_until_ready(out_bf16)
    assert out_bf16.shape == (B, S, d_model)
    assert jnp.allclose(out_bf16, ref, atol=1.5e-1, rtol=1.5e-1), \
        "bf16 mismatch vs reference"

    print("KERNEL_OK")
</pallas_src>

<mosaic_0001>
module attributes {stable_mosaic.version = 11 : i64} {
  func.func @_fused_temporal_transformer_kernel(%arg0: i32, %arg1: i32, %arg2: memref<16x16xf32, #tpu.memory_space<vmem>>, %arg3: memref<16x32xf32, #tpu.memory_space<vmem>>, %arg4: memref<1x32xf32, #tpu.memory_space<vmem>>, %arg5: memref<8x32xf32, #tpu.memory_space<vmem>>, %arg6: memref<1x1x32xf32, #tpu.memory_space<vmem>>, %arg7: memref<1x1x32xf32, #tpu.memory_space<vmem>>, %arg8: memref<1x32x96xf32, #tpu.memory_space<vmem>>, %arg9: memref<1x1x96xf32, #tpu.memory_space<vmem>>, %arg10: memref<1x32x32xf32, #tpu.memory_space<vmem>>, %arg11: memref<1x1x32xf32, #tpu.memory_space<vmem>>, %arg12: memref<1x1x32xf32, #tpu.memory_space<vmem>>, %arg13: memref<1x1x32xf32, #tpu.memory_space<vmem>>, %arg14: memref<1x32x64xf32, #tpu.memory_space<vmem>>, %arg15: memref<1x1x64xf32, #tpu.memory_space<vmem>>, %arg16: memref<1x64x32xf32, #tpu.memory_space<vmem>>, %arg17: memref<1x1x32xf32, #tpu.memory_space<vmem>>, %arg18: memref<16x32xf32, #tpu.memory_space<vmem>>) attributes {dimension_semantics = [#tpu.dimension_semantics<parallel>, #tpu.dimension_semantics<arbitrary>], iteration_bounds = array<i64: 1, 2>, scalar_prefetch = 0 : i64, scratch_operands = 0 : i64, tpu.core_type = #tpu.core_type<tc>, window_params = [{transform_indices = @transform_0, window_bounds = array<i64: 16, 16>}, {pipeline_mode = #tpu.pipeline_mode<synchronous>, transform_indices = @transform_1, window_bounds = array<i64: 16, 32>}, {pipeline_mode = #tpu.pipeline_mode<synchronous>, transform_indices = @transform_2, window_bounds = array<i64: 1, 32>}, {pipeline_mode = #tpu.pipeline_mode<synchronous>, transform_indices = @transform_3, window_bounds = array<i64: 8, 32>}, {transform_indices = @transform_4, window_bounds = array<i64: 1, 1, 32>}, {transform_indices = @transform_5, window_bounds = array<i64: 1, 1, 32>}, {transform_indices = @transform_6, window_bounds = array<i64: 1, 32, 96>}, {transform_indices = @transform_7, window_bounds = array<i64: 1, 1, 96>}, {transform_indices = @transform_8, window_bounds = array<i64: 1, 32, 32>}, {transform_indices = @transform_9, window_bounds = array<i64: 1, 1, 32>}, {transform_indices = @transform_10, window_bounds = array<i64: 1, 1, 32>}, {transform_indices = @transform_11, window_bounds = array<i64: 1, 1, 32>}, {transform_indices = @transform_12, window_bounds = array<i64: 1, 32, 64>}, {transform_indices = @transform_13, window_bounds = array<i64: 1, 1, 64>}, {transform_indices = @transform_14, window_bounds = array<i64: 1, 64, 32>}, {transform_indices = @transform_15, window_bounds = array<i64: 1, 1, 32>}, {transform_indices = @transform_16, window_bounds = array<i64: 16, 32>}]} {
    %c0_i32 = arith.constant 0 : i32
    %0 = arith.cmpi eq, %arg1, %c0_i32 : i32
    %1 = arith.extui %0 : i1 to i32
    %c0_i32_0 = arith.constant 0 : i32
    %2 = arith.cmpi ne, %1, %c0_i32_0 : i32
    scf.if %2 {
      %c0_78 = arith.constant 0 : index
      %c0_79 = arith.constant 0 : index
      %185 = vector.load %arg2[%c0_78, %c0_79] : memref<16x16xf32, #tpu.memory_space<vmem>>, vector<16x16xf32>
      %c0_80 = arith.constant 0 : index
      %c0_81 = arith.constant 0 : index
      %186 = vector.load %arg3[%c0_80, %c0_81] : memref<16x32xf32, #tpu.memory_space<vmem>>, vector<16x32xf32>
      %cst_82 = arith.constant dense<0.000000e+00> : vector<16x32xf32>
      %187 = tpu.matmul %185, %186, %cst_82 {dimension_numbers = #tpu.dot_dimension_numbers<[1], [0], [0], [1], [0, 0, 1, 1], [], []>} : vector<16x16xf32>, vector<16x32xf32>, vector<16x32xf32> -> vector<16x32xf32>
      %c0_83 = arith.constant 0 : index
      %c0_84 = arith.constant 0 : index
      %188 = vector.load %arg4[%c0_83, %c0_84] : memref<1x32xf32, #tpu.memory_space<vmem>>, vector<1x32xf32>
      %189 = vector.broadcast %188 : vector<1x32xf32> to vector<16x32xf32>
      %190 = arith.addf %187, %189 : vector<16x32xf32>
      %191 = vector.shape_cast %190 : vector<16x32xf32> to vector<2x8x32xf32>
      %c0_85 = arith.constant 0 : index
      %c0_86 = arith.constant 0 : index
      %192 = vector.load %arg5[%c0_85, %c0_86] : memref<8x32xf32, #tpu.memory_space<vmem>>, vector<8x32xf32>
      %193 = vector.shape_cast %192 : vector<8x32xf32> to vector<1x8x32xf32>
      %194 = vector.broadcast %193 : vector<1x8x32xf32> to vector<2x8x32xf32>
      %195 = arith.addf %191, %194 : vector<2x8x32xf32>
      %196 = vector.shape_cast %195 : vector<2x8x32xf32> to vector<16x32xf32>
      %c0_87 = arith.constant 0 : index
      %c0_88 = arith.constant 0 : index
      %197 = vector.load %arg18[%c0_87, %c0_88] : memref<16x32xf32, #tpu.memory_space<vmem>>, vector<16x32xf32>
      tpu.vector_store %arg18[%c0_87, %c0_88], %196 {strides = array<i32>} : memref<16x32xf32, #tpu.memory_space<vmem>>, vector<16x32xf32>,
    } else {
    }
    %c0 = arith.constant 0 : index
    %c0_1 = arith.constant 0 : index
    %3 = vector.load %arg18[%c0, %c0_1] : memref<16x32xf32, #tpu.memory_space<vmem>>, vector<16x32xf32>
    %c0_2 = arith.constant 0 : index
    %c0_3 = arith.constant 0 : index
    %c0_4 = arith.constant 0 : index
    %4 = vector.load %arg6[%c0_2, %c0_3, %c0_4] : memref<1x1x32xf32, #tpu.memory_space<vmem>>, vector<1x1x32xf32>
    %5 = vector.shape_cast %4 : vector<1x1x32xf32> to vector<1x32xf32>
    %c0_5 = arith.constant 0 : index
    %c0_6 = arith.constant 0 : index
    %c0_7 = arith.constant 0 : index
    %6 = vector.load %arg7[%c0_5, %c0_6, %c0_7] : memref<1x1x32xf32, #tpu.memory_space<vmem>>, vector<1x1x32xf32>
    %7 = vector.shape_cast %6 : vector<1x1x32xf32> to vector<1x32xf32>
    %cst = arith.constant dense<0.000000e+00> : vector<16xf32>
    %8 = vector.multi_reduction <add>, %3, %cst [1] : vector<16x32xf32> to vector<16xf32>
    %9 = vector.shape_cast %8 : vector<16xf32> to vector<16x1xf32>
    %cst_8 = arith.constant 3.200000e+01 : f32
    %10 = vector.broadcast %cst_8 : f32 to vector<16x1xf32>
    %11 = arith.divf %9, %10 : vector<16x1xf32>
    %12 = vector.broadcast %11 : vector<16x1xf32> to vector<16x32xf32>
    %13 = arith.subf %3, %12 : vector<16x32xf32>
    %14 = arith.mulf %13, %13 : vector<16x32xf32>
    %cst_9 = arith.constant dense<0.000000e+00> : vector<16xf32>
    %15 = vector.multi_reduction <add>, %14, %cst_9 [1] : vector<16x32xf32> to vector<16xf32>
    %16 = vector.shape_cast %15 : vector<16xf32> to vector<16x1xf32>
    %cst_10 = arith.constant 3.200000e+01 : f32
    %17 = vector.broadcast %cst_10 : f32 to vector<16x1xf32>
    %18 = arith.divf %16, %17 : vector<16x1xf32>
    %19 = vector.broadcast %11 : vector<16x1xf32> to vector<16x32xf32>
    %20 = arith.subf %3, %19 : vector<16x32xf32>
    %cst_11 = arith.constant 9.99999974E-6 : f32
    %21 = vector.broadcast %cst_11 : f32 to vector<16x1xf32>
    %22 = arith.addf %18, %21 : vector<16x1xf32>
    %23 = math.rsqrt %22 : vector<16x1xf32>
    %24 = vector.broadcast %23 : vector<16x1xf32> to vector<16x32xf32>
    %25 = arith.mulf %20, %24 : vector<16x32xf32>
    %26 = vector.broadcast %5 : vector<1x32xf32> to vector<16x32xf32>
    %27 = arith.mulf %25, %26 : vector<16x32xf32>
    %28 = vector.broadcast %7 : vector<1x32xf32> to vector<16x32xf32>
    %29 = arith.addf %27, %28 : vector<16x32xf32>
    %c0_12 = arith.constant 0 : index
    %c0_13 = arith.constant 0 : index
    %c0_14 = arith.constant 0 : index
    %30 = vector.load %arg8[%c0_12, %c0_13, %c0_14] : memref<1x32x96xf32, #tpu.memory_space<vmem>>, vector<1x32x96xf32>
    %31 = vector.shape_cast %30 : vector<1x32x96xf32> to vector<32x96xf32>
    %cst_15 = arith.constant dense<0.000000e+00> : vector<16x96xf32>
    %32 = tpu.matmul %29, %31, %cst_15 {dimension_numbers = #tpu.dot_dimension_numbers<[1], [0], [0], [1], [0, 0, 1, 1], [], []>} : vector<16x32xf32>, vector<32x96xf32>, vector<16x96xf32> -> vector<16x96xf32>
    %c0_16 = arith.constant 0 : index
    %c0_17 = arith.constant 0 : index
    %c0_18 = arith.constant 0 : index
    %33 = vector.load %arg9[%c0_16, %c0_17, %c0_18] : memref<1x1x96xf32, #tpu.memory_space<vmem>>, vector<1x1x96xf32>
    %34 = vector.shape_cast %33 : vector<1x1x96xf32> to vector<1x96xf32>
    %35 = vector.broadcast %34 : vector<1x96xf32> to vector<16x96xf32>
    %36 = arith.addf %32, %35 : vector<16x96xf32>
    %c0_19 = arith.constant 0 : index
    %c0_20 = arith.constant 0 : index
    %c0_21 = arith.constant 0 : index
    %37 = vector.load %arg10[%c0_19, %c0_20, %c0_21] : memref<1x32x32xf32, #tpu.memory_space<vmem>>, vector<1x32x32xf32>
    %38 = vector.shape_cast %37 : vector<1x32x32xf32> to vector<32x32xf32>
    %cst_22 = arith.constant 0.000000e+00 : f32
    %39 = vector.broadcast %cst_22 : f32 to vector<16x32xf32>
    %40 = vector.extract_strided_slice %36 {offsets = [0, 0], sizes = [16, 8], strides = [1, 1]} : vector<16x96xf32> to vector<16x8xf32>
    %41 = vector.shape_cast %40 : vector<16x8xf32> to vector<2x8x8xf32>
    %42 = vector.extract_strided_slice %36 {offsets = [0, 32], sizes = [16, 8], strides = [1, 1]} : vector<16x96xf32> to vector<16x8xf32>
    %43 = vector.shape_cast %42 : vector<16x8xf32> to vector<2x8x8xf32>
    %44 = vector.extract_strided_slice %36 {offsets = [0, 64], sizes = [16, 8], strides = [1, 1]} : vector<16x96xf32> to vector<16x8xf32>
    %45 = vector.shape_cast %44 : vector<16x8xf32> to vector<2x8x8xf32>
    "tpu.trace_start"() <{level = 10 : i32, message = "bqd,bkd->bqk"}> : () -> ()
    %cst_23 = arith.constant dense<0.000000e+00> : vector<2x8x8xf32>
    %46 = tpu.matmul %41, %43, %cst_23 {dimension_numbers = #tpu.dot_dimension_numbers<[2], [2], [1], [1], [0, 0, 0, 1, 1, 1], [0], [0]>} : vector<2x8x8xf32>, vector<2x8x8xf32>, vector<2x8x8xf32> -> vector<2x8x8xf32>
    "tpu.trace_stop"() : () -> ()
    %cst_24 = arith.constant 0.353553385 : f32
    %47 = vector.broadcast %cst_24 : f32 to vector<2x8x8xf32>
    %48 = arith.mulf %46, %47 : vector<2x8x8xf32>
    %cst_25 = arith.constant dense<0xFF800000> : vector<2x8xf32>
    %49 = vector.multi_reduction <maximumf>, %48, %cst_25 [2] : vector<2x8x8xf32> to vector<2x8xf32>
    %50 = vector.shape_cast %49 : vector<2x8xf32> to vector<2x8x1xf32>
    %51 = vector.broadcast %50 : vector<2x8x1xf32> to vector<2x8x8xf32>
    %52 = arith.subf %48, %51 : vector<2x8x8xf32>
    %53 = math.exp %52 : vector<2x8x8xf32>
    %cst_26 = arith.constant dense<0.000000e+00> : vector<2x8xf32>
    %54 = vector.multi_reduction <add>, %53, %cst_26 [2] : vector<2x8x8xf32> to vector<2x8xf32>
    %55 = vector.shape_cast %54 : vector<2x8xf32> to vector<2x8x1xf32>
    %56 = tpu.reciprocal %55 : vector<2x8x1xf32> -> vector<2x8x1xf32>
    %57 = vector.broadcast %56 : vector<2x8x1xf32> to vector<2x8x8xf32>
    %58 = arith.mulf %53, %57 : vector<2x8x8xf32>
    "tpu.trace_start"() <{level = 10 : i32, message = "bqk,bkd->bqd"}> : () -> ()
    %cst_27 = arith.constant dense<0.000000e+00> : vector<2x8x8xf32>
    %59 = tpu.matmul %58, %45, %cst_27 {dimension_numbers = #tpu.dot_dimension_numbers<[2], [1], [1], [2], [0, 0, 0, 1, 1, 2], [0], [0]>} : vector<2x8x8xf32>, vector<2x8x8xf32>, vector<2x8x8xf32> -> vector<2x8x8xf32>
    "tpu.trace_stop"() : () -> ()
    %60 = vector.shape_cast %59 : vector<2x8x8xf32> to vector<16x8xf32>
    %61 = vector.extract_strided_slice %38 {offsets = [0, 0], sizes = [8, 32], strides = [1, 1]} : vector<32x32xf32> to vector<8x32xf32>
    %cst_28 = arith.constant dense<0.000000e+00> : vector<16x32xf32>
    %62 = tpu.matmul %60, %61, %cst_28 {dimension_numbers = #tpu.dot_dimension_numbers<[1], [0], [0], [1], [0, 0, 1, 1], [], []>} : vector<16x8xf32>, vector<8x32xf32>, vector<16x32xf32> -> vector<16x32xf32>
    %63 = arith.addf %39, %62 : vector<16x32xf32>
    %64 = vector.extract_strided_slice %36 {offsets = [0, 8], sizes = [16, 8], strides = [1, 1]} : vector<16x96xf32> to vector<16x8xf32>
    %65 = vector.shape_cast %64 : vector<16x8xf32> to vector<2x8x8xf32>
    %66 = vector.extract_strided_slice %36 {offsets = [0, 40], sizes = [16, 8], strides = [1, 1]} : vector<16x96xf32> to vector<16x8xf32>
    %67 = vector.shape_cast %66 : vector<16x8xf32> to vector<2x8x8xf32>
    %68 = vector.extract_strided_slice %36 {offsets = [0, 72], sizes = [16, 8], strides = [1, 1]} : vector<16x96xf32> to vector<16x8xf32>
    %69 = vector.shape_cast %68 : vector<16x8xf32> to vector<2x8x8xf32>
    "tpu.trace_start"() <{level = 10 : i32, message = "bqd,bkd->bqk"}> : () -> ()
    %cst_29 = arith.constant dense<0.000000e+00> : vector<2x8x8xf32>
    %70 = tpu.matmul %65, %67, %cst_29 {dimension_numbers = #tpu.dot_dimension_numbers<[2], [2], [1], [1], [0, 0, 0, 1, 1, 1], [0], [0]>} : vector<2x8x8xf32>, vector<2x8x8xf32>, vector<2x8x8xf32> -> vector<2x8x8xf32>
    "tpu.trace_stop"() : () -> ()
    %cst_30 = arith.constant 0.353553385 : f32
    %71 = vector.broadcast %cst_30 : f32 to vector<2x8x8xf32>
    %72 = arith.mulf %70, %71 : vector<2x8x8xf32>
    %cst_31 = arith.constant dense<0xFF800000> : vector<2x8xf32>
    %73 = vector.multi_reduction <maximumf>, %72, %cst_31 [2] : vector<2x8x8xf32> to vector<2x8xf32>
    %74 = vector.shape_cast %73 : vector<2x8xf32> to vector<2x8x1xf32>
    %75 = vector.broadcast %74 : vector<2x8x1xf32> to vector<2x8x8xf32>
    %76 = arith.subf %72, %75 : vector<2x8x8xf32>
    %77 = math.exp %76 : vector<2x8x8xf32>
    %cst_32 = arith.constant dense<0.000000e+00> : vector<2x8xf32>
    %78 = vector.multi_reduction <add>, %77, %cst_32 [2] : vector<2x8x8xf32> to vector<2x8xf32>
    %79 = vector.shape_cast %78 : vector<2x8xf32> to vector<2x8x1xf32>
    %80 = tpu.reciprocal %79 : vector<2x8x1xf32> -> vector<2x8x1xf32>
    %81 = vector.broadcast %80 : vector<2x8x1xf32> to vector<2x8x8xf32>
    %82 = arith.mulf %77, %81 : vector<2x8x8xf32>
    "tpu.trace_start"() <{level = 10 : i32, message = "bqk,bkd->bqd"}> : () -> ()
    %cst_33 = arith.constant dense<0.000000e+00> : vector<2x8x8xf32>
    %83 = tpu.matmul %82, %69, %cst_33 {dimension_numbers = #tpu.dot_dimension_numbers<[2], [1], [1], [2], [0, 0, 0, 1, 1, 2], [0], [0]>} : vector<2x8x8xf32>, vector<2x8x8xf32>, vector<2x8x8xf32> -> vector<2x8x8xf32>
    "tpu.trace_stop"() : () -> ()
    %84 = vector.shape_cast %83 : vector<2x8x8xf32> to vector<16x8xf32>
    %85 = vector.extract_strided_slice %38 {offsets = [8, 0], sizes = [8, 32], strides = [1, 1]} : vector<32x32xf32> to vector<8x32xf32>
    %cst_34 = arith.constant dense<0.000000e+00> : vector<16x32xf32>
    %86 = tpu.matmul %84, %85, %cst_34 {dimension_numbers = #tpu.dot_dimension_numbers<[1], [0], [0], [1], [0, 0, 1, 1], [], []>} : vector<16x8xf32>, vector<8x32xf32>, vector<16x32xf32> -> vector<16x32xf32>
    %87 = arith.addf %63, %86 : vector<16x32xf32>
    %88 = vector.extract_strided_slice %36 {offsets = [0, 16], sizes = [16, 8], strides = [1, 1]} : vector<16x96xf32> to vector<16x8xf32>
    %89 = vector.shape_cast %88 : vector<16x8xf32> to vector<2x8x8xf32>
    %90 = vector.extract_strided_slice %36 {offsets = [0, 48], sizes = [16, 8], strides = [1, 1]} : vector<16x96xf32> to vector<16x8xf32>
    %91 = vector.shape_cast %90 : vector<16x8xf32> to vector<2x8x8xf32>
    %92 = vector.extract_strided_slice %36 {offsets = [0, 80], sizes = [16, 8], strides = [1, 1]} : vector<16x96xf32> to vector<16x8xf32>
    %93 = vector.shape_cast %92 : vector<16x8xf32> to vector<2x8x8xf32>
    "tpu.trace_start"() <{level = 10 : i32, message = "bqd,bkd->bqk"}> : () -> ()
    %cst_35 = arith.constant dense<0.000000e+00> : vector<2x8x8xf32>
    %94 = tpu.matmul %89, %91, %cst_35 {dimension_numbers = #tpu.dot_dimension_numbers<[2], [2], [1], [1], [0, 0, 0, 1, 1, 1], [0], [0]>} : vector<2x8x8xf32>, vector<2x8x8xf32>, vector<2x8x8xf32> -> vector<2x8x8xf32>
    "tpu.trace_stop"() : () -> ()
    %cst_36 = arith.constant 0.353553385 : f32
    %95 = vector.broadcast %cst_36 : f32 to vector<2x8x8xf32>
    %96 = arith.mulf %94, %95 : vector<2x8x8xf32>
    %cst_37 = arith.constant dense<0xFF800000> : vector<2x8xf32>
    %97 = vector.multi_reduction <maximumf>, %96, %cst_37 [2] : vector<2x8x8xf32> to vector<2x8xf32>
    %98 = vector.shape_cast %97 : vector<2x8xf32> to vector<2x8x1xf32>
    %99 = vector.broadcast %98 : vector<2x8x1xf32> to vector<2x8x8xf32>
    %100 = arith.subf %96, %99 : vector<2x8x8xf32>
    %101 = math.exp %100 : vector<2x8x8xf32>
    %cst_38 = arith.constant dense<0.000000e+00> : vector<2x8xf32>
    %102 = vector.multi_reduction <add>, %101, %cst_38 [2] : vector<2x8x8xf32> to vector<2x8xf32>
    %103 = vector.shape_cast %102 : vector<2x8xf32> to vector<2x8x1xf32>
    %104 = tpu.reciprocal %103 : vector<2x8x1xf32> -> vector<2x8x1xf32>
    %105 = vector.broadcast %104 : vector<2x8x1xf32> to vector<2x8x8xf32>
    %106 = arith.mulf %101, %105 : vector<2x8x8xf32>
    "tpu.trace_start"() <{level = 10 : i32, message = "bqk,bkd->bqd"}> : () -> ()
    %cst_39 = arith.constant dense<0.000000e+00> : vector<2x8x8xf32>
    %107 = tpu.matmul %106, %93, %cst_39 {dimension_numbers = #tpu.dot_dimension_numbers<[2], [1], [1], [2], [0, 0, 0, 1, 1, 2], [0], [0]>} : vector<2x8x8xf32>, vector<2x8x8xf32>, vector<2x8x8xf32> -> vector<2x8x8xf32>
    "tpu.trace_stop"() : () -> ()
    %108 = vector.shape_cast %107 : vector<2x8x8xf32> to vector<16x8xf32>
    %109 = vector.extract_strided_slice %38 {offsets = [16, 0], sizes = [8, 32], strides = [1, 1]} : vector<32x32xf32> to vector<8x32xf32>
    %cst_40 = arith.constant dense<0.000000e+00> : vector<16x32xf32>
    %110 = tpu.matmul %108, %109, %cst_40 {dimension_numbers = #tpu.dot_dimension_numbers<[1], [0], [0], [1], [0, 0, 1, 1], [], []>} : vector<16x8xf32>, vector<8x32xf32>, vector<16x32xf32> -> vector<16x32xf32>
    %111 = arith.addf %87, %110 : vector<16x32xf32>
    %112 = vector.extract_strided_slice %36 {offsets = [0, 24], sizes = [16, 8], strides = [1, 1]} : vector<16x96xf32> to vector<16x8xf32>
    %113 = vector.shape_cast %112 : vector<16x8xf32> to vector<2x8x8xf32>
    %114 = vector.extract_strided_slice %36 {offsets = [0, 56], sizes = [16, 8], strides = [1, 1]} : vector<16x96xf32> to vector<16x8xf32>
    %115 = vector.shape_cast %114 : vector<16x8xf32> to vector<2x8x8xf32>
    %116 = vector.extract_strided_slice %36 {offsets = [0, 88], sizes = [16, 8], strides = [1, 1]} : vector<16x96xf32> to vector<16x8xf32>
    %117 = vector.shape_cast %116 : vector<16x8xf32> to vector<2x8x8xf32>
    "tpu.trace_start"() <{level = 10 : i32, message = "bqd,bkd->bqk"}> : () -> ()
    %cst_41 = arith.constant dense<0.000000e+00> : vector<2x8x8xf32>
    %118 = tpu.matmul %113, %115, %cst_41 {dimension_numbers = #tpu.dot_dimension_numbers<[2], [2], [1], [1], [0, 0, 0, 1, 1, 1], [0], [0]>} : vector<2x8x8xf32>, vector<2x8x8xf32>, vector<2x8x8xf32> -> vector<2x8x8xf32>
    "tpu.trace_stop"() : () -> ()
    %cst_42 = arith.constant 0.353553385 : f32
    %119 = vector.broadcast %cst_42 : f32 to vector<2x8x8xf32>
    %120 = arith.mulf %118, %119 : vector<2x8x8xf32>
    %cst_43 = arith.constant dense<0xFF800000> : vector<2x8xf32>
    %121 = vector.multi_reduction <maximumf>, %120, %cst_43 [2] : vector<2x8x8xf32> to vector<2x8xf32>
    %122 = vector.shape_cast %121 : vector<2x8xf32> to vector<2x8x1xf32>
    %123 = vector.broadcast %122 : vector<2x8x1xf32> to vector<2x8x8xf32>
    %124 = arith.subf %120, %123 : vector<2x8x8xf32>
    %125 = math.exp %124 : vector<2x8x8xf32>
    %cst_44 = arith.constant dense<0.000000e+00> : vector<2x8xf32>
    %126 = vector.multi_reduction <add>, %125, %cst_44 [2] : vector<2x8x8xf32> to vector<2x8xf32>
    %127 = vector.shape_cast %126 : vector<2x8xf32> to vector<2x8x1xf32>
    %128 = tpu.reciprocal %127 : vector<2x8x1xf32> -> vector<2x8x1xf32>
    %129 = vector.broadcast %128 : vector<2x8x1xf32> to vector<2x8x8xf32>
    %130 = arith.mulf %125, %129 : vector<2x8x8xf32>
    "tpu.trace_start"() <{level = 10 : i32, message = "bqk,bkd->bqd"}> : () -> ()
    %cst_45 = arith.constant dense<0.000000e+00> : vector<2x8x8xf32>
    %131 = tpu.matmul %130, %117, %cst_45 {dimension_numbers = #tpu.dot_dimension_numbers<[2], [1], [1], [2], [0, 0, 0, 1, 1, 2], [0], [0]>} : vector<2x8x8xf32>, vector<2x8x8xf32>, vector<2x8x8xf32> -> vector<2x8x8xf32>
    "tpu.trace_stop"() : () -> ()
    %132 = vector.shape_cast %131 : vector<2x8x8xf32> to vector<16x8xf32>
    %133 = vector.extract_strided_slice %38 {offsets = [24, 0], sizes = [8, 32], strides = [1, 1]} : vector<32x32xf32> to vector<8x32xf32>
    %cst_46 = arith.constant dense<0.000000e+00> : vector<16x32xf32>
    %134 = tpu.matmul %132, %133, %cst_46 {dimension_numbers = #tpu.dot_dimension_numbers<[1], [0], [0], [1], [0, 0, 1, 1], [], []>} : vector<16x8xf32>, vector<8x32xf32>, vector<16x32xf32> -> vector<16x32xf32>
    %135 = arith.addf %111, %134 : vector<16x32xf32>
    %136 = arith.addf %3, %135 : vector<16x32xf32>
    %c0_47 = arith.constant 0 : index
    %c0_48 = arith.constant 0 : index
    %c0_49 = arith.constant 0 : index
    %137 = vector.load %arg11[%c0_47, %c0_48, %c0_49] : memref<1x1x32xf32, #tpu.memory_space<vmem>>, vector<1x1x32xf32>
    %138 = vector.shape_cast %137 : vector<1x1x32xf32> to vector<1x32xf32>
    %139 = vector.broadcast %138 : vector<1x32xf32> to vector<16x32xf32>
    %140 = arith.addf %136, %139 : vector<16x32xf32>
    %c0_50 = arith.constant 0 : index
    %c0_51 = arith.constant 0 : index
    %c0_52 = arith.constant 0 : index
    %141 = vector.load %arg12[%c0_50, %c0_51, %c0_52] : memref<1x1x32xf32, #tpu.memory_space<vmem>>, vector<1x1x32xf32>
    %142 = vector.shape_cast %141 : vector<1x1x32xf32> to vector<1x32xf32>
    %c0_53 = arith.constant 0 : index
    %c0_54 = arith.constant 0 : index
    %c0_55 = arith.constant 0 : index
    %143 = vector.load %arg13[%c0_53, %c0_54, %c0_55] : memref<1x1x32xf32, #tpu.memory_space<vmem>>, vector<1x1x32xf32>
    %144 = vector.shape_cast %143 : vector<1x1x32xf32> to vector<1x32xf32>
    %cst_56 = arith.constant dense<0.000000e+00> : vector<16xf32>
    %145 = vector.multi_reduction <add>, %140, %cst_56 [1] : vector<16x32xf32> to vector<16xf32>
    %146 = vector.shape_cast %145 : vector<16xf32> to vector<16x1xf32>
    %cst_57 = arith.constant 3.200000e+01 : f32
    %147 = vector.broadcast %cst_57 : f32 to vector<16x1xf32>
    %148 = arith.divf %146, %147 : vector<16x1xf32>
    %149 = vector.broadcast %148 : vector<16x1xf32> to vector<16x32xf32>
    %150 = arith.subf %140, %149 : vector<16x32xf32>
    %151 = arith.mulf %150, %150 : vector<16x32xf32>
    %cst_58 = arith.constant dense<0.000000e+00> : vector<16xf32>
    %152 = vector.multi_reduction <add>, %151, %cst_58 [1] : vector<16x32xf32> to vector<16xf32>
    %153 = vector.shape_cast %152 : vector<16xf32> to vector<16x1xf32>
    %cst_59 = arith.constant 3.200000e+01 : f32
    %154 = vector.broadcast %cst_59 : f32 to vector<16x1xf32>
    %155 = arith.divf %153, %154 : vector<16x1xf32>
    %156 = vector.broadcast %148 : vector<16x1xf32> to vector<16x32xf32>
    %157 = arith.subf %140, %156 : vector<16x32xf32>
    %cst_60 = arith.constant 9.99999974E-6 : f32
    %158 = vector.broadcast %cst_60 : f32 to vector<16x1xf32>
    %159 = arith.addf %155, %158 : vector<16x1xf32>
    %160 = math.rsqrt %159 : vector<16x1xf32>
    %161 = vector.broadcast %160 : vector<16x1xf32> to vector<16x32xf32>
    %162 = arith.mulf %157, %161 : vector<16x32xf32>
    %163 = vector.broadcast %142 : vector<1x32xf32> to vector<16x32xf32>
    %164 = arith.mulf %162, %163 : vector<16x32xf32>
    %165 = vector.broadcast %144 : vector<1x32xf32> to vector<16x32xf32>
    %166 = arith.addf %164, %165 : vector<16x32xf32>
    %c0_61 = arith.constant 0 : index
    %c0_62 = arith.constant 0 : index
    %c0_63 = arith.constant 0 : index
    %167 = vector.load %arg14[%c0_61, %c0_62, %c0_63] : memref<1x32x64xf32, #tpu.memory_space<vmem>>, vector<1x32x64xf32>
    %168 = vector.shape_cast %167 : vector<1x32x64xf32> to vector<32x64xf32>
    %cst_64 = arith.constant dense<0.000000e+00> : vector<16x64xf32>
    %169 = tpu.matmul %166, %168, %cst_64 {dimension_numbers = #tpu.dot_dimension_numbers<[1], [0], [0], [1], [0, 0, 1, 1], [], []>} : vector<16x32xf32>, vector<32x64xf32>, vector<16x64xf32> -> vector<16x64xf32>
    %c0_65 = arith.constant 0 : index
    %c0_66 = arith.constant 0 : index
    %c0_67 = arith.constant 0 : index
    %170 = vector.load %arg15[%c0_65, %c0_66, %c0_67] : memref<1x1x64xf32, #tpu.memory_space<vmem>>, vector<1x1x64xf32>
    %171 = vector.shape_cast %170 : vector<1x1x64xf32> to vector<1x64xf32>
    %172 = vector.broadcast %171 : vector<1x64xf32> to vector<16x64xf32>
    %173 = arith.addf %169, %172 : vector<16x64xf32>
    %cst_68 = arith.constant 0.000000e+00 : f32
    %174 = vector.broadcast %cst_68 : f32 to vector<16x64xf32>
    %175 = arith.maximumf %173, %174 : vector<16x64xf32>
    %c0_69 = arith.constant 0 : index
    %c0_70 = arith.constant 0 : index
    %c0_71 = arith.constant 0 : index
    %176 = vector.load %arg16[%c0_69, %c0_70, %c0_71] : memref<1x64x32xf32, #tpu.memory_space<vmem>>, vector<1x64x32xf32>
    %177 = vector.shape_cast %176 : vector<1x64x32xf32> to vector<64x32xf32>
    %cst_72 = arith.constant dense<0.000000e+00> : vector<16x32xf32>
    %178 = tpu.matmul %175, %177, %cst_72 {dimension_numbers = #tpu.dot_dimension_numbers<[1], [0], [0], [1], [0, 0, 1, 1], [], []>} : vector<16x64xf32>, vector<64x32xf32>, vector<16x32xf32> -> vector<16x32xf32>
    %c0_73 = arith.constant 0 : index
    %c0_74 = arith.constant 0 : index
    %c0_75 = arith.constant 0 : index
    %179 = vector.load %arg17[%c0_73, %c0_74, %c0_75] : memref<1x1x32xf32, #tpu.memory_space<vmem>>, vector<1x1x32xf32>
    %180 = vector.shape_cast %179 : vector<1x1x32xf32> to vector<1x32xf32>
    %181 = vector.broadcast %180 : vector<1x32xf32> to vector<16x32xf32>
    %182 = arith.addf %178, %181 : vector<16x32xf32>
    %183 = arith.addf %140, %182 : vector<16x32xf32>
    %c0_76 = arith.constant 0 : index
    %c0_77 = arith.constant 0 : index
    %184 = vector.load %arg18[%c0_76, %c0_77] : memref<16x32xf32, #tpu.memory_space<vmem>>, vector<16x32xf32>
    tpu.vector_store %arg18[%c0_76, %c0_77], %183 {strides = array<i32>} : memref<16x32xf32, #tpu.memory_space<vmem>>, vector<16x32xf32>,
    return
  }
  func.func @transform_0(%arg0: i32, %arg1: i32) -> (i32, i32) {
    %c0_i32 = arith.constant 0 : i32
    %c0_i32_0 = arith.constant 0 : i32
    return %arg0, %c0_i32 : i32, i32
  }
  func.func @transform_1(%arg0: i32, %arg1: i32) -> (i32, i32) {
    %c0_i32 = arith.constant 0 : i32
    %c0_i32_0 = arith.constant 0 : i32
    %c0_i32_1 = arith.constant 0 : i32
    return %c0_i32, %c0_i32_0 : i32, i32
  }
  func.func @transform_2(%arg0: i32, %arg1: i32) -> (i32, i32) {
    %c0_i32 = arith.constant 0 : i32
    %c0_i32_0 = arith.constant 0 : i32
    %c0_i32_1 = arith.constant 0 : i32
    return %c0_i32, %c0_i32_0 : i32, i32
  }
  func.func @transform_3(%arg0: i32, %arg1: i32) -> (i32, i32) {
    %c0_i32 = arith.constant 0 : i32
    %c0_i32_0 = arith.constant 0 : i32
    %c0_i32_1 = arith.constant 0 : i32
    return %c0_i32, %c0_i32_0 : i32, i32
  }
  func.func @transform_4(%arg0: i32, %arg1: i32) -> (i32, i32, i32) {
    %c0_i32 = arith.constant 0 : i32
    %c0_i32_0 = arith.constant 0 : i32
    %c0_i32_1 = arith.constant 0 : i32
    return %arg1, %c0_i32, %c0_i32_0 : i32, i32, i32
  }
  func.func @transform_5(%arg0: i32, %arg1: i32) -> (i32, i32, i32) {
    %c0_i32 = arith.constant 0 : i32
    %c0_i32_0 = arith.constant 0 : i32
    %c0_i32_1 = arith.constant 0 : i32
    return %arg1, %c0_i32, %c0_i32_0 : i32, i32, i32
  }
  func.func @transform_6(%arg0: i32, %arg1: i32) -> (i32, i32, i32) {
    %c0_i32 = arith.constant 0 : i32
    %c0_i32_0 = arith.constant 0 : i32
    %c0_i32_1 = arith.constant 0 : i32
    return %arg1, %c0_i32, %c0_i32_0 : i32, i32, i32
  }
  func.func @transform_7(%arg0: i32, %arg1: i32) -> (i32, i32, i32) {
    %c0_i32 = arith.constant 0 : i32
    %c0_i32_0 = arith.constant 0 : i32
    %c0_i32_1 = arith.constant 0 : i32
    return %arg1, %c0_i32, %c0_i32_0 : i32, i32, i32
  }
  func.func @transform_8(%arg0: i32, %arg1: i32) -> (i32, i32, i32) {
    %c0_i32 = arith.constant 0 : i32
    %c0_i32_0 = arith.constant 0 : i32
    %c0_i32_1 = arith.constant 0 : i32
    return %arg1, %c0_i32, %c0_i32_0 : i32, i32, i32
  }
  func.func @transform_9(%arg0: i32, %arg1: i32) -> (i32, i32, i32) {
    %c0_i32 = arith.constant 0 : i32
    %c0_i32_0 = arith.constant 0 : i32
    %c0_i32_1 = arith.constant 0 : i32
    return %arg1, %c0_i32, %c0_i32_0 : i32, i32, i32
  }
  func.func @transform_10(%arg0: i32, %arg1: i32) -> (i32, i32, i32) {
    %c0_i32 = arith.constant 0 : i32
    %c0_i32_0 = arith.constant 0 : i32
    %c0_i32_1 = arith.constant 0 : i32
    return %arg1, %c0_i32, %c0_i32_0 : i32, i32, i32
  }
  func.func @transform_11(%arg0: i32, %arg1: i32) -> (i32, i32, i32) {
    %c0_i32 = arith.constant 0 : i32
    %c0_i32_0 = arith.constant 0 : i32
    %c0_i32_1 = arith.constant 0 : i32
    return %arg1, %c0_i32, %c0_i32_0 : i32, i32, i32
  }
  func.func @transform_12(%arg0: i32, %arg1: i32) -> (i32, i32, i32) {
    %c0_i32 = arith.constant 0 : i32
    %c0_i32_0 = arith.constant 0 : i32
    %c0_i32_1 = arith.constant 0 : i32
    return %arg1, %c0_i32, %c0_i32_0 : i32, i32, i32
  }
  func.func @transform_13(%arg0: i32, %arg1: i32) -> (i32, i32, i32) {
    %c0_i32 = arith.constant 0 : i32
    %c0_i32_0 = arith.constant 0 : i32
    %c0_i32_1 = arith.constant 0 : i32
    return %arg1, %c0_i32, %c0_i32_0 : i32, i32, i32
  }
  func.func @transform_14(%arg0: i32, %arg1: i32) -> (i32, i32, i32) {
    %c0_i32 = arith.constant 0 : i32
    %c0_i32_0 = arith.constant 0 : i32
    %c0_i32_1 = arith.constant 0 : i32
    return %arg1, %c0_i32, %c0_i32_0 : i32, i32, i32
  }
  func.func @transform_15(%arg0: i32, %arg1: i32) -> (i32, i32, i32) {
    %c0_i32 = arith.constant 0 : i32
    %c0_i32_0 = arith.constant 0 : i32
    %c0_i32_1 = arith.constant 0 : i32
    return %arg1, %c0_i32, %c0_i32_0 : i32, i32, i32
  }
  func.func @transform_16(%arg0: i32, %arg1: i32) -> (i32, i32) {
    %c0_i32 = arith.constant 0 : i32
    %c0_i32_0 = arith.constant 0 : i32
    return %arg0, %c0_i32 : i32, i32
  }
}

</mosaic_0001>

<llo_original>
// kernel: tpu_custom_call.1
$region0: #{tpu_custom_call.1}
  #allocation0 [shape = 'u32[]', space=smem, size = 0x4, offset = 0x4, fixed_abs, tag = 'smem constant byte address 0x4 - core index']
  #allocation1 [shape = 'u32[144,128]{1,0:T(1,128)}', space=vmem, size = 0x12000, scoped, tag = 'internal scratch']
  %s0 = inlined_call_operand.hbm [shape: f32[16,16], index: 0, kind: input, shape index: {}]
  %s1 = inlined_call_operand.hbm [shape: f32[16,32], index: 1, kind: input, shape index: {}]
  %s2 = inlined_call_operand.hbm [shape: f32[1,32], index: 2, kind: input, shape index: {}]
  %s3 = inlined_call_operand.vmem [shape: f32[8,32], index: 3, kind: input, shape index: {}]
  %s4 = inlined_call_operand.vmem [shape: f32[2,1,32], index: 4, kind: input, shape index: {}]
  %s5 = inlined_call_operand.vmem [shape: f32[2,1,32], index: 5, kind: input, shape index: {}]
  %s6 = inlined_call_operand.vmem [shape: f32[2,32,96], index: 6, kind: input, shape index: {}]
  %s7 = inlined_call_operand.vmem [shape: f32[2,1,96], index: 7, kind: input, shape index: {}]
  %s8 = inlined_call_operand.vmem [shape: f32[2,32,32], index: 8, kind: input, shape index: {}]
  %s9 = inlined_call_operand.vmem [shape: f32[2,1,32], index: 9, kind: input, shape index: {}]
  %s10 = inlined_call_operand.vmem [shape: f32[2,1,32], index: 10, kind: input, shape index: {}]
  %s11 = inlined_call_operand.vmem [shape: f32[2,1,32], index: 11, kind: input, shape index: {}]
  %s12 = inlined_call_operand.vmem [shape: f32[2,32,64], index: 12, kind: input, shape index: {}]
  %s13 = inlined_call_operand.vmem [shape: f32[2,1,64], index: 13, kind: input, shape index: {}]
  %s14 = inlined_call_operand.vmem [shape: f32[2,64,32], index: 14, kind: input, shape index: {}]
  %s15 = inlined_call_operand.vmem [shape: f32[2,1,32], index: 15, kind: input, shape index: {}]
  %s16 = inlined_call_operand.hbm [shape: f32[16,32], index: 16, kind: output, shape index: {}]
  %s17 = sld [smem:[#allocation0]]
  $region113: #{tpu_custom_call.1} parent=0
    _
  %s19 = ssub.s32 1, %s17
  %s20 = scalar_select 0, %s19, %s17
  $region1: #{tpu_custom_call.1} parent=0
    #allocation2 [shape = 'u8[8192]{0}', space=vmem, size = 0x2000, scoped, tag = 'input window, operand 0, single buffered']
    #allocation3 [shape = 's32[2]{0}', space=sflag, size = 0x8, scoped, tag = 'scoped memory for tpu_custom_call.1']
    #allocation4 [shape = 's32[2]{0}', space=sflag, size = 0x8, scoped, tag = 'scoped memory for tpu_custom_call.1']
    #allocation5 [shape = 'u8[8192]{0}', space=vmem, size = 0x2000, scoped, tag = 'input window, operand 1, single buffered']
    #allocation6 [shape = 's32[1]{0}', space=sflag, size = 0x4, scoped, tag = 'scoped memory for tpu_custom_call.1']
    #allocation7 [shape = 'u8[512]{0}', space=vmem, size = 0x400, scoped, tag = 'input window, operand 2, single buffered']
    #allocation8 [shape = 'u8[8192]{0}', space=vmem, size = 0x2000, scoped, tag = 'output window, operand 0, single buffered']
    %21 = vsyncpa [#allocation3], 0
    %22 = vsyncpa [#allocation6], 0
    %23 = vsyncpa [#allocation4], 0
    loop: start=0, step=1, limit=4
    $region2: #{tpu_custom_call.1} parent=1 // loop_pre_header
      _
    $region3: #{tpu_custom_call.1} parent=1 // loop_header
      %s25 = sphi 0, %s29
      %p26 = scmp.ge.s32.totalorder %s25, 4
      %s32 = sphi 0, %s44
      %s33 = sphi 0, %s40
      %s34 = sphi 0, %s32
      %s35 = sphi 0, %s33
      %s36 = sphi 0, %s34
      %s37 = sphi 0, %s35
      %s47 = sphi 0, %s49
      %s50 = sphi 0, %s47
      %s51 = sphi 0, %s50
      %s67 = sphi 0, %s51
      %s71 = sphi 0, %s71
      %s73 = sphi 0, %s71
      %s74 = sphi 0, %s73
      %s88 = sphi 0, %s74
      %s92 = sphi 0, %s92
      %s94 = sphi 0, %s92
      %s95 = sphi 0, %s94
      %s109 = sphi 0, %s95
      %s113 = sphi 0, %s113
      %s115 = sphi 0, %s113
      %s116 = sphi 0, %s115
      %s130 = sphi 0, %s116
      %s136 = sphi 0, %s138
      %s139 = sphi 0, %s136
      %s140 = sphi 0, %s139
      %s156 = sphi 0, %s140
      %s162 = sphi 0, %s164
      %s165 = sphi 0, %s162
      %s166 = sphi 0, %s165
      %s182 = sphi 0, %s166
      %s188 = sphi 0, %s190
      %s191 = sphi 0, %s188
      %s192 = sphi 0, %s191
      %s208 = sphi 0, %s192
      %s214 = sphi 0, %s216
      %s217 = sphi 0, %s214
      %s218 = sphi 0, %s217
      %s234 = sphi 0, %s218
      %s240 = sphi 0, %s242
      %s243 = sphi 0, %s240
      %s244 = sphi 0, %s243
      %s260 = sphi 0, %s244
      %s266 = sphi 0, %s268
      %s269 = sphi 0, %s266
      %s270 = sphi 0, %s269
      %s286 = sphi 0, %s270
      %s292 = sphi 0, %s294
      %s295 = sphi 0, %s292
      %s296 = sphi 0, %s295
      %s312 = sphi 0, %s296
      %s318 = sphi 0, %s320
      %s321 = sphi 0, %s318
      %s322 = sphi 0, %s321
      %s338 = sphi 0, %s322
      %s344 = sphi 0, %s346
      %s347 = sphi 0, %s344
      %s348 = sphi 0, %s347
      %s364 = sphi 0, %s348
      %s370 = sphi 0, %s372
      %s373 = sphi 0, %s370
      %s374 = sphi 0, %s373
      %s390 = sphi 0, %s374
      %s396 = sphi 0, %s398
      %s399 = sphi 0, %s396
      %s400 = sphi 0, %s399
      %s416 = sphi 0, %s400
      %s422 = sphi 0, %s424
      %s425 = sphi 0, %s422
      %s426 = sphi 0, %s425
      %s442 = sphi 0, %s426
      %s448 = sphi 0, %s450
      %s451 = sphi 0, %s448
      %s452 = sphi 0, %s451
      %s468 = sphi 0, %s452
    $region4: #{tpu_custom_call.1} parent=1 // loop_header_branch
      %28 = sbr.rel (%p26) target = $region8
    $region5: #{tpu_custom_call.1} parent=1 // loop_body
      %s30 = ssub.s32 %s25, 1
      %s31 = ssub.s32 %s25, 2
      %s38 = sadd.s32 1, %s33
      %p39 = scmp.ge.s32.totalorder %s38, 2
      %s40 = scalar_select %p39, 0, %s38
      %s41 = sadd.s32 1, %s32
      %s42 = scalar_select %p39, %s41, %s32
      %p43 = scmp.ge.s32.totalorder %s42, 1
      %s44 = scalar_select %p43, 0, %s42
      %s45 = ssub.s32 %s32, %s44
      %p46 = scmp.eq.s32.totalorder %s45, 0
      %s48 = sadd.s32 %s47, 1
      %s49 = scalar_select %p46, %s47, %s48
      %p52 = pneg %p46
      %p53 = scmp.eq.s32.totalorder %s25, 1
      %p54 = por %p52, %p53
      %p55 = scmp.ne.s32.totalorder %s47, %s50
      %p56 = scmp.eq.s32.totalorder %s25, 0
      %p57 = por %p55, %p56
      %p58 = scmp.ne.s32.totalorder %s47, %s50
      %p59 = scmp.eq.s32.totalorder %s30, 1
      %p60 = por %p58, %p59
      %p61 = scmp.ne.s32.totalorder %s50, %s51
      %p62 = scmp.eq.s32.totalorder %s30, 0
      %p63 = por %p61, %p62
      %p64 = scmp.ne.s32.totalorder %s50, %s51
      %p65 = scmp.eq.s32.totalorder %s31, 1
      %p66 = por %p64, %p65
      %p68 = scmp.ne.s32.totalorder %s51, %s67
      %p69 = scmp.eq.s32.totalorder %s31, 0
      %p70 = por %p68, %p69
      %s72 = sadd.s32 %s71, 1
      %p75 = scmp.eq.s32.totalorder %s25, 1
      %p76 = scmp.ne.s32.totalorder %s71, %s73
      %p77 = scmp.eq.s32.totalorder %s25, 0
      %p78 = por %p76, %p77
      %p79 = scmp.ne.s32.totalorder %s71, %s73
      %p80 = scmp.eq.s32.totalorder %s30, 1
      %p81 = por %p79, %p80
      %p82 = scmp.ne.s32.totalorder %s73, %s74
      %p83 = scmp.eq.s32.totalorder %s30, 0
      %p84 = por %p82, %p83
      %p85 = scmp.ne.s32.totalorder %s73, %s74
      %p86 = scmp.eq.s32.totalorder %s31, 1
      %p87 = por %p85, %p86
      %p89 = scmp.ne.s32.totalorder %s74, %s88
      %p90 = scmp.eq.s32.totalorder %s31, 0
      %p91 = por %p89, %p90
      %s93 = sadd.s32 %s92, 1
      %p96 = scmp.eq.s32.totalorder %s25, 1
      %p97 = scmp.ne.s32.totalorder %s92, %s94
      %p98 = scmp.eq.s32.totalorder %s25, 0
      %p99 = por %p97, %p98
      %p100 = scmp.ne.s32.totalorder %s92, %s94
      %p101 = scmp.eq.s32.totalorder %s30, 1
      %p102 = por %p100, %p101
      %p103 = scmp.ne.s32.totalorder %s94, %s95
      %p104 = scmp.eq.s32.totalorder %s30, 0
      %p105 = por %p103, %p104
      %p106 = scmp.ne.s32.totalorder %s94, %s95
      %p107 = scmp.eq.s32.totalorder %s31, 1
      %p108 = por %p106, %p107
      %p110 = scmp.ne.s32.totalorder %s95, %s109
      %p111 = scmp.eq.s32.totalorder %s31, 0
      %p112 = por %p110, %p111
      %s114 = sadd.s32 %s113, 1
      %p117 = scmp.eq.s32.totalorder %s25, 1
      %p118 = scmp.ne.s32.totalorder %s113, %s115
      %p119 = scmp.eq.s32.totalorder %s25, 0
      %p120 = por %p118, %p119
      %p121 = scmp.ne.s32.totalorder %s113, %s115
      %p122 = scmp.eq.s32.totalorder %s30, 1
      %p123 = por %p121, %p122
      %p124 = scmp.ne.s32.totalorder %s115, %s116
      %p125 = scmp.eq.s32.totalorder %s30, 0
      %p126 = por %p124, %p125
      %p127 = scmp.ne.s32.totalorder %s115, %s116
      %p128 = scmp.eq.s32.totalorder %s31, 1
      %p129 = por %p127, %p128
      %p131 = scmp.ne.s32.totalorder %s116, %s130
      %p132 = scmp.eq.s32.totalorder %s31, 0
      %p133 = por %p131, %p132
      %s134 = ssub.s32 %s33, %s40
      %p135 = scmp.eq.s32.totalorder %s134, 0
      %s137 = sadd.s32 %s136, 1
      %s138 = scalar_select %p135, %s136, %s137
      %p141 = pneg %p135
      %p142 = scmp.eq.s32.totalorder %s25, 1
      %p143 = por %p141, %p142
      %p144 = scmp.ne.s32.totalorder %s136, %s139
      %p145 = scmp.eq.s32.totalorder %s25, 0
      %p146 = por %p144, %p145
      %p147 = scmp.ne.s32.totalorder %s136, %s139
      %p148 = scmp.eq.s32.totalorder %s30, 1
      %p149 = por %p147, %p148
      %p150 = scmp.ne.s32.totalorder %s139, %s140
      %p151 = scmp.eq.s32.totalorder %s30, 0
      %p152 = por %p150, %p151
      %p153 = scmp.ne.s32.totalorder %s139, %s140
      %p154 = scmp.eq.s32.totalorder %s31, 1
      %p155 = por %p153, %p154
      %p157 = scmp.ne.s32.totalorder %s140, %s156
      %p158 = scmp.eq.s32.totalorder %s31, 0
      %p159 = por %p157, %p158
      %s160 = ssub.s32 %s33, %s40
      %p161 = scmp.eq.s32.totalorder %s160, 0
      %s163 = sadd.s32 %s162, 1
      %s164 = scalar_select %p161, %s162, %s163
      %p167 = pneg %p161
      %p168 = scmp.eq.s32.totalorder %s25, 1
      %p169 = por %p167, %p168
      %p170 = scmp.ne.s32.totalorder %s162, %s165
      %p171 = scmp.eq.s32.totalorder %s25, 0
      %p172 = por %p170, %p171
      %p173 = scmp.ne.s32.totalorder %s162, %s165
      %p174 = scmp.eq.s32.totalorder %s30, 1
      %p175 = por %p173, %p174
      %p176 = scmp.ne.s32.totalorder %s165, %s166
      %p177 = scmp.eq.s32.totalorder %s30, 0
      %p178 = por %p176, %p177
      %p179 = scmp.ne.s32.totalorder %s165, %s166
      %p180 = scmp.eq.s32.totalorder %s31, 1
      %p181 = por %p179, %p180
      %p183 = scmp.ne.s32.totalorder %s166, %s182
      %p184 = scmp.eq.s32.totalorder %s31, 0
      %p185 = por %p183, %p184
      %s186 = ssub.s32 %s33, %s40
      %p187 = scmp.eq.s32.totalorder %s186, 0
      %s189 = sadd.s32 %s188, 1
      %s190 = scalar_select %p187, %s188, %s189
      %p193 = pneg %p187
      %p194 = scmp.eq.s32.totalorder %s25, 1
      %p195 = por %p193, %p194
      %p196 = scmp.ne.s32.totalorder %s188, %s191
      %p197 = scmp.eq.s32.totalorder %s25, 0
      %p198 = por %p196, %p197
      %p199 = scmp.ne.s32.totalorder %s188, %s191
      %p200 = scmp.eq.s32.totalorder %s30, 1
      %p201 = por %p199, %p200
      %p202 = scmp.ne.s32.totalorder %s191, %s192
      %p203 = scmp.eq.s32.totalorder %s30, 0
      %p204 = por %p202, %p203
      %p205 = scmp.ne.s32.totalorder %s191, %s192
      %p206 = scmp.eq.s32.totalorder %s31, 1
      %p207 = por %p205, %p206
      %p209 = scmp.ne.s32.totalorder %s192, %s208
      %p210 = scmp.eq.s32.totalorder %s31, 0
      %p211 = por %p209, %p210
      %s212 = ssub.s32 %s33, %s40
      %p213 = scmp.eq.s32.totalorder %s212, 0
      %s215 = sadd.s32 %s214, 1
      %s216 = scalar_select %p213, %s214, %s215
      %p219 = pneg %p213
      %p220 = scmp.eq.s32.totalorder %s25, 1
      %p221 = por %p219, %p220
      %p222 = scmp.ne.s32.totalorder %s214, %s217
      %p223 = scmp.eq.s32.totalorder %s25, 0
      %p224 = por %p222, %p223
      %p225 = scmp.ne.s32.totalorder %s214, %s217
      %p226 = scmp.eq.s32.totalorder %s30, 1
      %p227 = por %p225, %p226
      %p228 = scmp.ne.s32.totalorder %s217, %s218
      %p229 = scmp.eq.s32.totalorder %s30, 0
      %p230 = por %p228, %p229
      %p231 = scmp.ne.s32.totalorder %s217, %s218
      %p232 = scmp.eq.s32.totalorder %s31, 1
      %p233 = por %p231, %p232
      %p235 = scmp.ne.s32.totalorder %s218, %s234
      %p236 = scmp.eq.s32.totalorder %s31, 0
      %p237 = por %p235, %p236
      %s238 = ssub.s32 %s33, %s40
      %p239 = scmp.eq.s32.totalorder %s238, 0
      %s241 = sadd.s32 %s240, 1
      %s242 = scalar_select %p239, %s240, %s241
      %p245 = pneg %p239
      %p246 = scmp.eq.s32.totalorder %s25, 1
      %p247 = por %p245, %p246
      %p248 = scmp.ne.s32.totalorder %s240, %s243
      %p249 = scmp.eq.s32.totalorder %s25, 0
      %p250 = por %p248, %p249
      %p251 = scmp.ne.s32.totalorder %s240, %s243
      %p252 = scmp.eq.s32.totalorder %s30, 1
      %p253 = por %p251, %p252
      %p254 = scmp.ne.s32.totalorder %s243, %s244
      %p255 = scmp.eq.s32.totalorder %s30, 0
      %p256 = por %p254, %p255
      %p257 = scmp.ne.s32.totalorder %s243, %s244
      %p258 = scmp.eq.s32.totalorder %s31, 1
      %p259 = por %p257, %p258
      %p261 = scmp.ne.s32.totalorder %s244, %s260
      %p262 = scmp.eq.s32.totalorder %s31, 0
      %p263 = por %p261, %p262
      %s264 = ssub.s32 %s33, %s40
      %p265 = scmp.eq.s32.totalorder %s264, 0
      %s267 = sadd.s32 %s266, 1
      %s268 = scalar_select %p265, %s266, %s267
      %p271 = pneg %p265
      %p272 = scmp.eq.s32.totalorder %s25, 1
      %p273 = por %p271, %p272
      %p274 = scmp.ne.s32.totalorder %s266, %s269
      %p275 = scmp.eq.s32.totalorder %s25, 0
      %p276 = por %p274, %p275
      %p277 = scmp.ne.s32.totalorder %s266, %s269
      %p278 = scmp.eq.s32.totalorder %s30, 1
      %p279 = por %p277, %p278
      %p280 = scmp.ne.s32.totalorder %s269, %s270
      %p281 = scmp.eq.s32.totalorder %s30, 0
      %p282 = por %p280, %p281
      %p283 = scmp.ne.s32.totalorder %s269, %s270
      %p284 = scmp.eq.s32.totalorder %s31, 1
      %p285 = por %p283, %p284
      %p287 = scmp.ne.s32.totalorder %s270, %s286
      %p288 = scmp.eq.s32.totalorder %s31, 0
      %p289 = por %p287, %p288
      %s290 = ssub.s32 %s33, %s40
      %p291 = scmp.eq.s32.totalorder %s290, 0
      %s293 = sadd.s32 %s292, 1
      %s294 = scalar_select %p291, %s292, %s293
      %p297 = pneg %p291
      %p298 = scmp.eq.s32.totalorder %s25, 1
      %p299 = por %p297, %p298
      %p300 = scmp.ne.s32.totalorder %s292, %s295
      %p301 = scmp.eq.s32.totalorder %s25, 0
      %p302 = por %p300, %p301
      %p303 = scmp.ne.s32.totalorder %s292, %s295
      %p304 = scmp.eq.s32.totalorder %s30, 1
      %p305 = por %p303, %p304
      %p306 = scmp.ne.s32.totalorder %s295, %s296
      %p307 = scmp.eq.s32.totalorder %s30, 0
      %p308 = por %p306, %p307
      %p309 = scmp.ne.s32.totalorder %s295, %s296
      %p310 = scmp.eq.s32.totalorder %s31, 1
      %p311 = por %p309, %p310
      %p313 = scmp.ne.s32.totalorder %s296, %s312
      %p314 = scmp.eq.s32.totalorder %s31, 0
      %p315 = por %p313, %p314
      %s316 = ssub.s32 %s33, %s40
      %p317 = scmp.eq.s32.totalorder %s316, 0
      %s319 = sadd.s32 %s318, 1
      %s320 = scalar_select %p317, %s318, %s319
      %p323 = pneg %p317
      %p324 = scmp.eq.s32.totalorder %s25, 1
      %p325 = por %p323, %p324
      %p326 = scmp.ne.s32.totalorder %s318, %s321
      %p327 = scmp.eq.s32.totalorder %s25, 0
      %p328 = por %p326, %p327
      %p329 = scmp.ne.s32.totalorder %s318, %s321
      %p330 = scmp.eq.s32.totalorder %s30, 1
      %p331 = por %p329, %p330
      %p332 = scmp.ne.s32.totalorder %s321, %s322
      %p333 = scmp.eq.s32.totalorder %s30, 0
      %p334 = por %p332, %p333
      %p335 = scmp.ne.s32.totalorder %s321, %s322
      %p336 = scmp.eq.s32.totalorder %s31, 1
      %p337 = por %p335, %p336
      %p339 = scmp.ne.s32.totalorder %s322, %s338
      %p340 = scmp.eq.s32.totalorder %s31, 0
      %p341 = por %p339, %p340
      %s342 = ssub.s32 %s33, %s40
      %p343 = scmp.eq.s32.totalorder %s342, 0
      %s345 = sadd.s32 %s344, 1
      %s346 = scalar_select %p343, %s344, %s345
      %p349 = pneg %p343
      %p350 = scmp.eq.s32.totalorder %s25, 1
      %p351 = por %p349, %p350
      %p352 = scmp.ne.s32.totalorder %s344, %s347
      %p353 = scmp.eq.s32.totalorder %s25, 0
      %p354 = por %p352, %p353
      %p355 = scmp.ne.s32.totalorder %s344, %s347
      %p356 = scmp.eq.s32.totalorder %s30, 1
      %p357 = por %p355, %p356
      %p358 = scmp.ne.s32.totalorder %s347, %s348
      %p359 = scmp.eq.s32.totalorder %s30, 0
      %p360 = por %p358, %p359
      %p361 = scmp.ne.s32.totalorder %s347, %s348
      %p362 = scmp.eq.s32.totalorder %s31, 1
      %p363 = por %p361, %p362
      %p365 = scmp.ne.s32.totalorder %s348, %s364
      %p366 = scmp.eq.s32.totalorder %s31, 0
      %p367 = por %p365, %p366
      %s368 = ssub.s32 %s33, %s40
      %p369 = scmp.eq.s32.totalorder %s368, 0
      %s371 = sadd.s32 %s370, 1
      %s372 = scalar_select %p369, %s370, %s371
      %p375 = pneg %p369
      %p376 = scmp.eq.s32.totalorder %s25, 1
      %p377 = por %p375, %p376
      %p378 = scmp.ne.s32.totalorder %s370, %s373
      %p379 = scmp.eq.s32.totalorder %s25, 0
      %p380 = por %p378, %p379
      %p381 = scmp.ne.s32.totalorder %s370, %s373
      %p382 = scmp.eq.s32.totalorder %s30, 1
      %p383 = por %p381, %p382
      %p384 = scmp.ne.s32.totalorder %s373, %s374
      %p385 = scmp.eq.s32.totalorder %s30, 0
      %p386 = por %p384, %p385
      %p387 = scmp.ne.s32.totalorder %s373, %s374
      %p388 = scmp.eq.s32.totalorder %s31, 1
      %p389 = por %p387, %p388
      %p391 = scmp.ne.s32.totalorder %s374, %s390
      %p392 = scmp.eq.s32.totalorder %s31, 0
      %p393 = por %p391, %p392
      %s394 = ssub.s32 %s33, %s40
      %p395 = scmp.eq.s32.totalorder %s394, 0
      %s397 = sadd.s32 %s396, 1
      %s398 = scalar_select %p395, %s396, %s397
      %p401 = pneg %p395
      %p402 = scmp.eq.s32.totalorder %s25, 1
      %p403 = por %p401, %p402
      %p404 = scmp.ne.s32.totalorder %s396, %s399
      %p405 = scmp.eq.s32.totalorder %s25, 0
      %p406 = por %p404, %p405
      %p407 = scmp.ne.s32.totalorder %s396, %s399
      %p408 = scmp.eq.s32.totalorder %s30, 1
      %p409 = por %p407, %p408
      %p410 = scmp.ne.s32.totalorder %s399, %s400
      %p411 = scmp.eq.s32.totalorder %s30, 0
      %p412 = por %p410, %p411
      %p413 = scmp.ne.s32.totalorder %s399, %s400
      %p414 = scmp.eq.s32.totalorder %s31, 1
      %p415 = por %p413, %p414
      %p417 = scmp.ne.s32.totalorder %s400, %s416
      %p418 = scmp.eq.s32.totalorder %s31, 0
      %p419 = por %p417, %p418
      %s420 = ssub.s32 %s33, %s40
      %p421 = scmp.eq.s32.totalorder %s420, 0
      %s423 = sadd.s32 %s422, 1
      %s424 = scalar_select %p421, %s422, %s423
      %p427 = pneg %p421
      %p428 = scmp.eq.s32.totalorder %s25, 1
      %p429 = por %p427, %p428
      %p430 = scmp.ne.s32.totalorder %s422, %s425
      %p431 = scmp.eq.s32.totalorder %s25, 0
      %p432 = por %p430, %p431
      %p433 = scmp.ne.s32.totalorder %s422, %s425
      %p434 = scmp.eq.s32.totalorder %s30, 1
      %p435 = por %p433, %p434
      %p436 = scmp.ne.s32.totalorder %s425, %s426
      %p437 = scmp.eq.s32.totalorder %s30, 0
      %p438 = por %p436, %p437
      %p439 = scmp.ne.s32.totalorder %s425, %s426
      %p440 = scmp.eq.s32.totalorder %s31, 1
      %p441 = por %p439, %p440
      %p443 = scmp.ne.s32.totalorder %s426, %s442
      %p444 = scmp.eq.s32.totalorder %s31, 0
      %p445 = por %p443, %p444
      %s446 = ssub.s32 %s32, %s44
      %p447 = scmp.eq.s32.totalorder %s446, 0
      %s449 = sadd.s32 %s448, 1
      %s450 = scalar_select %p447, %s448, %s449
      %p453 = pneg %p447
      %p454 = scmp.eq.s32.totalorder %s25, 1
      %p455 = por %p453, %p454
      %p456 = scmp.ne.s32.totalorder %s448, %s451
      %p457 = scmp.eq.s32.totalorder %s25, 0
      %p458 = por %p456, %p457
      %p459 = scmp.ne.s32.totalorder %s448, %s451
      %p460 = scmp.eq.s32.totalorder %s30, 1
      %p461 = por %p459, %p460
      %p462 = scmp.ne.s32.totalorder %s451, %s452
      %p463 = scmp.eq.s32.totalorder %s30, 0
      %p464 = por %p462, %p463
      %p465 = scmp.ne.s32.totalorder %s451, %s452
      %p466 = scmp.eq.s32.totalorder %s31, 1
      %p467 = por %p465, %p466
      %p469 = scmp.ne.s32.totalorder %s452, %s468
      %p470 = scmp.eq.s32.totalorder %s31, 0
      %p471 = por %p469, %p470
      %p472 = scmp.le.s32.totalorder 1, %s25
      %p473 = scmp.lt.s32.totalorder %s25, 3
      %p474 = pnand %p472, %p473
      %p475 = pneg %p474
      // Predicated region
      $region9: #{tpu_custom_call.1} parent=5 // pred_check
        _
      $region10: #{tpu_custom_call.1} parent=5 // pred_check_branch
        %477 = sbr.rel (%p474) target = $region12
      $region11: #{tpu_custom_call.1} parent=5 // pred_region
        %s478 = ssub.s32 %s25, 1
        // Predicated region
        $region13: #{tpu_custom_call.1} parent=11 // pred_check
          %p479 = pneg %p63
        $region14: #{tpu_custom_call.1} parent=11 // pred_check_branch
          %481 = sbr.rel (%p479) target = $region16
        $region15: #{tpu_custom_call.1} parent=11 // pred_region
          %s482 = smul.u32 2, %s34
          %s484 = ssub.s32 256, 256
          %485 = vsyncadd [#allocation3], %s484
          %s486 = smul.addr %s482, 128
          %s487 = scalar_lea.hbm %s0, %s486
          %s488 = sshll.u32 [#allocation2], 4
          %s489 = int_to_ptr.vmem [resolvable:$true] %s488
          %494 = dma.hbm_to_vmem [thread:$0]  %s487, 256, %s489, [#allocation3], 128, 128, 8
        $region16: #{tpu_custom_call.1} parent=11 // pred_fallthru
          _
        // Predicated region
        $region17: #{tpu_custom_call.1} parent=11 // pred_check
          %p495 = pneg %p84
        $region18: #{tpu_custom_call.1} parent=11 // pred_check_branch
          %497 = sbr.rel (%p495) target = $region20
        $region19: #{tpu_custom_call.1} parent=11 // pred_region
          %s499 = ssub.s32 256, 256
          %500 = vsyncadd [#allocation6], %s499
          %s501 = sshll.u32 [#allocation5], 4
          %s502 = int_to_ptr.vmem [resolvable:$true] %s501
          %507 = dma.hbm_to_vmem [thread:$0]  %s1, 256, %s502, [#allocation6], 128, 128, 8
        $region20: #{tpu_custom_call.1} parent=11 // pred_fallthru
          _
        // Predicated region
        $region21: #{tpu_custom_call.1} parent=11 // pred_check
          %p508 = pneg %p105
        $region22: #{tpu_custom_call.1} parent=11 // pred_check_branch
          %510 = sbr.rel (%p508) target = $region24
        $region23: #{tpu_custom_call.1} parent=11 // pred_region
          %s512 = ssub.s32 16, 16
          %513 = vsyncadd [#allocation6], %s512
          %s515 = sshll.u32 [#allocation7], 4
          %s516 = int_to_ptr.vmem [resolvable:$true] %s515
          %518 = dma.hbm_to_vmem [thread:$0]  %s2, 16, %s516, [#allocation6]
        $region24: #{tpu_custom_call.1} parent=11 // pred_fallthru
          _
        // Predicated region
        $region25: #{tpu_custom_call.1} parent=11 // pred_check
          %p519 = pneg %p126
        $region26: #{tpu_custom_call.1} parent=11 // pred_check_branch
          %521 = sbr.rel (%p519) target = $region28
        $region27: #{tpu_custom_call.1} parent=11 // pred_region
          _
        $region28: #{tpu_custom_call.1} parent=11 // pred_fallthru
          _
      $region12: #{tpu_custom_call.1} parent=5 // pred_fallthru
        _
      %p522 = scmp.lt.s32.totalorder %s25, 2
      // Predicated region
      $region29: #{tpu_custom_call.1} parent=5 // pred_check
        %p523 = pneg %p522
      $region30: #{tpu_custom_call.1} parent=5 // pred_check_branch
        %525 = sbr.rel (%p523) target = $region32
      $region31: #{tpu_custom_call.1} parent=5 // pred_region
        // Predicated region
        $region33: #{tpu_custom_call.1} parent=31 // pred_check
          %p526 = pneg %p146
        $region34: #{tpu_custom_call.1} parent=31 // pred_check_branch
          %528 = sbr.rel (%p526) target = $region36
        $region35: #{tpu_custom_call.1} parent=31 // pred_region
          %p529 = scmp.lt.s32.totalorder %s33, 1
          %s530 = scalar_select %p529, %s33, 1
          %s531 = scalar_lea.vmem %s4, %s530
        $region36: #{tpu_custom_call.1} parent=31 // pred_fallthru
          _
        // Predicated region
        $region37: #{tpu_custom_call.1} parent=31 // pred_check
          %p532 = pneg %p172
        $region38: #{tpu_custom_call.1} parent=31 // pred_check_branch
          %534 = sbr.rel (%p532) target = $region40
        $region39: #{tpu_custom_call.1} parent=31 // pred_region
          %p535 = scmp.lt.s32.totalorder %s33, 1
          %s536 = scalar_select %p535, %s33, 1
          %s537 = scalar_lea.vmem %s5, %s536
        $region40: #{tpu_custom_call.1} parent=31 // pred_fallthru
          _
        // Predicated region
        $region41: #{tpu_custom_call.1} parent=31 // pred_check
          %p538 = pneg %p198
        $region42: #{tpu_custom_call.1} parent=31 // pred_check_branch
          %540 = sbr.rel (%p538) target = $region44
        $region43: #{tpu_custom_call.1} parent=31 // pred_region
          %p541 = scmp.lt.s32.totalorder %s33, 1
          %s542 = scalar_select %p541, %s33, 1
          %s543 = smul.addr %s542, 4
          %s544 = smul.addr %s543, 8
          %s545 = scalar_lea.vmem %s6, %s544
        $region44: #{tpu_custom_call.1} parent=31 // pred_fallthru
          _
        // Predicated region
        $region45: #{tpu_custom_call.1} parent=31 // pred_check
          %p546 = pneg %p224
        $region46: #{tpu_custom_call.1} parent=31 // pred_check_branch
          %548 = sbr.rel (%p546) target = $region48
        $region47: #{tpu_custom_call.1} parent=31 // pred_region
          %p549 = scmp.lt.s32.totalorder %s33, 1
          %s550 = scalar_select %p549, %s33, 1
          %s551 = scalar_lea.vmem %s7, %s550
        $region48: #{tpu_custom_call.1} parent=31 // pred_fallthru
          _
        // Predicated region
        $region49: #{tpu_custom_call.1} parent=31 // pred_check
          %p552 = pneg %p250
        $region50: #{tpu_custom_call.1} parent=31 // pred_check_branch
          %554 = sbr.rel (%p552) target = $region52
        $region51: #{tpu_custom_call.1} parent=31 // pred_region
          %p555 = scmp.lt.s32.totalorder %s33, 1
          %s556 = scalar_select %p555, %s33, 1
          %s557 = smul.addr %s556, 4
          %s558 = smul.addr %s557, 8
          %s559 = scalar_lea.vmem %s8, %s558
        $region52: #{tpu_custom_call.1} parent=31 // pred_fallthru
          _
        // Predicated region
        $region53: #{tpu_custom_call.1} parent=31 // pred_check
          %p560 = pneg %p276
        $region54: #{tpu_custom_call.1} parent=31 // pred_check_branch
          %562 = sbr.rel (%p560) target = $region56
        $region55: #{tpu_custom_call.1} parent=31 // pred_region
          %p563 = scmp.lt.s32.totalorder %s33, 1
          %s564 = scalar_select %p563, %s33, 1
          %s565 = scalar_lea.vmem %s9, %s564
        $region56: #{tpu_custom_call.1} parent=31 // pred_fallthru
          _
        // Predicated region
        $region57: #{tpu_custom_call.1} parent=31 // pred_check
          %p566 = pneg %p302
        $region58: #{tpu_custom_call.1} parent=31 // pred_check_branch
          %568 = sbr.rel (%p566) target = $region60
        $region59: #{tpu_custom_call.1} parent=31 // pred_region
          %p569 = scmp.lt.s32.totalorder %s33, 1
          %s570 = scalar_select %p569, %s33, 1
          %s571 = scalar_lea.vmem %s10, %s570
        $region60: #{tpu_custom_call.1} parent=31 // pred_fallthru
          _
        // Predicated region
        $region61: #{tpu_custom_call.1} parent=31 // pred_check
          %p572 = pneg %p328
        $region62: #{tpu_custom_call.1} parent=31 // pred_check_branch
          %574 = sbr.rel (%p572) target = $region64
        $region63: #{tpu_custom_call.1} parent=31 // pred_region
          %p575 = scmp.lt.s32.totalorder %s33, 1
          %s576 = scalar_select %p575, %s33, 1
          %s577 = scalar_lea.vmem %s11, %s576
        $region64: #{tpu_custom_call.1} parent=31 // pred_fallthru
          _
        // Predicated region
        $region65: #{tpu_custom_call.1} parent=31 // pred_check
          %p578 = pneg %p354
        $region66: #{tpu_custom_call.1} parent=31 // pred_check_branch
          %580 = sbr.rel (%p578) target = $region68
        $region67: #{tpu_custom_call.1} parent=31 // pred_region
          %p581 = scmp.lt.s32.totalorder %s33, 1
          %s582 = scalar_select %p581, %s33, 1
          %s583 = smul.addr %s582, 4
          %s584 = smul.addr %s583, 8
          %s585 = scalar_lea.vmem %s12, %s584
        $region68: #{tpu_custom_call.1} parent=31 // pred_fallthru
          _
        // Predicated region
        $region69: #{tpu_custom_call.1} parent=31 // pred_check
          %p586 = pneg %p380
        $region70: #{tpu_custom_call.1} parent=31 // pred_check_branch
          %588 = sbr.rel (%p586) target = $region72
        $region71: #{tpu_custom_call.1} parent=31 // pred_region
          %p589 = scmp.lt.s32.totalorder %s33, 1
          %s590 = scalar_select %p589, %s33, 1
          %s591 = scalar_lea.vmem %s13, %s590
        $region72: #{tpu_custom_call.1} parent=31 // pred_fallthru
          _
        // Predicated region
        $region73: #{tpu_custom_call.1} parent=31 // pred_check
          %p592 = pneg %p406
        $region74: #{tpu_custom_call.1} parent=31 // pred_check_branch
          %594 = sbr.rel (%p592) target = $region76
        $region75: #{tpu_custom_call.1} parent=31 // pred_region
          %p595 = scmp.lt.s32.totalorder %s33, 1
          %s596 = scalar_select %p595, %s33, 1
          %s597 = smul.addr %s596, 8
          %s598 = smul.addr %s597, 8
          %s599 = scalar_lea.vmem %s14, %s598
        $region76: #{tpu_custom_call.1} parent=31 // pred_fallthru
          _
        // Predicated region
        $region77: #{tpu_custom_call.1} parent=31 // pred_check
          %p600 = pneg %p432
        $region78: #{tpu_custom_call.1} parent=31 // pred_check_branch
          %602 = sbr.rel (%p600) target = $region80
        $region79: #{tpu_custom_call.1} parent=31 // pred_region
          %p603 = scmp.lt.s32.totalorder %s33, 1
          %s604 = scalar_select %p603, %s33, 1
          %s605 = scalar_lea.vmem %s15, %s604
        $region80: #{tpu_custom_call.1} parent=31 // pred_fallthru
          _
      $region32: #{tpu_custom_call.1} parent=5 // pred_fallthru
        _
      %p606 = scmp.le.s32.totalorder 1, %s25
      %p607 = scmp.lt.s32.totalorder %s25, 3
      %p608 = pnand %p606, %p607
      %p609 = pneg %p608
      // Predicated region
      $region81: #{tpu_custom_call.1} parent=5 // pred_check
        _
      $region82: #{tpu_custom_call.1} parent=5 // pred_check_branch
        %611 = sbr.rel (%p608) target = $region84
      $region83: #{tpu_custom_call.1} parent=5 // pred_region
        %s612 = ssub.s32 %s25, 1
        // Predicated region
        $region85: #{tpu_custom_call.1} parent=83 // pred_check
          %p613 = pneg %p63
        $region86: #{tpu_custom_call.1} parent=83 // pred_check_branch
          %615 = sbr.rel (%p613) target = $region88
        $region87: #{tpu_custom_call.1} parent=83 // pred_region
          %616 = dma.done [#allocation3], 256
        $region88: #{tpu_custom_call.1} parent=83 // pred_fallthru
          _
        // Predicated region
        $region89: #{tpu_custom_call.1} parent=83 // pred_check
          %p617 = pneg %p84
        $region90: #{tpu_custom_call.1} parent=83 // pred_check_branch
          %619 = sbr.rel (%p617) target = $region92
        $region91: #{tpu_custom_call.1} parent=83 // pred_region
          %620 = dma.done [#allocation6], 256
        $region92: #{tpu_custom_call.1} parent=83 // pred_fallthru
          _
        // Predicated region
        $region93: #{tpu_custom_call.1} parent=83 // pred_check
          %p621 = pneg %p105
        $region94: #{tpu_custom_call.1} parent=83 // pred_check_branch
          %623 = sbr.rel (%p621) target = $region96
        $region95: #{tpu_custom_call.1} parent=83 // pred_region
          %624 = dma.done [#allocation6], 16
        $region96: #{tpu_custom_call.1} parent=83 // pred_fallthru
          _
        %p625 = pneg %p63
        %p626 = pneg %p60
        %p627 = pneg %p84
        %p628 = pneg %p81
        %p629 = pneg %p105
        %p630 = pneg %p102
        %p631 = pneg %p126
        %p632 = pneg %p123
        %p633 = scmp.lt.s32.totalorder %s35, 1
        %s634 = scalar_select %p633, %s35, 1
        %s635 = scalar_lea.vmem %s4, %s634
        %p636 = pneg %p152
        %p637 = pneg %p149
        %p638 = scmp.lt.s32.totalorder %s35, 1
        %s639 = scalar_select %p638, %s35, 1
        %s640 = scalar_lea.vmem %s5, %s639
        %p641 = pneg %p178
        %p642 = pneg %p175
        %p643 = scmp.lt.s32.totalorder %s35, 1
        %s644 = scalar_select %p643, %s35, 1
        %s645 = smul.addr %s644, 4
        %s646 = smul.addr %s645, 8
        %s647 = scalar_lea.vmem %s6, %s646
        %p648 = pneg %p204
        %p649 = pneg %p201
        %p650 = scmp.lt.s32.totalorder %s35, 1
        %s651 = scalar_select %p650, %s35, 1
        %s652 = scalar_lea.vmem %s7, %s651
        %p653 = pneg %p230
        %p654 = pneg %p227
        %p655 = scmp.lt.s32.totalorder %s35, 1
        %s656 = scalar_select %p655, %s35, 1
        %s657 = smul.addr %s656, 4
        %s658 = smul.addr %s657, 8
        %s659 = scalar_lea.vmem %s8, %s658
        %p660 = pneg %p256
        %p661 = pneg %p253
        %p662 = scmp.lt.s32.totalorder %s35, 1
        %s663 = scalar_select %p662, %s35, 1
        %s664 = scalar_lea.vmem %s9, %s663
        %p665 = pneg %p282
        %p666 = pneg %p279
        %p667 = scmp.lt.s32.totalorder %s35, 1
        %s668 = scalar_select %p667, %s35, 1
        %s669 = scalar_lea.vmem %s10, %s668
        %p670 = pneg %p308
        %p671 = pneg %p305
        %p672 = scmp.lt.s32.totalorder %s35, 1
        %s673 = scalar_select %p672, %s35, 1
        %s674 = scalar_lea.vmem %s11, %s673
        %p675 = pneg %p334
        %p676 = pneg %p331
        %p677 = scmp.lt.s32.totalorder %s35, 1
        %s678 = scalar_select %p677, %s35, 1
        %s679 = smul.addr %s678, 4
        %s680 = smul.addr %s679, 8
        %s681 = scalar_lea.vmem %s12, %s680
        %p682 = pneg %p360
        %p683 = pneg %p357
        %p684 = scmp.lt.s32.totalorder %s35, 1
        %s685 = scalar_select %p684, %s35, 1
        %s686 = scalar_lea.vmem %s13, %s685
        %p687 = pneg %p386
        %p688 = pneg %p383
        %p689 = scmp.lt.s32.totalorder %s35, 1
        %s690 = scalar_select %p689, %s35, 1
        %s691 = smul.addr %s690, 8
        %s692 = smul.addr %s691, 8
        %s693 = scalar_lea.vmem %s14, %s692
        %p694 = pneg %p412
        %p695 = pneg %p409
        %p696 = scmp.lt.s32.totalorder %s35, 1
        %s697 = scalar_select %p696, %s35, 1
        %s698 = scalar_lea.vmem %s15, %s697
        %p699 = pneg %p438
        %p700 = pneg %p435
        %p701 = pneg %p464
        %p702 = pneg %p461
        %s703 = smul.u32 2, %s34
        %p704 = scmp.lt.s32.totalorder %s35, 1
        %s705 = scalar_select %p704, %s35, 1
        %s706 = scalar_lea.vmem %s4, %s705
        %p707 = scmp.lt.s32.totalorder %s35, 1
        %s708 = scalar_select %p707, %s35, 1
        %s709 = scalar_lea.vmem %s5, %s708
        %p710 = scmp.lt.s32.totalorder %s35, 1
        %s711 = scalar_select %p710, %s35, 1
        %s712 = smul.addr %s711, 4
        %s713 = smul.addr %s712, 8
        %s714 = scalar_lea.vmem %s6, %s713
        %p715 = scmp.lt.s32.totalorder %s35, 1
        %s716 = scalar_select %p715, %s35, 1
        %s717 = scalar_lea.vmem %s7, %s716
        %p718 = scmp.lt.s32.totalorder %s35, 1
        %s719 = scalar_select %p718, %s35, 1
        %s720 = smul.addr %s719, 4
        %s721 = smul.addr %s720, 8
        %s722 = scalar_lea.vmem %s8, %s721
        %p723 = scmp.lt.s32.totalorder %s35, 1
        %s724 = scalar_select %p723, %s35, 1
        %s725 = scalar_lea.vmem %s9, %s724
        %p726 = scmp.lt.s32.totalorder %s35, 1
        %s727 = scalar_select %p726, %s35, 1
        %s728 = scalar_lea.vmem %s10, %s727
        %p729 = scmp.lt.s32.totalorder %s35, 1
        %s730 = scalar_select %p729, %s35, 1
        %s731 = scalar_lea.vmem %s11, %s730
        %p732 = scmp.lt.s32.totalorder %s35, 1
        %s733 = scalar_select %p732, %s35, 1
        %s734 = smul.addr %s733, 4
        %s735 = smul.addr %s734, 8
        %s736 = scalar_lea.vmem %s12, %s735
        %p737 = scmp.lt.s32.totalorder %s35, 1
        %s738 = scalar_select %p737, %s35, 1
        %s739 = scalar_lea.vmem %s13, %s738
        %p740 = scmp.lt.s32.totalorder %s35, 1
        %s741 = scalar_select %p740, %s35, 1
        %s742 = smul.addr %s741, 8
        %s743 = smul.addr %s742, 8
        %s744 = scalar_lea.vmem %s14, %s743
        %p745 = scmp.lt.s32.totalorder %s35, 1
        %s746 = scalar_select %p745, %s35, 1
        %s747 = scalar_lea.vmem %s15, %s746
        %s748 = smul.u32 2, %s34
        %p749 = scmp.eq.s32.totalorder %s35, 0
        // Predicated region
        $region97: #{tpu_custom_call.1} parent=83 // pred_check
          %p750 = pneg %p749
        $region98: #{tpu_custom_call.1} parent=83 // pred_check_branch
          %752 = sbr.rel (%p750) target = $region100
        $region99: #{tpu_custom_call.1} parent=83 // pred_region
          %v753 = vld [vmem:[#allocation2] sm:$0xff]
          %v754 = vld [vmem:[#allocation2 + $0x8] sm:$0xff]
          %v755 = vld [vmem:[#allocation5] sm:$0xff]
          %v756 = vld [vmem:[#allocation5 + $0x8] sm:$0xff]
          %v757 = vld [vmem:[#allocation7] sm:$0x1]
          %v759 = vlaneseq
          %v760 = vshrl.u32 %v759, 7
          %v761 = vsub.s32 0, %v760
          %v762 = vrot.slane %v757, %v761
          %vm764 = vcmask 130048
          %v766 = vsel %vm764, %v753, 0
          %v769 = vsel %vm764, %v754, 0
          %771 = vmatprep.subr.mxu0 0.0
          %772 = vmatpush1.msra.mxu0 %v755
          %773 = vmatprep.subr.mxu0 0.0
          %774 = vmatpush1.msra.mxu0 %v756
          %775 = vmatprep.subr.mxu0 0.0
          %776 = vmatpush1.msra.mxu0 0.0
          %777 = vmatprep.subr.mxu0 0.0
          %778 = vmatpush1.msra.mxu0 0.0
          %779 = vmatprep.subr.mxu0 0.0
          %780 = vmatpush1.msra.mxu0 0.0
          %781 = vmatprep.subr.mxu0 0.0
          %782 = vmatpush1.msra.mxu0 0.0
          %783 = vmatprep.subr.mxu0 0.0
          %784 = vmatpush1.msra.mxu0 0.0
          %785 = vmatprep.subr.mxu0 0.0
          %786 = vmatpush1.msra.mxu0 0.0
          %787 = vmatprep.subr.mxu0 0.0
          %788 = vmatpush1.msra.mxu0 0.0
          %789 = vmatprep.subr.mxu0 0.0
          %790 = vmatpush1.msra.mxu0 0.0
          %791 = vmatprep.subr.mxu0 0.0
          %792 = vmatpush1.msra.mxu0 0.0
          %793 = vmatprep.subr.mxu0 0.0
          %794 = vmatpush1.msra.mxu0 0.0
          %795 = vmatprep.subr.mxu0 0.0
          %796 = vmatpush1.msra.mxu0 0.0
          %797 = vmatprep.subr.mxu0 0.0
          %798 = vmatpush1.msra.mxu0 0.0
          %799 = vmatprep.subr.mxu0 0.0
          %800 = vmatpush1.msra.mxu0 0.0
          %801 = vmatprep.subr.mxu0 0.0
          %802 = vmatpush1.msra.mxu0 0.0
          %803 = vmatprep.subr.mxu0 0.0
          %804 = vmatpush1.msra.mxu0 0.0
          %805 = vmatprep.subr.mxu0 0.0
          %806 = vmatpush1.msra.mxu0 0.0
          %807 = vmatprep.subr.mxu0 0.0
          %808 = vmatpush1.msra.mxu0 0.0
          %809 = vmatprep.subr.mxu0 0.0
          %810 = vmatpush1.msra.mxu0 0.0
          %811 = vmatprep.subr.mxu0 0.0
          %812 = vmatpush1.msra.mxu0 0.0
          %813 = vmatprep.subr.mxu0 0.0
          %814 = vmatpush1.msra.mxu0 0.0
          %815 = vmatprep.subr.mxu0 0.0
          %816 = vmatpush1.msra.mxu0 0.0
          %817 = vmatprep.subr.mxu0 0.0
          %818 = vmatpush1.msra.mxu0 0.0
          %819 = vmatprep.subr.mxu0 0.0
          %820 = vmatpush1.msra.mxu0 0.0
          %821 = vmatprep.subr.mxu0 0.0
          %822 = vmatpush1.msra.mxu0 0.0
          %823 = vmatprep.subr.mxu0 0.0
          %824 = vmatpush1.msra.mxu0 0.0
          %825 = vmatprep.subr.mxu0 0.0
          %826 = vmatpush1.msra.mxu0 0.0
          %827 = vmatprep.subr.mxu0 0.0
          %828 = vmatpush1.msra.mxu0 0.0
          %829 = vmatprep.subr.mxu0 0.0
          %830 = vmatpush1.msra.mxu0 0.0
          %831 = vmatprep.subr.mxu0 0.0
          %832 = vmatpush1.msra.mxu0 0.0
          %833 = vmatprep.subr.mxu0 0.0
          %834 = vmatpush1.msra.mxu0 0.0
          %835 = vmatprep.mubr.f32.mxu0 0.0
          %836 = vmatmul.mubr.f32.gmra.mrb[0].mxu0 %v766
          %v837 = vpop.f32.mrb[0].mxu0
          %v838 = vadd.f32 %v762, %v837
          %v839 = vpop.f32.mrb[0].mxu0
          %840 = vmatprep.mubr.f32.mxu0 0.0
          %841 = vmatmul.mubr.f32.gmra.mrb[0].mxu0 %v769
          %v842 = vpop.f32.mrb[0].mxu0
          %v843 = vadd.f32 %v762, %v842
          %v844 = vpop.f32.mrb[0].mxu0
          %845 = vdwg.mxu0
          %v846 = vld [vmem:[%s3] sm:$0xff]
          %v847 = vadd.f32 %v838, %v846
          %v848 = vadd.f32 %v843, %v846
          %vm849 = vcmask 261120
          %850 = vst.msk [vmem:[#allocation8] sm:$0xff] %vm849, %v847
          %851 = vst.msk [vmem:[#allocation8 + $0x8] sm:$0xff] %vm849, %v848
        $region100: #{tpu_custom_call.1} parent=83 // pred_fallthru
          _
        %v852 = vld [vmem:[#allocation8] sm:$0xff]
        %v853 = vld [vmem:[#allocation8 + $0x8] sm:$0xff]
        %v854 = vld [vmem:[%s706] sm:$0x1]
        %v855 = vld [vmem:[%s709] sm:$0x1]
        %vm856 = vcmask 261120
        %v857 = vsel %vm856, %v852, 0.0
        %858 = vadd.xlane.f32.xlu0 %v857
        %v859 = vpop.xlane.xlu0 %858
        %v860 = vsel %vm856, %v853, 0.0
        %861 = vadd.xlane.f32.xlu0 %v860
        %v862 = vpop.xlane.xlu0 %861
        %v863 = vrcp.pop 32.0
        %v864 = vmul.f32 %v859, %v863
        %v865 = vmul.f32 %v862, %v863
        %v866 = vsub.f32 %v852, %v864
        %v867 = vsub.f32 %v853, %v865
        %v868 = vmul.f32 %v866, %v866
        %v869 = vmul.f32 %v867, %v867
        %v870 = vsel %vm856, %v868, 0.0
        %871 = vadd.xlane.f32.xlu0 %v870
        %v872 = vpop.xlane.xlu0 %871
        %v873 = vsel %vm856, %v869, 0.0
        %874 = vadd.xlane.f32.xlu0 %v873
        %v875 = vpop.xlane.xlu0 %874
        %v876 = vmul.f32 %v872, %v863
        %v877 = vmul.f32 %v875, %v863
        %v878 = vadd.f32 %v876, 1e-05
        %v879 = vadd.f32 %v877, 1e-05
        %v880 = vrsqrt.pop %v878
        %v881 = vrsqrt.pop %v879
        %v882 = vmul.f32 %v866, %v880
        %v883 = vmul.f32 %v867, %v881
        %v885 = vlaneseq
        %v886 = vshrl.u32 %v885, 7
        %v887 = vsub.s32 0, %v886
        %v888 = vrot.slane %v854, %v887
        %v890 = vmul.f32 %v882, %v888
        %v891 = vmul.f32 %v883, %v888
        %v893 = vlaneseq
        %v894 = vshrl.u32 %v893, 7
        %v895 = vsub.s32 0, %v894
        %v896 = vrot.slane %v855, %v895
        %v898 = vadd.f32 %v890, %v896
        %v899 = vadd.f32 %v891, %v896
        %v900 = vld [vmem:[%s714] sm:$0xff]
        %v901 = vld [vmem:[%s714 + $0x8] sm:$0xff]
        %v902 = vld [vmem:[%s714 + $0x10] sm:$0xff]
        %v903 = vld [vmem:[%s714 + $0x18] sm:$0xff]
        %v904 = vld [vmem:[%s717] sm:$0x1]
        %v906 = vlaneseq
        %v907 = vshrl.u32 %v906, 7
        %v908 = vsub.s32 0, %v907
        %v909 = vrot.slane %v904, %v908
        %v912 = vsel %vm856, %v898, 0
        %v915 = vsel %vm856, %v899, 0
        %917 = vmatprep.subr.mxu0 0.0
        %918 = vmatpush1.msra.mxu0 %v900
        %919 = vmatprep.subr.mxu0 0.0
        %920 = vmatpush1.msra.mxu0 %v901
        %921 = vmatprep.subr.mxu0 0.0
        %922 = vmatpush1.msra.mxu0 %v902
        %923 = vmatprep.subr.mxu0 0.0
        %924 = vmatpush1.msra.mxu0 %v903
        %925 = vmatprep.subr.mxu0 0.0
        %926 = vmatpush1.msra.mxu0 0.0
        %927 = vmatprep.subr.mxu0 0.0
        %928 = vmatpush1.msra.mxu0 0.0
        %929 = vmatprep.subr.mxu0 0.0
        %930 = vmatpush1.msra.mxu0 0.0
        %931 = vmatprep.subr.mxu0 0.0
        %932 = vmatpush1.msra.mxu0 0.0
        %933 = vmatprep.subr.mxu0 0.0
        %934 = vmatpush1.msra.mxu0 0.0
        %935 = vmatprep.subr.mxu0 0.0
        %936 = vmatpush1.msra.mxu0 0.0
        %937 = vmatprep.subr.mxu0 0.0
        %938 = vmatpush1.msra.mxu0 0.0
        %939 = vmatprep.subr.mxu0 0.0
        %940 = vmatpush1.msra.mxu0 0.0
        %941 = vmatprep.subr.mxu0 0.0
        %942 = vmatpush1.msra.mxu0 0.0
        %943 = vmatprep.subr.mxu0 0.0
        %944 = vmatpush1.msra.mxu0 0.0
        %945 = vmatprep.subr.mxu0 0.0
        %946 = vmatpush1.msra.mxu0 0.0
        %947 = vmatprep.subr.mxu0 0.0
        %948 = vmatpush1.msra.mxu0 0.0
        %949 = vmatprep.subr.mxu0 0.0
        %950 = vmatpush1.msra.mxu0 0.0
        %951 = vmatprep.subr.mxu0 0.0
        %952 = vmatpush1.msra.mxu0 0.0
        %953 = vmatprep.subr.mxu0 0.0
        %954 = vmatpush1.msra.mxu0 0.0
        %955 = vmatprep.subr.mxu0 0.0
        %956 = vmatpush1.msra.mxu0 0.0
        %957 = vmatprep.subr.mxu0 0.0
        %958 = vmatpush1.msra.mxu0 0.0
        %959 = vmatprep.subr.mxu0 0.0
        %960 = vmatpush1.msra.mxu0 0.0
        %961 = vmatprep.subr.mxu0 0.0
        %962 = vmatpush1.msra.mxu0 0.0
        %963 = vmatprep.subr.mxu0 0.0
        %964 = vmatpush1.msra.mxu0 0.0
        %965 = vmatprep.subr.mxu0 0.0
        %966 = vmatpush1.msra.mxu0 0.0
        %967 = vmatprep.subr.mxu0 0.0
        %968 = vmatpush1.msra.mxu0 0.0
        %969 = vmatprep.subr.mxu0 0.0
        %970 = vmatpush1.msra.mxu0 0.0
        %971 = vmatprep.subr.mxu0 0.0
        %972 = vmatpush1.msra.mxu0 0.0
        %973 = vmatprep.subr.mxu0 0.0
        %974 = vmatpush1.msra.mxu0 0.0
        %975 = vmatprep.subr.mxu0 0.0
        %976 = vmatpush1.msra.mxu0 0.0
        %977 = vmatprep.subr.mxu0 0.0
        %978 = vmatpush1.msra.mxu0 0.0
        %979 = vmatprep.subr.mxu0 0.0
        %980 = vmatpush1.msra.mxu0 0.0
        %981 = vmatprep.mubr.f32.mxu0 0.0
        %982 = vmatmul.mubr.f32.gmra.mrb[0].mxu0 %v912
        %v983 = vpop.f32.mrb[0].mxu0
        %v984 = vadd.f32 %v909, %v983
        %v985 = vpop.f32.mrb[0].mxu0
        %986 = vmatprep.mubr.f32.mxu0 0.0
        %987 = vmatmul.mubr.f32.gmra.mrb[0].mxu0 %v915
        %v988 = vpop.f32.mrb[0].mxu0
        %v989 = vadd.f32 %v909, %v988
        %v990 = vpop.f32.mrb[0].mxu0
        %991 = vdwg.mxu0
        %v992 = vld [vmem:[%s722] sm:$0xff]
        %v993 = vld [vmem:[%s722 + $0x8] sm:$0xff]
        %v994 = vld [vmem:[%s722 + $0x10] sm:$0xff]
        %v995 = vld [vmem:[%s722 + $0x18] sm:$0xff]
        %997 = vrot.lane.b32.xlu0 %v984, 96
        %v998 = vpop.permute.xlu0 %997
        %vm999 = vcmask 64512
        %v1000 = vsel %vm999, %v984, 0
        %v1002 = vsel %vm999, %v998, 0
        %1004 = vmatprep.subr.mxu0 0.0
        %1005 = vmatpush1.xpose.msra.mxu0 %v1002
        %1006 = vmatprep.subr.mxu0 0.0
        %1007 = vmatpush1.xpose.msra.mxu0 0.0
        %1008 = vmatprep.subr.mxu0 0.0
        %1009 = vmatpush1.xpose.msra.mxu0 0.0
        %1010 = vmatprep.subr.mxu0 0.0
        %1011 = vmatpush1.xpose.msra.mxu0 0.0
        %1012 = vmatprep.subr.mxu0 0.0
        %1013 = vmatpush1.xpose.msra.mxu0 0.0
        %1014 = vmatprep.subr.mxu0 0.0
        %1015 = vmatpush1.xpose.msra.mxu0 0.0
        %1016 = vmatprep.subr.mxu0 0.0
        %1017 = vmatpush1.xpose.msra.mxu0 0.0
        %1018 = vmatprep.subr.mxu0 0.0
        %1019 = vmatpush1.xpose.msra.mxu0 0.0
        %1020 = vmatprep.subr.mxu0 0.0
        %1021 = vmatpush1.xpose.msra.mxu0 0.0
        %1022 = vmatprep.subr.mxu0 0.0
        %1023 = vmatpush1.xpose.msra.mxu0 0.0
        %1024 = vmatprep.subr.mxu0 0.0
        %1025 = vmatpush1.xpose.msra.mxu0 0.0
        %1026 = vmatprep.subr.mxu0 0.0
        %1027 = vmatpush1.xpose.msra.mxu0 0.0
        %1028 = vmatprep.subr.mxu0 0.0
        %1029 = vmatpush1.xpose.msra.mxu0 0.0
        %1030 = vmatprep.subr.mxu0 0.0
        %1031 = vmatpush1.xpose.msra.mxu0 0.0
        %1032 = vmatprep.subr.mxu0 0.0
        %1033 = vmatpush1.xpose.msra.mxu0 0.0
        %1034 = vmatprep.subr.mxu0 0.0
        %1035 = vmatpush1.xpose.msra.mxu0 0.0
        %1036 = vmatprep.subr.mxu0 0.0
        %1037 = vmatpush1.xpose.msra.mxu0 0.0
        %1038 = vmatprep.subr.mxu0 0.0
        %1039 = vmatpush1.xpose.msra.mxu0 0.0
        %1040 = vmatprep.subr.mxu0 0.0
        %1041 = vmatpush1.xpose.msra.mxu0 0.0
        %1042 = vmatprep.subr.mxu0 0.0
        %1043 = vmatpush1.xpose.msra.mxu0 0.0
        %1044 = vmatprep.subr.mxu0 0.0
        %1045 = vmatpush1.xpose.msra.mxu0 0.0
        %1046 = vmatprep.subr.mxu0 0.0
        %1047 = vmatpush1.xpose.msra.mxu0 0.0
        %1048 = vmatprep.subr.mxu0 0.0
        %1049 = vmatpush1.xpose.msra.mxu0 0.0
        %1050 = vmatprep.subr.mxu0 0.0
        %1051 = vmatpush1.xpose.msra.mxu0 0.0
        %1052 = vmatprep.subr.mxu0 0.0
        %1053 = vmatpush1.xpose.msra.mxu0 0.0
        %1054 = vmatprep.subr.mxu0 0.0
        %1055 = vmatpush1.xpose.msra.mxu0 0.0
        %1056 = vmatprep.subr.mxu0 0.0
        %1057 = vmatpush1.xpose.msra.mxu0 0.0
        %1058 = vmatprep.subr.mxu0 0.0
        %1059 = vmatpush1.xpose.msra.mxu0 0.0
        %1060 = vmatprep.subr.mxu0 0.0
        %1061 = vmatpush1.xpose.msra.mxu0 0.0
        %1062 = vmatprep.subr.mxu0 0.0
        %1063 = vmatpush1.xpose.msra.mxu0 0.0
        %1064 = vmatprep.subr.mxu0 0.0
        %1065 = vmatpush1.xpose.msra.mxu0 0.0
        %1066 = vmatprep.subr.mxu0 0.0
        %1067 = vmatpush1.xpose.msra.mxu0 0.0
        %1068 = vmatprep.mubr.f32.mxu0 0.0
        %1069 = vmatmul.mubr.f32.gmra.mrb[0].mxu0 %v1000
        %v1070 = vpop.f32.mrb[0].mxu0
        %v1071 = vadd.f32 0.0, %v1070
        %v1072 = vpop.f32.mrb[0].mxu0
        %1073 = vdwg.mxu0
        %1075 = vrot.lane.b32.xlu0 %v989, 96
        %v1076 = vpop.permute.xlu0 %1075
        %v1077 = vsel %vm999, %v989, 0
        %v1079 = vsel %vm999, %v1076, 0
        %1081 = vmatprep.subr.mxu0 0.0
        %1082 = vmatpush1.xpose.msra.mxu0 %v1079
        %1083 = vmatprep.subr.mxu0 0.0
        %1084 = vmatpush1.xpose.msra.mxu0 0.0
        %1085 = vmatprep.subr.mxu0 0.0
        %1086 = vmatpush1.xpose.msra.mxu0 0.0
        %1087 = vmatprep.subr.mxu0 0.0
        %1088 = vmatpush1.xpose.msra.mxu0 0.0
        %1089 = vmatprep.subr.mxu0 0.0
        %1090 = vmatpush1.xpose.msra.mxu0 0.0
        %1091 = vmatprep.subr.mxu0 0.0
        %1092 = vmatpush1.xpose.msra.mxu0 0.0
        %1093 = vmatprep.subr.mxu0 0.0
        %1094 = vmatpush1.xpose.msra.mxu0 0.0
        %1095 = vmatprep.subr.mxu0 0.0
        %1096 = vmatpush1.xpose.msra.mxu0 0.0
        %1097 = vmatprep.subr.mxu0 0.0
        %1098 = vmatpush1.xpose.msra.mxu0 0.0
        %1099 = vmatprep.subr.mxu0 0.0
        %1100 = vmatpush1.xpose.msra.mxu0 0.0
        %1101 = vmatprep.subr.mxu0 0.0
        %1102 = vmatpush1.xpose.msra.mxu0 0.0
        %1103 = vmatprep.subr.mxu0 0.0
        %1104 = vmatpush1.xpose.msra.mxu0 0.0
        %1105 = vmatprep.subr.mxu0 0.0
        %1106 = vmatpush1.xpose.msra.mxu0 0.0
        %1107 = vmatprep.subr.mxu0 0.0
        %1108 = vmatpush1.xpose.msra.mxu0 0.0
        %1109 = vmatprep.subr.mxu0 0.0
        %1110 = vmatpush1.xpose.msra.mxu0 0.0
        %1111 = vmatprep.subr.mxu0 0.0
        %1112 = vmatpush1.xpose.msra.mxu0 0.0
        %1113 = vmatprep.subr.mxu0 0.0
        %1114 = vmatpush1.xpose.msra.mxu0 0.0
        %1115 = vmatprep.subr.mxu0 0.0
        %1116 = vmatpush1.xpose.msra.mxu0 0.0
        %1117 = vmatprep.subr.mxu0 0.0
        %1118 = vmatpush1.xpose.msra.mxu0 0.0
        %1119 = vmatprep.subr.mxu0 0.0
        %1120 = vmatpush1.xpose.msra.mxu0 0.0
        %1121 = vmatprep.subr.mxu0 0.0
        %1122 = vmatpush1.xpose.msra.mxu0 0.0
        %1123 = vmatprep.subr.mxu0 0.0
        %1124 = vmatpush1.xpose.msra.mxu0 0.0
        %1125 = vmatprep.subr.mxu0 0.0
        %1126 = vmatpush1.xpose.msra.mxu0 0.0
        %1127 = vmatprep.subr.mxu0 0.0
        %1128 = vmatpush1.xpose.msra.mxu0 0.0
        %1129 = vmatprep.subr.mxu0 0.0
        %1130 = vmatpush1.xpose.msra.mxu0 0.0
        %1131 = vmatprep.subr.mxu0 0.0
        %1132 = vmatpush1.xpose.msra.mxu0 0.0
        %1133 = vmatprep.subr.mxu0 0.0
        %1134 = vmatpush1.xpose.msra.mxu0 0.0
        %1135 = vmatprep.subr.mxu0 0.0
        %1136 = vmatpush1.xpose.msra.mxu0 0.0
        %1137 = vmatprep.subr.mxu0 0.0
        %1138 = vmatpush1.xpose.msra.mxu0 0.0
        %1139 = vmatprep.subr.mxu0 0.0
        %1140 = vmatpush1.xpose.msra.mxu0 0.0
        %1141 = vmatprep.subr.mxu0 0.0
        %1142 = vmatpush1.xpose.msra.mxu0 0.0
        %1143 = vmatprep.subr.mxu0 0.0
        %1144 = vmatpush1.xpose.msra.mxu0 0.0
        %1145 = vmatprep.mubr.f32.mxu0 0.0
        %1146 = vmatmul.mubr.f32.gmra.mrb[0].mxu0 %v1077
        %v1147 = vpop.f32.mrb[0].mxu0
        %v1148 = vadd.f32 0.0, %v1147
        %v1149 = vpop.f32.mrb[0].mxu0
        %1150 = vdwg.mxu0
        %v1151 = vmul.f32 %v1071, 0.35355338
        %v1152 = vmul.f32 %v1148, 0.35355338
        %v1153 = vsel %vm999, %v1151, -inf
        %1154 = vmax.xlane.f32.xlu0 %v1153
        %v1155 = vpop.xlane.xlu0 %1154
        %v1156 = vsel %vm999, %v1152, -inf
        %1157 = vmax.xlane.f32.xlu0 %v1156
        %v1158 = vpop.xlane.xlu0 %1157
        %v1159 = vsub.f32 %v1151, %v1155
        %v1160 = vsub.f32 %v1152, %v1158
        %v1161 = vmul.f32 %v1159, 1.442695
        %v1162 = vpow.pop %v1161
        %v1163 = vmul.f32 %v1160, 1.442695
        %v1164 = vpow.pop %v1163
        %v1165 = vsel %vm999, %v1162, 0.0
        %1166 = vadd.xlane.f32.xlu0 %v1165
        %v1167 = vpop.xlane.xlu0 %1166
        %v1168 = vsel %vm999, %v1164, 0.0
        %1169 = vadd.xlane.f32.xlu0 %v1168
        %v1170 = vpop.xlane.xlu0 %1169
        %v1171 = vrcp.pop %v1167
        %v1172 = vrcp.pop %v1170
        %v1173 = vmul.f32 %v1162, %v1171
        %v1174 = vmul.f32 %v1164, %v1172
        %1175 = vrot.lane.b32.xlu0 %v984, 64
        %v1176 = vpop.permute.xlu0 %1175
        %v1179 = vsel %vm999, %v1173, 0
        %1181 = vmatprep.subr.mxu0 0.0
        %1182 = vmatpush1.msra.mxu0 %v1176
        %1183 = vmatprep.subr.mxu0 0.0
        %1184 = vmatpush1.msra.mxu0 0.0
        %1185 = vmatprep.subr.mxu0 0.0
        %1186 = vmatpush1.msra.mxu0 0.0
        %1187 = vmatprep.subr.mxu0 0.0
        %1188 = vmatpush1.msra.mxu0 0.0
        %1189 = vmatprep.subr.mxu0 0.0
        %1190 = vmatpush1.msra.mxu0 0.0
        %1191 = vmatprep.subr.mxu0 0.0
        %1192 = vmatpush1.msra.mxu0 0.0
        %1193 = vmatprep.subr.mxu0 0.0
        %1194 = vmatpush1.msra.mxu0 0.0
        %1195 = vmatprep.subr.mxu0 0.0
        %1196 = vmatpush1.msra.mxu0 0.0
        %1197 = vmatprep.subr.mxu0 0.0
        %1198 = vmatpush1.msra.mxu0 0.0
        %1199 = vmatprep.subr.mxu0 0.0
        %1200 = vmatpush1.msra.mxu0 0.0
        %1201 = vmatprep.subr.mxu0 0.0
        %1202 = vmatpush1.msra.mxu0 0.0
        %1203 = vmatprep.subr.mxu0 0.0
        %1204 = vmatpush1.msra.mxu0 0.0
        %1205 = vmatprep.subr.mxu0 0.0
        %1206 = vmatpush1.msra.mxu0 0.0
        %1207 = vmatprep.subr.mxu0 0.0
        %1208 = vmatpush1.msra.mxu0 0.0
        %1209 = vmatprep.subr.mxu0 0.0
        %1210 = vmatpush1.msra.mxu0 0.0
        %1211 = vmatprep.subr.mxu0 0.0
        %1212 = vmatpush1.msra.mxu0 0.0
        %1213 = vmatprep.subr.mxu0 0.0
        %1214 = vmatpush1.msra.mxu0 0.0
        %1215 = vmatprep.subr.mxu0 0.0
        %1216 = vmatpush1.msra.mxu0 0.0
        %1217 = vmatprep.subr.mxu0 0.0
        %1218 = vmatpush1.msra.mxu0 0.0
        %1219 = vmatprep.subr.mxu0 0.0
        %1220 = vmatpush1.msra.mxu0 0.0
        %1221 = vmatprep.subr.mxu0 0.0
        %1222 = vmatpush1.msra.mxu0 0.0
        %1223 = vmatprep.subr.mxu0 0.0
        %1224 = vmatpush1.msra.mxu0 0.0
        %1225 = vmatprep.subr.mxu0 0.0
        %1226 = vmatpush1.msra.mxu0 0.0
        %1227 = vmatprep.subr.mxu0 0.0
        %1228 = vmatpush1.msra.mxu0 0.0
        %1229 = vmatprep.subr.mxu0 0.0
        %1230 = vmatpush1.msra.mxu0 0.0
        %1231 = vmatprep.subr.mxu0 0.0
        %1232 = vmatpush1.msra.mxu0 0.0
        %1233 = vmatprep.subr.mxu0 0.0
        %1234 = vmatpush1.msra.mxu0 0.0
        %1235 = vmatprep.subr.mxu0 0.0
        %1236 = vmatpush1.msra.mxu0 0.0
        %1237 = vmatprep.subr.mxu0 0.0
        %1238 = vmatpush1.msra.mxu0 0.0
        %1239 = vmatprep.subr.mxu0 0.0
        %1240 = vmatpush1.msra.mxu0 0.0
        %1241 = vmatprep.subr.mxu0 0.0
        %1242 = vmatpush1.msra.mxu0 0.0
        %1243 = vmatprep.subr.mxu0 0.0
        %1244 = vmatpush1.msra.mxu0 0.0
        %1245 = vmatprep.mubr.f32.mxu0 0.0
        %1246 = vmatmul.mubr.f32.gmra.mrb[0].mxu0 %v1179
        %v1247 = vpop.f32.mrb[0].mxu0
        %v1248 = vadd.f32 0.0, %v1247
        %v1249 = vpop.f32.mrb[0].mxu0
        %1250 = vdwg.mxu0
        %1251 = vrot.lane.b32.xlu0 %v989, 64
        %v1252 = vpop.permute.xlu0 %1251
        %v1255 = vsel %vm999, %v1174, 0
        %1257 = vmatprep.subr.mxu0 0.0
        %1258 = vmatpush1.msra.mxu0 %v1252
        %1259 = vmatprep.subr.mxu0 0.0
        %1260 = vmatpush1.msra.mxu0 0.0
        %1261 = vmatprep.subr.mxu0 0.0
        %1262 = vmatpush1.msra.mxu0 0.0
        %1263 = vmatprep.subr.mxu0 0.0
        %1264 = vmatpush1.msra.mxu0 0.0
        %1265 = vmatprep.subr.mxu0 0.0
        %1266 = vmatpush1.msra.mxu0 0.0
        %1267 = vmatprep.subr.mxu0 0.0
        %1268 = vmatpush1.msra.mxu0 0.0
        %1269 = vmatprep.subr.mxu0 0.0
        %1270 = vmatpush1.msra.mxu0 0.0
        %1271 = vmatprep.subr.mxu0 0.0
        %1272 = vmatpush1.msra.mxu0 0.0
        %1273 = vmatprep.subr.mxu0 0.0
        %1274 = vmatpush1.msra.mxu0 0.0
        %1275 = vmatprep.subr.mxu0 0.0
        %1276 = vmatpush1.msra.mxu0 0.0
        %1277 = vmatprep.subr.mxu0 0.0
        %1278 = vmatpush1.msra.mxu0 0.0
        %1279 = vmatprep.subr.mxu0 0.0
        %1280 = vmatpush1.msra.mxu0 0.0
        %1281 = vmatprep.subr.mxu0 0.0
        %1282 = vmatpush1.msra.mxu0 0.0
        %1283 = vmatprep.subr.mxu0 0.0
        %1284 = vmatpush1.msra.mxu0 0.0
        %1285 = vmatprep.subr.mxu0 0.0
        %1286 = vmatpush1.msra.mxu0 0.0
        %1287 = vmatprep.subr.mxu0 0.0
        %1288 = vmatpush1.msra.mxu0 0.0
        %1289 = vmatprep.subr.mxu0 0.0
        %1290 = vmatpush1.msra.mxu0 0.0
        %1291 = vmatprep.subr.mxu0 0.0
        %1292 = vmatpush1.msra.mxu0 0.0
        %1293 = vmatprep.subr.mxu0 0.0
        %1294 = vmatpush1.msra.mxu0 0.0
        %1295 = vmatprep.subr.mxu0 0.0
        %1296 = vmatpush1.msra.mxu0 0.0
        %1297 = vmatprep.subr.mxu0 0.0
        %1298 = vmatpush1.msra.mxu0 0.0
        %1299 = vmatprep.subr.mxu0 0.0
        %1300 = vmatpush1.msra.mxu0 0.0
        %1301 = vmatprep.subr.mxu0 0.0
        %1302 = vmatpush1.msra.mxu0 0.0
        %1303 = vmatprep.subr.mxu0 0.0
        %1304 = vmatpush1.msra.mxu0 0.0
        %1305 = vmatprep.subr.mxu0 0.0
        %1306 = vmatpush1.msra.mxu0 0.0
        %1307 = vmatprep.subr.mxu0 0.0
        %1308 = vmatpush1.msra.mxu0 0.0
        %1309 = vmatprep.subr.mxu0 0.0
        %1310 = vmatpush1.msra.mxu0 0.0
        %1311 = vmatprep.subr.mxu0 0.0
        %1312 = vmatpush1.msra.mxu0 0.0
        %1313 = vmatprep.subr.mxu0 0.0
        %1314 = vmatpush1.msra.mxu0 0.0
        %1315 = vmatprep.subr.mxu0 0.0
        %1316 = vmatpush1.msra.mxu0 0.0
        %1317 = vmatprep.subr.mxu0 0.0
        %1318 = vmatpush1.msra.mxu0 0.0
        %1319 = vmatprep.subr.mxu0 0.0
        %1320 = vmatpush1.msra.mxu0 0.0
        %1321 = vmatprep.mubr.f32.mxu0 0.0
        %1322 = vmatmul.mubr.f32.gmra.mrb[0].mxu0 %v1255
        %v1323 = vpop.f32.mrb[0].mxu0
        %v1324 = vadd.f32 0.0, %v1323
        %v1325 = vpop.f32.mrb[0].mxu0
        %1326 = vdwg.mxu0
        %1327 = vrot.lane.b32.xlu0 %v984, 120
        %v1328 = vpop.permute.xlu0 %1327
        %1329 = vrot.lane.b32.xlu0 %v984, 88
        %v1330 = vpop.permute.xlu0 %1329
        %v1331 = vsel %vm999, %v1328, 0
        %v1333 = vsel %vm999, %v1330, 0
        %1335 = vmatprep.subr.mxu0 0.0
        %1336 = vmatpush1.xpose.msra.mxu0 %v1333
        %1337 = vmatprep.subr.mxu0 0.0
        %1338 = vmatpush1.xpose.msra.mxu0 0.0
        %1339 = vmatprep.subr.mxu0 0.0
        %1340 = vmatpush1.xpose.msra.mxu0 0.0
        %1341 = vmatprep.subr.mxu0 0.0
        %1342 = vmatpush1.xpose.msra.mxu0 0.0
        %1343 = vmatprep.subr.mxu0 0.0
        %1344 = vmatpush1.xpose.msra.mxu0 0.0
        %1345 = vmatprep.subr.mxu0 0.0
        %1346 = vmatpush1.xpose.msra.mxu0 0.0
        %1347 = vmatprep.subr.mxu0 0.0
        %1348 = vmatpush1.xpose.msra.mxu0 0.0
        %1349 = vmatprep.subr.mxu0 0.0
        %1350 = vmatpush1.xpose.msra.mxu0 0.0
        %1351 = vmatprep.subr.mxu0 0.0
        %1352 = vmatpush1.xpose.msra.mxu0 0.0
        %1353 = vmatprep.subr.mxu0 0.0
        %1354 = vmatpush1.xpose.msra.mxu0 0.0
        %1355 = vmatprep.subr.mxu0 0.0
        %1356 = vmatpush1.xpose.msra.mxu0 0.0
        %1357 = vmatprep.subr.mxu0 0.0
        %1358 = vmatpush1.xpose.msra.mxu0 0.0
        %1359 = vmatprep.subr.mxu0 0.0
        %1360 = vmatpush1.xpose.msra.mxu0 0.0
        %1361 = vmatprep.subr.mxu0 0.0
        %1362 = vmatpush1.xpose.msra.mxu0 0.0
        %1363 = vmatprep.subr.mxu0 0.0
        %1364 = vmatpush1.xpose.msra.mxu0 0.0
        %1365 = vmatprep.subr.mxu0 0.0
        %1366 = vmatpush1.xpose.msra.mxu0 0.0
        %1367 = vmatprep.subr.mxu0 0.0
        %1368 = vmatpush1.xpose.msra.mxu0 0.0
        %1369 = vmatprep.subr.mxu0 0.0
        %1370 = vmatpush1.xpose.msra.mxu0 0.0
        %1371 = vmatprep.subr.mxu0 0.0
        %1372 = vmatpush1.xpose.msra.mxu0 0.0
        %1373 = vmatprep.subr.mxu0 0.0
        %1374 = vmatpush1.xpose.msra.mxu0 0.0
        %1375 = vmatprep.subr.mxu0 0.0
        %1376 = vmatpush1.xpose.msra.mxu0 0.0
        %1377 = vmatprep.subr.mxu0 0.0
        %1378 = vmatpush1.xpose.msra.mxu0 0.0
        %1379 = vmatprep.subr.mxu0 0.0
        %1380 = vmatpush1.xpose.msra.mxu0 0.0
        %1381 = vmatprep.subr.mxu0 0.0
        %1382 = vmatpush1.xpose.msra.mxu0 0.0
        %1383 = vmatprep.subr.mxu0 0.0
        %1384 = vmatpush1.xpose.msra.mxu0 0.0
        %1385 = vmatprep.subr.mxu0 0.0
        %1386 = vmatpush1.xpose.msra.mxu0 0.0
        %1387 = vmatprep.subr.mxu0 0.0
        %1388 = vmatpush1.xpose.msra.mxu0 0.0
        %1389 = vmatprep.subr.mxu0 0.0
        %1390 = vmatpush1.xpose.msra.mxu0 0.0
        %1391 = vmatprep.subr.mxu0 0.0
        %1392 = vmatpush1.xpose.msra.mxu0 0.0
        %1393 = vmatprep.subr.mxu0 0.0
        %1394 = vmatpush1.xpose.msra.mxu0 0.0
        %1395 = vmatprep.subr.mxu0 0.0
        %1396 = vmatpush1.xpose.msra.mxu0 0.0
        %1397 = vmatprep.subr.mxu0 0.0
        %1398 = vmatpush1.xpose.msra.mxu0 0.0
        %1399 = vmatprep.mubr.f32.mxu0 0.0
        %1400 = vmatmul.mubr.f32.gmra.mrb[0].mxu0 %v1331
        %v1401 = vpop.f32.mrb[0].mxu0
        %v1402 = vadd.f32 0.0, %v1401
        %v1403 = vpop.f32.mrb[0].mxu0
        %1404 = vdwg.mxu0
        %1405 = vrot.lane.b32.xlu0 %v989, 120
        %v1406 = vpop.permute.xlu0 %1405
        %1407 = vrot.lane.b32.xlu0 %v989, 88
        %v1408 = vpop.permute.xlu0 %1407
        %v1409 = vsel %vm999, %v1406, 0
        %v1411 = vsel %vm999, %v1408, 0
        %1413 = vmatprep.subr.mxu0 0.0
        %1414 = vmatpush1.xpose.msra.mxu0 %v1411
        %1415 = vmatprep.subr.mxu0 0.0
        %1416 = vmatpush1.xpose.msra.mxu0 0.0
        %1417 = vmatprep.subr.mxu0 0.0
        %1418 = vmatpush1.xpose.msra.mxu0 0.0
        %1419 = vmatprep.subr.mxu0 0.0
        %1420 = vmatpush1.xpose.msra.mxu0 0.0
        %1421 = vmatprep.subr.mxu0 0.0
        %1422 = vmatpush1.xpose.msra.mxu0 0.0
        %1423 = vmatprep.subr.mxu0 0.0
        %1424 = vmatpush1.xpose.msra.mxu0 0.0
        %1425 = vmatprep.subr.mxu0 0.0
        %1426 = vmatpush1.xpose.msra.mxu0 0.0
        %1427 = vmatprep.subr.mxu0 0.0
        %1428 = vmatpush1.xpose.msra.mxu0 0.0
        %1429 = vmatprep.subr.mxu0 0.0
        %1430 = vmatpush1.xpose.msra.mxu0 0.0
        %1431 = vmatprep.subr.mxu0 0.0
        %1432 = vmatpush1.xpose.msra.mxu0 0.0
        %1433 = vmatprep.subr.mxu0 0.0
        %1434 = vmatpush1.xpose.msra.mxu0 0.0
        %1435 = vmatprep.subr.mxu0 0.0
        %1436 = vmatpush1.xpose.msra.mxu0 0.0
        %1437 = vmatprep.subr.mxu0 0.0
        %1438 = vmatpush1.xpose.msra.mxu0 0.0
        %1439 = vmatprep.subr.mxu0 0.0
        %1440 = vmatpush1.xpose.msra.mxu0 0.0
        %1441 = vmatprep.subr.mxu0 0.0
        %1442 = vmatpush1.xpose.msra.mxu0 0.0
        %1443 = vmatprep.subr.mxu0 0.0
        %1444 = vmatpush1.xpose.msra.mxu0 0.0
        %1445 = vmatprep.subr.mxu0 0.0
        %1446 = vmatpush1.xpose.msra.mxu0 0.0
        %1447 = vmatprep.subr.mxu0 0.0
        %1448 = vmatpush1.xpose.msra.mxu0 0.0
        %1449 = vmatprep.subr.mxu0 0.0
        %1450 = vmatpush1.xpose.msra.mxu0 0.0
        %1451 = vmatprep.subr.mxu0 0.0
        %1452 = vmatpush1.xpose.msra.mxu0 0.0
        %1453 = vmatprep.subr.mxu0 0.0
        %1454 = vmatpush1.xpose.msra.mxu0 0.0
        %1455 = vmatprep.subr.mxu0 0.0
        %1456 = vmatpush1.xpose.msra.mxu0 0.0
        %1457 = vmatprep.subr.mxu0 0.0
        %1458 = vmatpush1.xpose.msra.mxu0 0.0
        %1459 = vmatprep.subr.mxu0 0.0
        %1460 = vmatpush1.xpose.msra.mxu0 0.0
        %1461 = vmatprep.subr.mxu0 0.0
        %1462 = vmatpush1.xpose.msra.mxu0 0.0
        %1463 = vmatprep.subr.mxu0 0.0
        %1464 = vmatpush1.xpose.msra.mxu0 0.0
        %1465 = vmatprep.subr.mxu0 0.0
        %1466 = vmatpush1.xpose.msra.mxu0 0.0
        %1467 = vmatprep.subr.mxu0 0.0
        %1468 = vmatpush1.xpose.msra.mxu0 0.0
        %1469 = vmatprep.subr.mxu0 0.0
        %1470 = vmatpush1.xpose.msra.mxu0 0.0
        %1471 = vmatprep.subr.mxu0 0.0
        %1472 = vmatpush1.xpose.msra.mxu0 0.0
        %1473 = vmatprep.subr.mxu0 0.0
        %1474 = vmatpush1.xpose.msra.mxu0 0.0
        %1475 = vmatprep.subr.mxu0 0.0
        %1476 = vmatpush1.xpose.msra.mxu0 0.0
        %1477 = vmatprep.mubr.f32.mxu0 0.0
        %1478 = vmatmul.mubr.f32.gmra.mrb[0].mxu0 %v1409
        %v1479 = vpop.f32.mrb[0].mxu0
        %v1480 = vadd.f32 0.0, %v1479
        %v1481 = vpop.f32.mrb[0].mxu0
        %1482 = vdwg.mxu0
        %v1483 = vmul.f32 %v1402, 0.35355338
        %v1484 = vmul.f32 %v1480, 0.35355338
        %v1485 = vsel %vm999, %v1483, -inf
        %1486 = vmax.xlane.f32.xlu0 %v1485
        %v1487 = vpop.xlane.xlu0 %1486
        %v1488 = vsel %vm999, %v1484, -inf
        %1489 = vmax.xlane.f32.xlu0 %v1488
        %v1490 = vpop.xlane.xlu0 %1489
        %v1491 = vsub.f32 %v1483, %v1487
        %v1492 = vsub.f32 %v1484, %v1490
        %v1493 = vmul.f32 %v1491, 1.442695
        %v1494 = vpow.pop %v1493
        %v1495 = vmul.f32 %v1492, 1.442695
        %v1496 = vpow.pop %v1495
        %v1497 = vsel %vm999, %v1494, 0.0
        %1498 = vadd.xlane.f32.xlu0 %v1497
        %v1499 = vpop.xlane.xlu0 %1498
        %v1500 = vsel %vm999, %v1496, 0.0
        %1501 = vadd.xlane.f32.xlu0 %v1500
        %v1502 = vpop.xlane.xlu0 %1501
        %v1503 = vrcp.pop %v1499
        %v1504 = vrcp.pop %v1502
        %v1505 = vmul.f32 %v1494, %v1503
        %v1506 = vmul.f32 %v1496, %v1504
        %1507 = vrot.lane.b32.xlu0 %v984, 56
        %v1508 = vpop.permute.xlu0 %1507
        %v1511 = vsel %vm999, %v1505, 0
        %1513 = vmatprep.subr.mxu0 0.0
        %1514 = vmatpush1.msra.mxu0 %v1508
        %1515 = vmatprep.subr.mxu0 0.0
        %1516 = vmatpush1.msra.mxu0 0.0
        %1517 = vmatprep.subr.mxu0 0.0
        %1518 = vmatpush1.msra.mxu0 0.0
        %1519 = vmatprep.subr.mxu0 0.0
        %1520 = vmatpush1.msra.mxu0 0.0
        %1521 = vmatprep.subr.mxu0 0.0
        %1522 = vmatpush1.msra.mxu0 0.0
        %1523 = vmatprep.subr.mxu0 0.0
        %1524 = vmatpush1.msra.mxu0 0.0
        %1525 = vmatprep.subr.mxu0 0.0
        %1526 = vmatpush1.msra.mxu0 0.0
        %1527 = vmatprep.subr.mxu0 0.0
        %1528 = vmatpush1.msra.mxu0 0.0
        %1529 = vmatprep.subr.mxu0 0.0
        %1530 = vmatpush1.msra.mxu0 0.0
        %1531 = vmatprep.subr.mxu0 0.0
        %1532 = vmatpush1.msra.mxu0 0.0
        %1533 = vmatprep.subr.mxu0 0.0
        %1534 = vmatpush1.msra.mxu0 0.0
        %1535 = vmatprep.subr.mxu0 0.0
        %1536 = vmatpush1.msra.mxu0 0.0
        %1537 = vmatprep.subr.mxu0 0.0
        %1538 = vmatpush1.msra.mxu0 0.0
        %1539 = vmatprep.subr.mxu0 0.0
        %1540 = vmatpush1.msra.mxu0 0.0
        %1541 = vmatprep.subr.mxu0 0.0
        %1542 = vmatpush1.msra.mxu0 0.0
        %1543 = vmatprep.subr.mxu0 0.0
        %1544 = vmatpush1.msra.mxu0 0.0
        %1545 = vmatprep.subr.mxu0 0.0
        %1546 = vmatpush1.msra.mxu0 0.0
        %1547 = vmatprep.subr.mxu0 0.0
        %1548 = vmatpush1.msra.mxu0 0.0
        %1549 = vmatprep.subr.mxu0 0.0
        %1550 = vmatpush1.msra.mxu0 0.0
        %1551 = vmatprep.subr.mxu0 0.0
        %1552 = vmatpush1.msra.mxu0 0.0
        %1553 = vmatprep.subr.mxu0 0.0
        %1554 = vmatpush1.msra.mxu0 0.0
        %1555 = vmatprep.subr.mxu0 0.0
        %1556 = vmatpush1.msra.mxu0 0.0
        %1557 = vmatprep.subr.mxu0 0.0
        %1558 = vmatpush1.msra.mxu0 0.0
        %1559 = vmatprep.subr.mxu0 0.0
        %1560 = vmatpush1.msra.mxu0 0.0
        %1561 = vmatprep.subr.mxu0 0.0
        %1562 = vmatpush1.msra.mxu0 0.0
        %1563 = vmatprep.subr.mxu0 0.0
        %1564 = vmatpush1.msra.mxu0 0.0
        %1565 = vmatprep.subr.mxu0 0.0
        %1566 = vmatpush1.msra.mxu0 0.0
        %1567 = vmatprep.subr.mxu0 0.0
        %1568 = vmatpush1.msra.mxu0 0.0
        %1569 = vmatprep.subr.mxu0 0.0
        %1570 = vmatpush1.msra.mxu0 0.0
        %1571 = vmatprep.subr.mxu0 0.0
        %1572 = vmatpush1.msra.mxu0 0.0
        %1573 = vmatprep.subr.mxu0 0.0
        %1574 = vmatpush1.msra.mxu0 0.0
        %1575 = vmatprep.subr.mxu0 0.0
        %1576 = vmatpush1.msra.mxu0 0.0
        %1577 = vmatprep.mubr.f32.mxu0 0.0
        %1578 = vmatmul.mubr.f32.gmra.mrb[0].mxu0 %v1511
        %v1579 = vpop.f32.mrb[0].mxu0
        %v1580 = vadd.f32 0.0, %v1579
        %v1581 = vpop.f32.mrb[0].mxu0
        %1582 = vdwg.mxu0
        %1583 = vrot.lane.b32.xlu0 %v989, 56
        %v1584 = vpop.permute.xlu0 %1583
        %v1587 = vsel %vm999, %v1506, 0
        %1589 = vmatprep.subr.mxu0 0.0
        %1590 = vmatpush1.msra.mxu0 %v1584
        %1591 = vmatprep.subr.mxu0 0.0
        %1592 = vmatpush1.msra.mxu0 0.0
        %1593 = vmatprep.subr.mxu0 0.0
        %1594 = vmatpush1.msra.mxu0 0.0
        %1595 = vmatprep.subr.mxu0 0.0
        %1596 = vmatpush1.msra.mxu0 0.0
        %1597 = vmatprep.subr.mxu0 0.0
        %1598 = vmatpush1.msra.mxu0 0.0
        %1599 = vmatprep.subr.mxu0 0.0
        %1600 = vmatpush1.msra.mxu0 0.0
        %1601 = vmatprep.subr.mxu0 0.0
        %1602 = vmatpush1.msra.mxu0 0.0
        %1603 = vmatprep.subr.mxu0 0.0
        %1604 = vmatpush1.msra.mxu0 0.0
        %1605 = vmatprep.subr.mxu0 0.0
        %1606 = vmatpush1.msra.mxu0 0.0
        %1607 = vmatprep.subr.mxu0 0.0
        %1608 = vmatpush1.msra.mxu0 0.0
        %1609 = vmatprep.subr.mxu0 0.0
        %1610 = vmatpush1.msra.mxu0 0.0
        %1611 = vmatprep.subr.mxu0 0.0
        %1612 = vmatpush1.msra.mxu0 0.0
        %1613 = vmatprep.subr.mxu0 0.0
        %1614 = vmatpush1.msra.mxu0 0.0
        %1615 = vmatprep.subr.mxu0 0.0
        %1616 = vmatpush1.msra.mxu0 0.0
        %1617 = vmatprep.subr.mxu0 0.0
        %1618 = vmatpush1.msra.mxu0 0.0
        %1619 = vmatprep.subr.mxu0 0.0
        %1620 = vmatpush1.msra.mxu0 0.0
        %1621 = vmatprep.subr.mxu0 0.0
        %1622 = vmatpush1.msra.mxu0 0.0
        %1623 = vmatprep.subr.mxu0 0.0
        %1624 = vmatpush1.msra.mxu0 0.0
        %1625 = vmatprep.subr.mxu0 0.0
        %1626 = vmatpush1.msra.mxu0 0.0
        %1627 = vmatprep.subr.mxu0 0.0
        %1628 = vmatpush1.msra.mxu0 0.0
        %1629 = vmatprep.subr.mxu0 0.0
        %1630 = vmatpush1.msra.mxu0 0.0
        %1631 = vmatprep.subr.mxu0 0.0
        %1632 = vmatpush1.msra.mxu0 0.0
        %1633 = vmatprep.subr.mxu0 0.0
        %1634 = vmatpush1.msra.mxu0 0.0
        %1635 = vmatprep.subr.mxu0 0.0
        %1636 = vmatpush1.msra.mxu0 0.0
        %1637 = vmatprep.subr.mxu0 0.0
        %1638 = vmatpush1.msra.mxu0 0.0
        %1639 = vmatprep.subr.mxu0 0.0
        %1640 = vmatpush1.msra.mxu0 0.0
        %1641 = vmatprep.subr.mxu0 0.0
        %1642 = vmatpush1.msra.mxu0 0.0
        %1643 = vmatprep.subr.mxu0 0.0
        %1644 = vmatpush1.msra.mxu0 0.0
        %1645 = vmatprep.subr.mxu0 0.0
        %1646 = vmatpush1.msra.mxu0 0.0
        %1647 = vmatprep.subr.mxu0 0.0
        %1648 = vmatpush1.msra.mxu0 0.0
        %1649 = vmatprep.subr.mxu0 0.0
        %1650 = vmatpush1.msra.mxu0 0.0
        %1651 = vmatprep.subr.mxu0 0.0
        %1652 = vmatpush1.msra.mxu0 0.0
        %1653 = vmatprep.mubr.f32.mxu0 0.0
        %1654 = vmatmul.mubr.f32.gmra.mrb[0].mxu0 %v1587
        %v1655 = vpop.f32.mrb[0].mxu0
        %v1656 = vadd.f32 0.0, %v1655
        %v1657 = vpop.f32.mrb[0].mxu0
        %1658 = vdwg.mxu0
        %v1660 = vsel %vm999, %v1580, 0
        %v1663 = vsel %vm999, %v1656, 0
        %1665 = vmatprep.subr.mxu0 0.0
        %1666 = vmatpush1.msra.mxu0 %v993
        %1667 = vmatprep.subr.mxu0 0.0
        %1668 = vmatpush1.msra.mxu0 0.0
        %1669 = vmatprep.subr.mxu0 0.0
        %1670 = vmatpush1.msra.mxu0 0.0
        %1671 = vmatprep.subr.mxu0 0.0
        %1672 = vmatpush1.msra.mxu0 0.0
        %1673 = vmatprep.subr.mxu0 0.0
        %1674 = vmatpush1.msra.mxu0 0.0
        %1675 = vmatprep.subr.mxu0 0.0
        %1676 = vmatpush1.msra.mxu0 0.0
        %1677 = vmatprep.subr.mxu0 0.0
        %1678 = vmatpush1.msra.mxu0 0.0
        %1679 = vmatprep.subr.mxu0 0.0
        %1680 = vmatpush1.msra.mxu0 0.0
        %1681 = vmatprep.subr.mxu0 0.0
        %1682 = vmatpush1.msra.mxu0 0.0
        %1683 = vmatprep.subr.mxu0 0.0
        %1684 = vmatpush1.msra.mxu0 0.0
        %1685 = vmatprep.subr.mxu0 0.0
        %1686 = vmatpush1.msra.mxu0 0.0
        %1687 = vmatprep.subr.mxu0 0.0
        %1688 = vmatpush1.msra.mxu0 0.0
        %1689 = vmatprep.subr.mxu0 0.0
        %1690 = vmatpush1.msra.mxu0 0.0
        %1691 = vmatprep.subr.mxu0 0.0
        %1692 = vmatpush1.msra.mxu0 0.0
        %1693 = vmatprep.subr.mxu0 0.0
        %1694 = vmatpush1.msra.mxu0 0.0
        %1695 = vmatprep.subr.mxu0 0.0
        %1696 = vmatpush1.msra.mxu0 0.0
        %1697 = vmatprep.subr.mxu0 0.0
        %1698 = vmatpush1.msra.mxu0 0.0
        %1699 = vmatprep.subr.mxu0 0.0
        %1700 = vmatpush1.msra.mxu0 0.0
        %1701 = vmatprep.subr.mxu0 0.0
        %1702 = vmatpush1.msra.mxu0 0.0
        %1703 = vmatprep.subr.mxu0 0.0
        %1704 = vmatpush1.msra.mxu0 0.0
        %1705 = vmatprep.subr.mxu0 0.0
        %1706 = vmatpush1.msra.mxu0 0.0
        %1707 = vmatprep.subr.mxu0 0.0
        %1708 = vmatpush1.msra.mxu0 0.0
        %1709 = vmatprep.subr.mxu0 0.0
        %1710 = vmatpush1.msra.mxu0 0.0
        %1711 = vmatprep.subr.mxu0 0.0
        %1712 = vmatpush1.msra.mxu0 0.0
        %1713 = vmatprep.subr.mxu0 0.0
        %1714 = vmatpush1.msra.mxu0 0.0
        %1715 = vmatprep.subr.mxu0 0.0
        %1716 = vmatpush1.msra.mxu0 0.0
        %1717 = vmatprep.subr.mxu0 0.0
        %1718 = vmatpush1.msra.mxu0 0.0
        %1719 = vmatprep.subr.mxu0 0.0
        %1720 = vmatpush1.msra.mxu0 0.0
        %1721 = vmatprep.subr.mxu0 0.0
        %1722 = vmatpush1.msra.mxu0 0.0
        %1723 = vmatprep.subr.mxu0 0.0
        %1724 = vmatpush1.msra.mxu0 0.0
        %1725 = vmatprep.subr.mxu0 0.0
        %1726 = vmatpush1.msra.mxu0 0.0
        %1727 = vmatprep.subr.mxu0 0.0
        %1728 = vmatpush1.msra.mxu0 0.0
        %1729 = vmatprep.mubr.f32.mxu0 0.0
        %1730 = vmatmul.mubr.f32.gmra.mrb[0].mxu0 %v1660
        %v1731 = vpop.f32.mrb[0].mxu0
        %v1732 = vadd.f32 0.0, %v1731
        %v1733 = vpop.f32.mrb[0].mxu0
        %1734 = vmatprep.mubr.f32.mxu0 0.0
        %1735 = vmatmul.mubr.f32.gmra.mrb[0].mxu0 %v1663
        %v1736 = vpop.f32.mrb[0].mxu0
        %v1737 = vadd.f32 0.0, %v1736
        %v1738 = vpop.f32.mrb[0].mxu0
        %1739 = vdwg.mxu0
        %v1741 = vsel %vm999, %v1248, 0
        %v1744 = vsel %vm999, %v1324, 0
        %1746 = vmatprep.subr.mxu0 0.0
        %1747 = vmatpush1.msra.mxu0 %v992
        %1748 = vmatprep.subr.mxu0 0.0
        %1749 = vmatpush1.msra.mxu0 0.0
        %1750 = vmatprep.subr.mxu0 0.0
        %1751 = vmatpush1.msra.mxu0 0.0
        %1752 = vmatprep.subr.mxu0 0.0
        %1753 = vmatpush1.msra.mxu0 0.0
        %1754 = vmatprep.subr.mxu0 0.0
        %1755 = vmatpush1.msra.mxu0 0.0
        %1756 = vmatprep.subr.mxu0 0.0
        %1757 = vmatpush1.msra.mxu0 0.0
        %1758 = vmatprep.subr.mxu0 0.0
        %1759 = vmatpush1.msra.mxu0 0.0
        %1760 = vmatprep.subr.mxu0 0.0
        %1761 = vmatpush1.msra.mxu0 0.0
        %1762 = vmatprep.subr.mxu0 0.0
        %1763 = vmatpush1.msra.mxu0 0.0
        %1764 = vmatprep.subr.mxu0 0.0
        %1765 = vmatpush1.msra.mxu0 0.0
        %1766 = vmatprep.subr.mxu0 0.0
        %1767 = vmatpush1.msra.mxu0 0.0
        %1768 = vmatprep.subr.mxu0 0.0
        %1769 = vmatpush1.msra.mxu0 0.0
        %1770 = vmatprep.subr.mxu0 0.0
        %1771 = vmatpush1.msra.mxu0 0.0
        %1772 = vmatprep.subr.mxu0 0.0
        %1773 = vmatpush1.msra.mxu0 0.0
        %1774 = vmatprep.subr.mxu0 0.0
        %1775 = vmatpush1.msra.mxu0 0.0
        %1776 = vmatprep.subr.mxu0 0.0
        %1777 = vmatpush1.msra.mxu0 0.0
        %1778 = vmatprep.subr.mxu0 0.0
        %1779 = vmatpush1.msra.mxu0 0.0
        %1780 = vmatprep.subr.mxu0 0.0
        %1781 = vmatpush1.msra.mxu0 0.0
        %1782 = vmatprep.subr.mxu0 0.0
        %1783 = vmatpush1.msra.mxu0 0.0
        %1784 = vmatprep.subr.mxu0 0.0
        %1785 = vmatpush1.msra.mxu0 0.0
        %1786 = vmatprep.subr.mxu0 0.0
        %1787 = vmatpush1.msra.mxu0 0.0
        %1788 = vmatprep.subr.mxu0 0.0
        %1789 = vmatpush1.msra.mxu0 0.0
        %1790 = vmatprep.subr.mxu0 0.0
        %1791 = vmatpush1.msra.mxu0 0.0
        %1792 = vmatprep.subr.mxu0 0.0
        %1793 = vmatpush1.msra.mxu0 0.0
        %1794 = vmatprep.subr.mxu0 0.0
        %1795 = vmatpush1.msra.mxu0 0.0
        %1796 = vmatprep.subr.mxu0 0.0
        %1797 = vmatpush1.msra.mxu0 0.0
        %1798 = vmatprep.subr.mxu0 0.0
        %1799 = vmatpush1.msra.mxu0 0.0
        %1800 = vmatprep.subr.mxu0 0.0
        %1801 = vmatpush1.msra.mxu0 0.0
        %1802 = vmatprep.subr.mxu0 0.0
        %1803 = vmatpush1.msra.mxu0 0.0
        %1804 = vmatprep.subr.mxu0 0.0
        %1805 = vmatpush1.msra.mxu0 0.0
        %1806 = vmatprep.subr.mxu0 0.0
        %1807 = vmatpush1.msra.mxu0 0.0
        %1808 = vmatprep.subr.mxu0 0.0
        %1809 = vmatpush1.msra.mxu0 0.0
        %1810 = vmatprep.mubr.f32.mxu0 0.0
        %1811 = vmatmul.mubr.f32.gmra.mrb[0].mxu0 %v1741
        %v1812 = vpop.f32.mrb[0].mxu0
        %v1813 = vadd.f32 %v1732, %v1812
        %v1814 = vpop.f32.mrb[0].mxu0
        %1815 = vmatprep.mubr.f32.mxu0 0.0
        %1816 = vmatmul.mubr.f32.gmra.mrb[0].mxu0 %v1744
        %v1817 = vpop.f32.mrb[0].mxu0
        %v1818 = vadd.f32 %v1737, %v1817
        %v1819 = vpop.f32.mrb[0].mxu0
        %1820 = vdwg.mxu0
        %1821 = vrot.lane.b32.xlu0 %v984, 112
        %v1822 = vpop.permute.xlu0 %1821
        %1823 = vrot.lane.b32.xlu0 %v984, 80
        %v1824 = vpop.permute.xlu0 %1823
        %v1825 = vsel %vm999, %v1822, 0
        %v1827 = vsel %vm999, %v1824, 0
        %1829 = vmatprep.subr.mxu0 0.0
        %1830 = vmatpush1.xpose.msra.mxu0 %v1827
        %1831 = vmatprep.subr.mxu0 0.0
        %1832 = vmatpush1.xpose.msra.mxu0 0.0
        %1833 = vmatprep.subr.mxu0 0.0
        %1834 = vmatpush1.xpose.msra.mxu0 0.0
        %1835 = vmatprep.subr.mxu0 0.0
        %1836 = vmatpush1.xpose.msra.mxu0 0.0
        %1837 = vmatprep.subr.mxu0 0.0
        %1838 = vmatpush1.xpose.msra.mxu0 0.0
        %1839 = vmatprep.subr.mxu0 0.0
        %1840 = vmatpush1.xpose.msra.mxu0 0.0
        %1841 = vmatprep.subr.mxu0 0.0
        %1842 = vmatpush1.xpose.msra.mxu0 0.0
        %1843 = vmatprep.subr.mxu0 0.0
        %1844 = vmatpush1.xpose.msra.mxu0 0.0
        %1845 = vmatprep.subr.mxu0 0.0
        %1846 = vmatpush1.xpose.msra.mxu0 0.0
        %1847 = vmatprep.subr.mxu0 0.0
        %1848 = vmatpush1.xpose.msra.mxu0 0.0
        %1849 = vmatprep.subr.mxu0 0.0
        %1850 = vmatpush1.xpose.msra.mxu0 0.0
        %1851 = vmatprep.subr.mxu0 0.0
        %1852 = vmatpush1.xpose.msra.mxu0 0.0
        %1853 = vmatprep.subr.mxu0 0.0
        %1854 = vmatpush1.xpose.msra.mxu0 0.0
        %1855 = vmatprep.subr.mxu0 0.0
        %1856 = vmatpush1.xpose.msra.mxu0 0.0
        %1857 = vmatprep.subr.mxu0 0.0
        %1858 = vmatpush1.xpose.msra.mxu0 0.0
        %1859 = vmatprep.subr.mxu0 0.0
        %1860 = vmatpush1.xpose.msra.mxu0 0.0
        %1861 = vmatprep.subr.mxu0 0.0
        %1862 = vmatpush1.xpose.msra.mxu0 0.0
        %1863 = vmatprep.subr.mxu0 0.0
        %1864 = vmatpush1.xpose.msra.mxu0 0.0
        %1865 = vmatprep.subr.mxu0 0.0
        %1866 = vmatpush1.xpose.msra.mxu0 0.0
        %1867 = vmatprep.subr.mxu0 0.0
        %1868 = vmatpush1.xpose.msra.mxu0 0.0
        %1869 = vmatprep.subr.mxu0 0.0
        %1870 = vmatpush1.xpose.msra.mxu0 0.0
        %1871 = vmatprep.subr.mxu0 0.0
        %1872 = vmatpush1.xpose.msra.mxu0 0.0
        %1873 = vmatprep.subr.mxu0 0.0
        %1874 = vmatpush1.xpose.msra.mxu0 0.0
        %1875 = vmatprep.subr.mxu0 0.0
        %1876 = vmatpush1.xpose.msra.mxu0 0.0
        %1877 = vmatprep.subr.mxu0 0.0
        %1878 = vmatpush1.xpose.msra.mxu0 0.0
        %1879 = vmatprep.subr.mxu0 0.0
        %1880 = vmatpush1.xpose.msra.mxu0 0.0
        %1881 = vmatprep.subr.mxu0 0.0
        %1882 = vmatpush1.xpose.msra.mxu0 0.0
        %1883 = vmatprep.subr.mxu0 0.0
        %1884 = vmatpush1.xpose.msra.mxu0 0.0
        %1885 = vmatprep.subr.mxu0 0.0
        %1886 = vmatpush1.xpose.msra.mxu0 0.0
        %1887 = vmatprep.subr.mxu0 0.0
        %1888 = vmatpush1.xpose.msra.mxu0 0.0
        %1889 = vmatprep.subr.mxu0 0.0
        %1890 = vmatpush1.xpose.msra.mxu0 0.0
        %1891 = vmatprep.subr.mxu0 0.0
        %1892 = vmatpush1.xpose.msra.mxu0 0.0
        %1893 = vmatprep.mubr.f32.mxu0 0.0
        %1894 = vmatmul.mubr.f32.gmra.mrb[0].mxu0 %v1825
        %v1895 = vpop.f32.mrb[0].mxu0
        %v1896 = vadd.f32 0.0, %v1895
        %v1897 = vpop.f32.mrb[0].mxu0
        %1898 = vdwg.mxu0
        %1899 = vrot.lane.b32.xlu0 %v989, 112
        %v1900 = vpop.permute.xlu0 %1899
        %1901 = vrot.lane.b32.xlu0 %v989, 80
        %v1902 = vpop.permute.xlu0 %1901
        %v1903 = vsel %vm999, %v1900, 0
        %v1905 = vsel %vm999, %v1902, 0
        %1907 = vmatprep.subr.mxu0 0.0
        %1908 = vmatpush1.xpose.msra.mxu0 %v1905
        %1909 = vmatprep.subr.mxu0 0.0
        %1910 = vmatpush1.xpose.msra.mxu0 0.0
        %1911 = vmatprep.subr.mxu0 0.0
        %1912 = vmatpush1.xpose.msra.mxu0 0.0
        %1913 = vmatprep.subr.mxu0 0.0
        %1914 = vmatpush1.xpose.msra.mxu0 0.0
        %1915 = vmatprep.subr.mxu0 0.0
        %1916 = vmatpush1.xpose.msra.mxu0 0.0
        %1917 = vmatprep.subr.mxu0 0.0
        %1918 = vmatpush1.xpose.msra.mxu0 0.0
        %1919 = vmatprep.subr.mxu0 0.0
        %1920 = vmatpush1.xpose.msra.mxu0 0.0
        %1921 = vmatprep.subr.mxu0 0.0
        %1922 = vmatpush1.xpose.msra.mxu0 0.0
        %1923 = vmatprep.subr.mxu0 0.0
        %1924 = vmatpush1.xpose.msra.mxu0 0.0
        %1925 = vmatprep.subr.mxu0 0.0
        %1926 = vmatpush1.xpose.msra.mxu0 0.0
        %1927 = vmatprep.subr.mxu0 0.0
        %1928 = vmatpush1.xpose.msra.mxu0 0.0
        %1929 = vmatprep.subr.mxu0 0.0
        %1930 = vmatpush1.xpose.msra.mxu0 0.0
        %1931 = vmatprep.subr.mxu0 0.0
        %1932 = vmatpush1.xpose.msra.mxu0 0.0
        %1933 = vmatprep.subr.mxu0 0.0
        %1934 = vmatpush1.xpose.msra.mxu0 0.0
        %1935 = vmatprep.subr.mxu0 0.0
        %1936 = vmatpush1.xpose.msra.mxu0 0.0
        %1937 = vmatprep.subr.mxu0 0.0
        %1938 = vmatpush1.xpose.msra.mxu0 0.0
        %1939 = vmatprep.subr.mxu0 0.0
        %1940 = vmatpush1.xpose.msra.mxu0 0.0
        %1941 = vmatprep.subr.mxu0 0.0
        %1942 = vmatpush1.xpose.msra.mxu0 0.0
        %1943 = vmatprep.subr.mxu0 0.0
        %1944 = vmatpush1.xpose.msra.mxu0 0.0
        %1945 = vmatprep.subr.mxu0 0.0
        %1946 = vmatpush1.xpose.msra.mxu0 0.0
        %1947 = vmatprep.subr.mxu0 0.0
        %1948 = vmatpush1.xpose.msra.mxu0 0.0
        %1949 = vmatprep.subr.mxu0 0.0
        %1950 = vmatpush1.xpose.msra.mxu0 0.0
        %1951 = vmatprep.subr.mxu0 0.0
        %1952 = vmatpush1.xpose.msra.mxu0 0.0
        %1953 = vmatprep.subr.mxu0 0.0
        %1954 = vmatpush1.xpose.msra.mxu0 0.0
        %1955 = vmatprep.subr.mxu0 0.0
        %1956 = vmatpush1.xpose.msra.mxu0 0.0
        %1957 = vmatprep.subr.mxu0 0.0
        %1958 = vmatpush1.xpose.msra.mxu0 0.0
        %1959 = vmatprep.subr.mxu0 0.0
        %1960 = vmatpush1.xpose.msra.mxu0 0.0
        %1961 = vmatprep.subr.mxu0 0.0
        %1962 = vmatpush1.xpose.msra.mxu0 0.0
        %1963 = vmatprep.subr.mxu0 0.0
        %1964 = vmatpush1.xpose.msra.mxu0 0.0
        %1965 = vmatprep.subr.mxu0 0.0
        %1966 = vmatpush1.xpose.msra.mxu0 0.0
        %1967 = vmatprep.subr.mxu0 0.0
        %1968 = vmatpush1.xpose.msra.mxu0 0.0
        %1969 = vmatprep.subr.mxu0 0.0
        %1970 = vmatpush1.xpose.msra.mxu0 0.0
        %1971 = vmatprep.mubr.f32.mxu0 0.0
        %1972 = vmatmul.mubr.f32.gmra.mrb[0].mxu0 %v1903
        %v1973 = vpop.f32.mrb[0].mxu0
        %v1974 = vadd.f32 0.0, %v1973
        %v1975 = vpop.f32.mrb[0].mxu0
        %1976 = vdwg.mxu0
        %v1977 = vmul.f32 %v1896, 0.35355338
        %v1978 = vmul.f32 %v1974, 0.35355338
        %v1979 = vsel %vm999, %v1977, -inf
        %1980 = vmax.xlane.f32.xlu0 %v1979
        %v1981 = vpop.xlane.xlu0 %1980
        %v1982 = vsel %vm999, %v1978, -inf
        %1983 = vmax.xlane.f32.xlu0 %v1982
        %v1984 = vpop.xlane.xlu0 %1983
        %v1985 = vsub.f32 %v1977, %v1981
        %v1986 = vsub.f32 %v1978, %v1984
        %v1987 = vmul.f32 %v1985, 1.442695
        %v1988 = vpow.pop %v1987
        %v1989 = vmul.f32 %v1986, 1.442695
        %v1990 = vpow.pop %v1989
        %v1991 = vsel %vm999, %v1988, 0.0
        %1992 = vadd.xlane.f32.xlu0 %v1991
        %v1993 = vpop.xlane.xlu0 %1992
        %v1994 = vsel %vm999, %v1990, 0.0
        %1995 = vadd.xlane.f32.xlu0 %v1994
        %v1996 = vpop.xlane.xlu0 %1995
        %v1997 = vrcp.pop %v1993
        %v1998 = vrcp.pop %v1996
        %v1999 = vmul.f32 %v1988, %v1997
        %v2000 = vmul.f32 %v1990, %v1998
        %2001 = vrot.lane.b32.xlu0 %v984, 48
        %v2002 = vpop.permute.xlu0 %2001
        %v2005 = vsel %vm999, %v1999, 0
        %2007 = vmatprep.subr.mxu0 0.0
        %2008 = vmatpush1.msra.mxu0 %v2002
        %2009 = vmatprep.subr.mxu0 0.0
        %2010 = vmatpush1.msra.mxu0 0.0
        %2011 = vmatprep.subr.mxu0 0.0
        %2012 = vmatpush1.msra.mxu0 0.0
        %2013 = vmatprep.subr.mxu0 0.0
        %2014 = vmatpush1.msra.mxu0 0.0
        %2015 = vmatprep.subr.mxu0 0.0
        %2016 = vmatpush1.msra.mxu0 0.0
        %2017 = vmatprep.subr.mxu0 0.0
        %2018 = vmatpush1.msra.mxu0 0.0
        %2019 = vmatprep.subr.mxu0 0.0
        %2020 = vmatpush1.msra.mxu0 0.0
        %2021 = vmatprep.subr.mxu0 0.0
        %2022 = vmatpush1.msra.mxu0 0.0
        %2023 = vmatprep.subr.mxu0 0.0
        %2024 = vmatpush1.msra.mxu0 0.0
        %2025 = vmatprep.subr.mxu0 0.0
        %2026 = vmatpush1.msra.mxu0 0.0
        %2027 = vmatprep.subr.mxu0 0.0
        %2028 = vmatpush1.msra.mxu0 0.0
        %2029 = vmatprep.subr.mxu0 0.0
        %2030 = vmatpush1.msra.mxu0 0.0
        %2031 = vmatprep.subr.mxu0 0.0
        %2032 = vmatpush1.msra.mxu0 0.0
        %2033 = vmatprep.subr.mxu0 0.0
        %2034 = vmatpush1.msra.mxu0 0.0
        %2035 = vmatprep.subr.mxu0 0.0
        %2036 = vmatpush1.msra.mxu0 0.0
        %2037 = vmatprep.subr.mxu0 0.0
        %2038 = vmatpush1.msra.mxu0 0.0
        %2039 = vmatprep.subr.mxu0 0.0
        %2040 = vmatpush1.msra.mxu0 0.0
        %2041 = vmatprep.subr.mxu0 0.0
        %2042 = vmatpush1.msra.mxu0 0.0
        %2043 = vmatprep.subr.mxu0 0.0
        %2044 = vmatpush1.msra.mxu0 0.0
        %2045 = vmatprep.subr.mxu0 0.0
        %2046 = vmatpush1.msra.mxu0 0.0
        %2047 = vmatprep.subr.mxu0 0.0
        %2048 = vmatpush1.msra.mxu0 0.0
        %2049 = vmatprep.subr.mxu0 0.0
        %2050 = vmatpush1.msra.mxu0 0.0
        %2051 = vmatprep.subr.mxu0 0.0
        %2052 = vmatpush1.msra.mxu0 0.0
        %2053 = vmatprep.subr.mxu0 0.0
        %2054 = vmatpush1.msra.mxu0 0.0
        %2055 = vmatprep.subr.mxu0 0.0
        %2056 = vmatpush1.msra.mxu0 0.0
        %2057 = vmatprep.subr.mxu0 0.0
        %2058 = vmatpush1.msra.mxu0 0.0
        %2059 = vmatprep.subr.mxu0 0.0
        %2060 = vmatpush1.msra.mxu0 0.0
        %2061 = vmatprep.subr.mxu0 0.0
        %2062 = vmatpush1.msra.mxu0 0.0
        %2063 = vmatprep.subr.mxu0 0.0
        %2064 = vmatpush1.msra.mxu0 0.0
        %2065 = vmatprep.subr.mxu0 0.0
        %2066 = vmatpush1.msra.mxu0 0.0
        %2067 = vmatprep.subr.mxu0 0.0
        %2068 = vmatpush1.msra.mxu0 0.0
        %2069 = vmatprep.subr.mxu0 0.0
        %2070 = vmatpush1.msra.mxu0 0.0
        %2071 = vmatprep.mubr.f32.mxu0 0.0
        %2072 = vmatmul.mubr.f32.gmra.mrb[0].mxu0 %v2005
        %v2073 = vpop.f32.mrb[0].mxu0
        %v2074 = vadd.f32 0.0, %v2073
        %v2075 = vpop.f32.mrb[0].mxu0
        %2076 = vdwg.mxu0
        %2077 = vrot.lane.b32.xlu0 %v989, 48
        %v2078 = vpop.permute.xlu0 %2077
        %v2081 = vsel %vm999, %v2000, 0
        %2083 = vmatprep.subr.mxu0 0.0
        %2084 = vmatpush1.msra.mxu0 %v2078
        %2085 = vmatprep.subr.mxu0 0.0
        %2086 = vmatpush1.msra.mxu0 0.0
        %2087 = vmatprep.subr.mxu0 0.0
        %2088 = vmatpush1.msra.mxu0 0.0
        %2089 = vmatprep.subr.mxu0 0.0
        %2090 = vmatpush1.msra.mxu0 0.0
        %2091 = vmatprep.subr.mxu0 0.0
        %2092 = vmatpush1.msra.mxu0 0.0
        %2093 = vmatprep.subr.mxu0 0.0
        %2094 = vmatpush1.msra.mxu0 0.0
        %2095 = vmatprep.subr.mxu0 0.0
        %2096 = vmatpush1.msra.mxu0 0.0
        %2097 = vmatprep.subr.mxu0 0.0
        %2098 = vmatpush1.msra.mxu0 0.0
        %2099 = vmatprep.subr.mxu0 0.0
        %2100 = vmatpush1.msra.mxu0 0.0
        %2101 = vmatprep.subr.mxu0 0.0
        %2102 = vmatpush1.msra.mxu0 0.0
        %2103 = vmatprep.subr.mxu0 0.0
        %2104 = vmatpush1.msra.mxu0 0.0
        %2105 = vmatprep.subr.mxu0 0.0
        %2106 = vmatpush1.msra.mxu0 0.0
        %2107 = vmatprep.subr.mxu0 0.0
        %2108 = vmatpush1.msra.mxu0 0.0
        %2109 = vmatprep.subr.mxu0 0.0
        %2110 = vmatpush1.msra.mxu0 0.0
        %2111 = vmatprep.subr.mxu0 0.0
        %2112 = vmatpush1.msra.mxu0 0.0
        %2113 = vmatprep.subr.mxu0 0.0
        %2114 = vmatpush1.msra.mxu0 0.0
        %2115 = vmatprep.subr.mxu0 0.0
        %2116 = vmatpush1.msra.mxu0 0.0
        %2117 = vmatprep.subr.mxu0 0.0
        %2118 = vmatpush1.msra.mxu0 0.0
        %2119 = vmatprep.subr.mxu0 0.0
        %2120 = vmatpush1.msra.mxu0 0.0
        %2121 = vmatprep.subr.mxu0 0.0
        %2122 = vmatpush1.msra.mxu0 0.0
        %2123 = vmatprep.subr.mxu0 0.0
        %2124 = vmatpush1.msra.mxu0 0.0
        %2125 = vmatprep.subr.mxu0 0.0
        %2126 = vmatpush1.msra.mxu0 0.0
        %2127 = vmatprep.subr.mxu0 0.0
        %2128 = vmatpush1.msra.mxu0 0.0
        %2129 = vmatprep.subr.mxu0 0.0
        %2130 = vmatpush1.msra.mxu0 0.0
        %2131 = vmatprep.subr.mxu0 0.0
        %2132 = vmatpush1.msra.mxu0 0.0
        %2133 = vmatprep.subr.mxu0 0.0
        %2134 = vmatpush1.msra.mxu0 0.0
        %2135 = vmatprep.subr.mxu0 0.0
        %2136 = vmatpush1.msra.mxu0 0.0
        %2137 = vmatprep.subr.mxu0 0.0
        %2138 = vmatpush1.msra.mxu0 0.0
        %2139 = vmatprep.subr.mxu0 0.0
        %2140 = vmatpush1.msra.mxu0 0.0
        %2141 = vmatprep.subr.mxu0 0.0
        %2142 = vmatpush1.msra.mxu0 0.0
        %2143 = vmatprep.subr.mxu0 0.0
        %2144 = vmatpush1.msra.mxu0 0.0
        %2145 = vmatprep.subr.mxu0 0.0
        %2146 = vmatpush1.msra.mxu0 0.0
        %2147 = vmatprep.mubr.f32.mxu0 0.0
        %2148 = vmatmul.mubr.f32.gmra.mrb[0].mxu0 %v2081
        %v2149 = vpop.f32.mrb[0].mxu0
        %v2150 = vadd.f32 0.0, %v2149
        %v2151 = vpop.f32.mrb[0].mxu0
        %2152 = vdwg.mxu0
        %v2154 = vsel %vm999, %v2074, 0
        %v2157 = vsel %vm999, %v2150, 0
        %2159 = vmatprep.subr.mxu0 0.0
        %2160 = vmatpush1.msra.mxu0 %v994
        %2161 = vmatprep.subr.mxu0 0.0
        %2162 = vmatpush1.msra.mxu0 0.0
        %2163 = vmatprep.subr.mxu0 0.0
        %2164 = vmatpush1.msra.mxu0 0.0
        %2165 = vmatprep.subr.mxu0 0.0
        %2166 = vmatpush1.msra.mxu0 0.0
        %2167 = vmatprep.subr.mxu0 0.0
        %2168 = vmatpush1.msra.mxu0 0.0
        %2169 = vmatprep.subr.mxu0 0.0
        %2170 = vmatpush1.msra.mxu0 0.0
        %2171 = vmatprep.subr.mxu0 0.0
        %2172 = vmatpush1.msra.mxu0 0.0
        %2173 = vmatprep.subr.mxu0 0.0
        %2174 = vmatpush1.msra.mxu0 0.0
        %2175 = vmatprep.subr.mxu0 0.0
        %2176 = vmatpush1.msra.mxu0 0.0
        %2177 = vmatprep.subr.mxu0 0.0
        %2178 = vmatpush1.msra.mxu0 0.0
        %2179 = vmatprep.subr.mxu0 0.0
        %2180 = vmatpush1.msra.mxu0 0.0
        %2181 = vmatprep.subr.mxu0 0.0
        %2182 = vmatpush1.msra.mxu0 0.0
        %2183 = vmatprep.subr.mxu0 0.0
        %2184 = vmatpush1.msra.mxu0 0.0
        %2185 = vmatprep.subr.mxu0 0.0
        %2186 = vmatpush1.msra.mxu0 0.0
        %2187 = vmatprep.subr.mxu0 0.0
        %2188 = vmatpush1.msra.mxu0 0.0
        %2189 = vmatprep.subr.mxu0 0.0
        %2190 = vmatpush1.msra.mxu0 0.0
        %2191 = vmatprep.subr.mxu0 0.0
        %2192 = vmatpush1.msra.mxu0 0.0
        %2193 = vmatprep.subr.mxu0 0.0
        %2194 = vmatpush1.msra.mxu0 0.0
        %2195 = vmatprep.subr.mxu0 0.0
        %2196 = vmatpush1.msra.mxu0 0.0
        %2197 = vmatprep.subr.mxu0 0.0
        %2198 = vmatpush1.msra.mxu0 0.0
        %2199 = vmatprep.subr.mxu0 0.0
        %2200 = vmatpush1.msra.mxu0 0.0
        %2201 = vmatprep.subr.mxu0 0.0
        %2202 = vmatpush1.msra.mxu0 0.0
        %2203 = vmatprep.subr.mxu0 0.0
        %2204 = vmatpush1.msra.mxu0 0.0
        %2205 = vmatprep.subr.mxu0 0.0
        %2206 = vmatpush1.msra.mxu0 0.0
        %2207 = vmatprep.subr.mxu0 0.0
        %2208 = vmatpush1.msra.mxu0 0.0
        %2209 = vmatprep.subr.mxu0 0.0
        %2210 = vmatpush1.msra.mxu0 0.0
        %2211 = vmatprep.subr.mxu0 0.0
        %2212 = vmatpush1.msra.mxu0 0.0
        %2213 = vmatprep.subr.mxu0 0.0
        %2214 = vmatpush1.msra.mxu0 0.0
        %2215 = vmatprep.subr.mxu0 0.0
        %2216 = vmatpush1.msra.mxu0 0.0
        %2217 = vmatprep.subr.mxu0 0.0
        %2218 = vmatpush1.msra.mxu0 0.0
        %2219 = vmatprep.subr.mxu0 0.0
        %2220 = vmatpush1.msra.mxu0 0.0
        %2221 = vmatprep.subr.mxu0 0.0
        %2222 = vmatpush1.msra.mxu0 0.0
        %2223 = vmatprep.mubr.f32.mxu0 0.0
        %2224 = vmatmul.mubr.f32.gmra.mrb[0].mxu0 %v2154
        %v2225 = vpop.f32.mrb[0].mxu0
        %v2226 = vadd.f32 0.0, %v2225
        %v2227 = vpop.f32.mrb[0].mxu0
        %2228 = vmatprep.mubr.f32.mxu0 0.0
        %2229 = vmatmul.mubr.f32.gmra.mrb[0].mxu0 %v2157
        %v2230 = vpop.f32.mrb[0].mxu0
        %v2231 = vadd.f32 0.0, %v2230
        %v2232 = vpop.f32.mrb[0].mxu0
        %2233 = vdwg.mxu0
        %v2234 = vadd.f32 %v1813, %v2226
        %v2235 = vadd.f32 %v1818, %v2231
        %2236 = vrot.lane.b32.xlu0 %v984, 104
        %v2237 = vpop.permute.xlu0 %2236
        %2238 = vrot.lane.b32.xlu0 %v984, 72
        %v2239 = vpop.permute.xlu0 %2238
        %v2240 = vsel %vm999, %v2237, 0
        %v2242 = vsel %vm999, %v2239, 0
        %2244 = vmatprep.subr.mxu0 0.0
        %2245 = vmatpush1.xpose.msra.mxu0 %v2242
        %2246 = vmatprep.subr.mxu0 0.0
        %2247 = vmatpush1.xpose.msra.mxu0 0.0
        %2248 = vmatprep.subr.mxu0 0.0
        %2249 = vmatpush1.xpose.msra.mxu0 0.0
        %2250 = vmatprep.subr.mxu0 0.0
        %2251 = vmatpush1.xpose.msra.mxu0 0.0
        %2252 = vmatprep.subr.mxu0 0.0
        %2253 = vmatpush1.xpose.msra.mxu0 0.0
        %2254 = vmatprep.subr.mxu0 0.0
        %2255 = vmatpush1.xpose.msra.mxu0 0.0
        %2256 = vmatprep.subr.mxu0 0.0
        %2257 = vmatpush1.xpose.msra.mxu0 0.0
        %2258 = vmatprep.subr.mxu0 0.0
        %2259 = vmatpush1.xpose.msra.mxu0 0.0
        %2260 = vmatprep.subr.mxu0 0.0
        %2261 = vmatpush1.xpose.msra.mxu0 0.0
        %2262 = vmatprep.subr.mxu0 0.0
        %2263 = vmatpush1.xpose.msra.mxu0 0.0
        %2264 = vmatprep.subr.mxu0 0.0
        %2265 = vmatpush1.xpose.msra.mxu0 0.0
        %2266 = vmatprep.subr.mxu0 0.0
        %2267 = vmatpush1.xpose.msra.mxu0 0.0
        %2268 = vmatprep.subr.mxu0 0.0
        %2269 = vmatpush1.xpose.msra.mxu0 0.0
        %2270 = vmatprep.subr.mxu0 0.0
        %2271 = vmatpush1.xpose.msra.mxu0 0.0
        %2272 = vmatprep.subr.mxu0 0.0
        %2273 = vmatpush1.xpose.msra.mxu0 0.0
        %2274 = vmatprep.subr.mxu0 0.0
        %2275 = vmatpush1.xpose.msra.mxu0 0.0
        %2276 = vmatprep.subr.mxu0 0.0
        %2277 = vmatpush1.xpose.msra.mxu0 0.0
        %2278 = vmatprep.subr.mxu0 0.0
        %2279 = vmatpush1.xpose.msra.mxu0 0.0
        %2280 = vmatprep.subr.mxu0 0.0
        %2281 = vmatpush1.xpose.msra.mxu0 0.0
        %2282 = vmatprep.subr.mxu0 0.0
        %2283 = vmatpush1.xpose.msra.mxu0 0.0
        %2284 = vmatprep.subr.mxu0 0.0
        %2285 = vmatpush1.xpose.msra.mxu0 0.0
        %2286 = vmatprep.subr.mxu0 0.0
        %2287 = vmatpush1.xpose.msra.mxu0 0.0
        %2288 = vmatprep.subr.mxu0 0.0
        %2289 = vmatpush1.xpose.msra.mxu0 0.0
        %2290 = vmatprep.subr.mxu0 0.0
        %2291 = vmatpush1.xpose.msra.mxu0 0.0
        %2292 = vmatprep.subr.mxu0 0.0
        %2293 = vmatpush1.xpose.msra.mxu0 0.0
        %2294 = vmatprep.subr.mxu0 0.0
        %2295 = vmatpush1.xpose.msra.mxu0 0.0
        %2296 = vmatprep.subr.mxu0 0.0
        %2297 = vmatpush1.xpose.msra.mxu0 0.0
        %2298 = vmatprep.subr.mxu0 0.0
        %2299 = vmatpush1.xpose.msra.mxu0 0.0
        %2300 = vmatprep.subr.mxu0 0.0
        %2301 = vmatpush1.xpose.msra.mxu0 0.0
        %2302 = vmatprep.subr.mxu0 0.0
        %2303 = vmatpush1.xpose.msra.mxu0 0.0
        %2304 = vmatprep.subr.mxu0 0.0
        %2305 = vmatpush1.xpose.msra.mxu0 0.0
        %2306 = vmatprep.subr.mxu0 0.0
        %2307 = vmatpush1.xpose.msra.mxu0 0.0
        %2308 = vmatprep.mubr.f32.mxu0 0.0
        %2309 = vmatmul.mubr.f32.gmra.mrb[0].mxu0 %v2240
        %v2310 = vpop.f32.mrb[0].mxu0
        %v2311 = vadd.f32 0.0, %v2310
        %v2312 = vpop.f32.mrb[0].mxu0
        %2313 = vdwg.mxu0
        %2314 = vrot.lane.b32.xlu0 %v989, 104
        %v2315 = vpop.permute.xlu0 %2314
        %2316 = vrot.lane.b32.xlu0 %v989, 72
        %v2317 = vpop.permute.xlu0 %2316
        %v2318 = vsel %vm999, %v2315, 0
        %v2320 = vsel %vm999, %v2317, 0
        %2322 = vmatprep.subr.mxu0 0.0
        %2323 = vmatpush1.xpose.msra.mxu0 %v2320
        %2324 = vmatprep.subr.mxu0 0.0
        %2325 = vmatpush1.xpose.msra.mxu0 0.0
        %2326 = vmatprep.subr.mxu0 0.0
        %2327 = vmatpush1.xpose.msra.mxu0 0.0
        %2328 = vmatprep.subr.mxu0 0.0
        %2329 = vmatpush1.xpose.msra.mxu0 0.0
        %2330 = vmatprep.subr.mxu0 0.0
        %2331 = vmatpush1.xpose.msra.mxu0 0.0
        %2332 = vmatprep.subr.mxu0 0.0
        %2333 = vmatpush1.xpose.msra.mxu0 0.0
        %2334 = vmatprep.subr.mxu0 0.0
        %2335 = vmatpush1.xpose.msra.mxu0 0.0
        %2336 = vmatprep.subr.mxu0 0.0
        %2337 = vmatpush1.xpose.msra.mxu0 0.0
        %2338 = vmatprep.subr.mxu0 0.0
        %2339 = vmatpush1.xpose.msra.mxu0 0.0
        %2340 = vmatprep.subr.mxu0 0.0
        %2341 = vmatpush1.xpose.msra.mxu0 0.0
        %2342 = vmatprep.subr.mxu0 0.0
        %2343 = vmatpush1.xpose.msra.mxu0 0.0
        %2344 = vmatprep.subr.mxu0 0.0
        %2345 = vmatpush1.xpose.msra.mxu0 0.0
        %2346 = vmatprep.subr.mxu0 0.0
        %2347 = vmatpush1.xpose.msra.mxu0 0.0
        %2348 = vmatprep.subr.mxu0 0.0
        %2349 = vmatpush1.xpose.msra.mxu0 0.0
        %2350 = vmatprep.subr.mxu0 0.0
        %2351 = vmatpush1.xpose.msra.mxu0 0.0
        %2352 = vmatprep.subr.mxu0 0.0
        %2353 = vmatpush1.xpose.msra.mxu0 0.0
        %2354 = vmatprep.subr.mxu0 0.0
        %2355 = vmatpush1.xpose.msra.mxu0 0.0
        %2356 = vmatprep.subr.mxu0 0.0
        %2357 = vmatpush1.xpose.msra.mxu0 0.0
        %2358 = vmatprep.subr.mxu0 0.0
        %2359 = vmatpush1.xpose.msra.mxu0 0.0
        %2360 = vmatprep.subr.mxu0 0.0
        %2361 = vmatpush1.xpose.msra.mxu0 0.0
        %2362 = vmatprep.subr.mxu0 0.0
        %2363 = vmatpush1.xpose.msra.mxu0 0.0
        %2364 = vmatprep.subr.mxu0 0.0
        %2365 = vmatpush1.xpose.msra.mxu0 0.0
        %2366 = vmatprep.subr.mxu0 0.0
        %2367 = vmatpush1.xpose.msra.mxu0 0.0
        %2368 = vmatprep.subr.mxu0 0.0
        %2369 = vmatpush1.xpose.msra.mxu0 0.0
        %2370 = vmatprep.subr.mxu0 0.0
        %2371 = vmatpush1.xpose.msra.mxu0 0.0
        %2372 = vmatprep.subr.mxu0 0.0
        %2373 = vmatpush1.xpose.msra.mxu0 0.0
        %2374 = vmatprep.subr.mxu0 0.0
        %2375 = vmatpush1.xpose.msra.mxu0 0.0
        %2376 = vmatprep.subr.mxu0 0.0
        %2377 = vmatpush1.xpose.msra.mxu0 0.0
        %2378 = vmatprep.subr.mxu0 0.0
        %2379 = vmatpush1.xpose.msra.mxu0 0.0
        %2380 = vmatprep.subr.mxu0 0.0
        %2381 = vmatpush1.xpose.msra.mxu0 0.0
        %2382 = vmatprep.subr.mxu0 0.0
        %2383 = vmatpush1.xpose.msra.mxu0 0.0
        %2384 = vmatprep.subr.mxu0 0.0
        %2385 = vmatpush1.xpose.msra.mxu0 0.0
        %2386 = vmatprep.mubr.f32.mxu0 0.0
        %2387 = vmatmul.mubr.f32.gmra.mrb[0].mxu0 %v2318
        %v2388 = vpop.f32.mrb[0].mxu0
        %v2389 = vadd.f32 0.0, %v2388
        %v2390 = vpop.f32.mrb[0].mxu0
        %2391 = vdwg.mxu0
        %v2392 = vmul.f32 %v2311, 0.35355338
        %v2393 = vmul.f32 %v2389, 0.35355338
        %v2394 = vsel %vm999, %v2392, -inf
        %2395 = vmax.xlane.f32.xlu0 %v2394
        %v2396 = vpop.xlane.xlu0 %2395
        %v2397 = vsel %vm999, %v2393, -inf
        %2398 = vmax.xlane.f32.xlu0 %v2397
        %v2399 = vpop.xlane.xlu0 %2398
        %v2400 = vsub.f32 %v2392, %v2396
        %v2401 = vsub.f32 %v2393, %v2399
        %v2402 = vmul.f32 %v2400, 1.442695
        %v2403 = vpow.pop %v2402
        %v2404 = vmul.f32 %v2401, 1.442695
        %v2405 = vpow.pop %v2404
        %v2406 = vsel %vm999, %v2403, 0.0
        %2407 = vadd.xlane.f32.xlu0 %v2406
        %v2408 = vpop.xlane.xlu0 %2407
        %v2409 = vsel %vm999, %v2405, 0.0
        %2410 = vadd.xlane.f32.xlu0 %v2409
        %v2411 = vpop.xlane.xlu0 %2410
        %v2412 = vrcp.pop %v2408
        %v2413 = vrcp.pop %v2411
        %v2414 = vmul.f32 %v2403, %v2412
        %v2415 = vmul.f32 %v2405, %v2413
        %2416 = vrot.lane.b32.xlu0 %v984, 40
        %v2417 = vpop.permute.xlu0 %2416
        %v2420 = vsel %vm999, %v2414, 0
        %2422 = vmatprep.subr.mxu0 0.0
        %2423 = vmatpush1.msra.mxu0 %v2417
        %2424 = vmatprep.subr.mxu0 0.0
        %2425 = vmatpush1.msra.mxu0 0.0
        %2426 = vmatprep.subr.mxu0 0.0
        %2427 = vmatpush1.msra.mxu0 0.0
        %2428 = vmatprep.subr.mxu0 0.0
        %2429 = vmatpush1.msra.mxu0 0.0
        %2430 = vmatprep.subr.mxu0 0.0
        %2431 = vmatpush1.msra.mxu0 0.0
        %2432 = vmatprep.subr.mxu0 0.0
        %2433 = vmatpush1.msra.mxu0 0.0
        %2434 = vmatprep.subr.mxu0 0.0
        %2435 = vmatpush1.msra.mxu0 0.0
        %2436 = vmatprep.subr.mxu0 0.0
        %2437 = vmatpush1.msra.mxu0 0.0
        %2438 = vmatprep.subr.mxu0 0.0
        %2439 = vmatpush1.msra.mxu0 0.0
        %2440 = vmatprep.subr.mxu0 0.0
        %2441 = vmatpush1.msra.mxu0 0.0
        %2442 = vmatprep.subr.mxu0 0.0
        %2443 = vmatpush1.msra.mxu0 0.0
        %2444 = vmatprep.subr.mxu0 0.0
        %2445 = vmatpush1.msra.mxu0 0.0
        %2446 = vmatprep.subr.mxu0 0.0
        %2447 = vmatpush1.msra.mxu0 0.0
        %2448 = vmatprep.subr.mxu0 0.0
        %2449 = vmatpush1.msra.mxu0 0.0
        %2450 = vmatprep.subr.mxu0 0.0
        %2451 = vmatpush1.msra.mxu0 0.0
        %2452 = vmatprep.subr.mxu0 0.0
        %2453 = vmatpush1.msra.mxu0 0.0
        %2454 = vmatprep.subr.mxu0 0.0
        %2455 = vmatpush1.msra.mxu0 0.0
        %2456 = vmatprep.subr.mxu0 0.0
        %2457 = vmatpush1.msra.mxu0 0.0
        %2458 = vmatprep.subr.mxu0 0.0
        %2459 = vmatpush1.msra.mxu0 0.0
        %2460 = vmatprep.subr.mxu0 0.0
        %2461 = vmatpush1.msra.mxu0 0.0
        %2462 = vmatprep.subr.mxu0 0.0
        %2463 = vmatpush1.msra.mxu0 0.0
        %2464 = vmatprep.subr.mxu0 0.0
        %2465 = vmatpush1.msra.mxu0 0.0
        %2466 = vmatprep.subr.mxu0 0.0
        %2467 = vmatpush1.msra.mxu0 0.0
        %2468 = vmatprep.subr.mxu0 0.0
        %2469 = vmatpush1.msra.mxu0 0.0
        %2470 = vmatprep.subr.mxu0 0.0
        %2471 = vmatpush1.msra.mxu0 0.0
        %2472 = vmatprep.subr.mxu0 0.0
        %2473 = vmatpush1.msra.mxu0 0.0
        %2474 = vmatprep.subr.mxu0 0.0
        %2475 = vmatpush1.msra.mxu0 0.0
        %2476 = vmatprep.subr.mxu0 0.0
        %2477 = vmatpush1.msra.mxu0 0.0
        %2478 = vmatprep.subr.mxu0 0.0
        %2479 = vmatpush1.msra.mxu0 0.0
        %2480 = vmatprep.subr.mxu0 0.0
        %2481 = vmatpush1.msra.mxu0 0.0
        %2482 = vmatprep.subr.mxu0 0.0
        %2483 = vmatpush1.msra.mxu0 0.0
        %2484 = vmatprep.subr.mxu0 0.0
        %2485 = vmatpush1.msra.mxu0 0.0
        %2486 = vmatprep.mubr.f32.mxu0 0.0
        %2487 = vmatmul.mubr.f32.gmra.mrb[0].mxu0 %v2420
        %v2488 = vpop.f32.mrb[0].mxu0
        %v2489 = vadd.f32 0.0, %v2488
        %v2490 = vpop.f32.mrb[0].mxu0
        %2491 = vdwg.mxu0
        %2492 = vrot.lane.b32.xlu0 %v989, 40
        %v2493 = vpop.permute.xlu0 %2492
        %v2496 = vsel %vm999, %v2415, 0
        %2498 = vmatprep.subr.mxu0 0.0
        %2499 = vmatpush1.msra.mxu0 %v2493
        %2500 = vmatprep.subr.mxu0 0.0
        %2501 = vmatpush1.msra.mxu0 0.0
        %2502 = vmatprep.subr.mxu0 0.0
        %2503 = vmatpush1.msra.mxu0 0.0
        %2504 = vmatprep.subr.mxu0 0.0
        %2505 = vmatpush1.msra.mxu0 0.0
        %2506 = vmatprep.subr.mxu0 0.0
        %2507 = vmatpush1.msra.mxu0 0.0
        %2508 = vmatprep.subr.mxu0 0.0
        %2509 = vmatpush1.msra.mxu0 0.0
        %2510 = vmatprep.subr.mxu0 0.0
        %2511 = vmatpush1.msra.mxu0 0.0
        %2512 = vmatprep.subr.mxu0 0.0
        %2513 = vmatpush1.msra.mxu0 0.0
        %2514 = vmatprep.subr.mxu0 0.0
        %2515 = vmatpush1.msra.mxu0 0.0
        %2516 = vmatprep.subr.mxu0 0.0
        %2517 = vmatpush1.msra.mxu0 0.0
        %2518 = vmatprep.subr.mxu0 0.0
        %2519 = vmatpush1.msra.mxu0 0.0
        %2520 = vmatprep.subr.mxu0 0.0
        %2521 = vmatpush1.msra.mxu0 0.0
        %2522 = vmatprep.subr.mxu0 0.0
        %2523 = vmatpush1.msra.mxu0 0.0
        %2524 = vmatprep.subr.mxu0 0.0
        %2525 = vmatpush1.msra.mxu0 0.0
        %2526 = vmatprep.subr.mxu0 0.0
        %2527 = vmatpush1.msra.mxu0 0.0
        %2528 = vmatprep.subr.mxu0 0.0
        %2529 = vmatpush1.msra.mxu0 0.0
        %2530 = vmatprep.subr.mxu0 0.0
        %2531 = vmatpush1.msra.mxu0 0.0
        %2532 = vmatprep.subr.mxu0 0.0
        %2533 = vmatpush1.msra.mxu0 0.0
        %2534 = vmatprep.subr.mxu0 0.0
        %2535 = vmatpush1.msra.mxu0 0.0
        %2536 = vmatprep.subr.mxu0 0.0
        %2537 = vmatpush1.msra.mxu0 0.0
        %2538 = vmatprep.subr.mxu0 0.0
        %2539 = vmatpush1.msra.mxu0 0.0
        %2540 = vmatprep.subr.mxu0 0.0
        %2541 = vmatpush1.msra.mxu0 0.0
        %2542 = vmatprep.subr.mxu0 0.0
        %2543 = vmatpush1.msra.mxu0 0.0
        %2544 = vmatprep.subr.mxu0 0.0
        %2545 = vmatpush1.msra.mxu0 0.0
        %2546 = vmatprep.subr.mxu0 0.0
        %2547 = vmatpush1.msra.mxu0 0.0
        %2548 = vmatprep.subr.mxu0 0.0
        %2549 = vmatpush1.msra.mxu0 0.0
        %2550 = vmatprep.subr.mxu0 0.0
        %2551 = vmatpush1.msra.mxu0 0.0
        %2552 = vmatprep.subr.mxu0 0.0
        %2553 = vmatpush1.msra.mxu0 0.0
        %2554 = vmatprep.subr.mxu0 0.0
        %2555 = vmatpush1.msra.mxu0 0.0
        %2556 = vmatprep.subr.mxu0 0.0
        %2557 = vmatpush1.msra.mxu0 0.0
        %2558 = vmatprep.subr.mxu0 0.0
        %2559 = vmatpush1.msra.mxu0 0.0
        %2560 = vmatprep.subr.mxu0 0.0
        %2561 = vmatpush1.msra.mxu0 0.0
        %2562 = vmatprep.mubr.f32.mxu0 0.0
        %2563 = vmatmul.mubr.f32.gmra.mrb[0].mxu0 %v2496
        %v2564 = vpop.f32.mrb[0].mxu0
        %v2565 = vadd.f32 0.0, %v2564
        %v2566 = vpop.f32.mrb[0].mxu0
        %2567 = vdwg.mxu0
        %v2569 = vsel %vm999, %v2489, 0
        %v2572 = vsel %vm999, %v2565, 0
        %2574 = vmatprep.subr.mxu0 0.0
        %2575 = vmatpush1.msra.mxu0 %v995
        %2576 = vmatprep.subr.mxu0 0.0
        %2577 = vmatpush1.msra.mxu0 0.0
        %2578 = vmatprep.subr.mxu0 0.0
        %2579 = vmatpush1.msra.mxu0 0.0
        %2580 = vmatprep.subr.mxu0 0.0
        %2581 = vmatpush1.msra.mxu0 0.0
        %2582 = vmatprep.subr.mxu0 0.0
        %2583 = vmatpush1.msra.mxu0 0.0
        %2584 = vmatprep.subr.mxu0 0.0
        %2585 = vmatpush1.msra.mxu0 0.0
        %2586 = vmatprep.subr.mxu0 0.0
        %2587 = vmatpush1.msra.mxu0 0.0
        %2588 = vmatprep.subr.mxu0 0.0
        %2589 = vmatpush1.msra.mxu0 0.0
        %2590 = vmatprep.subr.mxu0 0.0
        %2591 = vmatpush1.msra.mxu0 0.0
        %2592 = vmatprep.subr.mxu0 0.0
        %2593 = vmatpush1.msra.mxu0 0.0
        %2594 = vmatprep.subr.mxu0 0.0
        %2595 = vmatpush1.msra.mxu0 0.0
        %2596 = vmatprep.subr.mxu0 0.0
        %2597 = vmatpush1.msra.mxu0 0.0
        %2598 = vmatprep.subr.mxu0 0.0
        %2599 = vmatpush1.msra.mxu0 0.0
        %2600 = vmatprep.subr.mxu0 0.0
        %2601 = vmatpush1.msra.mxu0 0.0
        %2602 = vmatprep.subr.mxu0 0.0
        %2603 = vmatpush1.msra.mxu0 0.0
        %2604 = vmatprep.subr.mxu0 0.0
        %2605 = vmatpush1.msra.mxu0 0.0
        %2606 = vmatprep.subr.mxu0 0.0
        %2607 = vmatpush1.msra.mxu0 0.0
        %2608 = vmatprep.subr.mxu0 0.0
        %2609 = vmatpush1.msra.mxu0 0.0
        %2610 = vmatprep.subr.mxu0 0.0
        %2611 = vmatpush1.msra.mxu0 0.0
        %2612 = vmatprep.subr.mxu0 0.0
        %2613 = vmatpush1.msra.mxu0 0.0
        %2614 = vmatprep.subr.mxu0 0.0
        %2615 = vmatpush1.msra.mxu0 0.0
        %2616 = vmatprep.subr.mxu0 0.0
        %2617 = vmatpush1.msra.mxu0 0.0
        %2618 = vmatprep.subr.mxu0 0.0
        %2619 = vmatpush1.msra.mxu0 0.0
        %2620 = vmatprep.subr.mxu0 0.0
        %2621 = vmatpush1.msra.mxu0 0.0
        %2622 = vmatprep.subr.mxu0 0.0
        %2623 = vmatpush1.msra.mxu0 0.0
        %2624 = vmatprep.subr.mxu0 0.0
        %2625 = vmatpush1.msra.mxu0 0.0
        %2626 = vmatprep.subr.mxu0 0.0
        %2627 = vmatpush1.msra.mxu0 0.0
        %2628 = vmatprep.subr.mxu0 0.0
        %2629 = vmatpush1.msra.mxu0 0.0
        %2630 = vmatprep.subr.mxu0 0.0
        %2631 = vmatpush1.msra.mxu0 0.0
        %2632 = vmatprep.subr.mxu0 0.0
        %2633 = vmatpush1.msra.mxu0 0.0
        %2634 = vmatprep.subr.mxu0 0.0
        %2635 = vmatpush1.msra.mxu0 0.0
        %2636 = vmatprep.subr.mxu0 0.0
        %2637 = vmatpush1.msra.mxu0 0.0
        %2638 = vmatprep.mubr.f32.mxu0 0.0
        %2639 = vmatmul.mubr.f32.gmra.mrb[0].mxu0 %v2569
        %v2640 = vpop.f32.mrb[0].mxu0
        %v2641 = vadd.f32 0.0, %v2640
        %v2642 = vpop.f32.mrb[0].mxu0
        %2643 = vmatprep.mubr.f32.mxu0 0.0
        %2644 = vmatmul.mubr.f32.gmra.mrb[0].mxu0 %v2572
        %v2645 = vpop.f32.mrb[0].mxu0
        %v2646 = vadd.f32 0.0, %v2645
        %v2647 = vpop.f32.mrb[0].mxu0
        %2648 = vdwg.mxu0
        %v2649 = vadd.f32 %v2234, %v2641
        %v2650 = vadd.f32 %v2235, %v2646
        %v2651 = vadd.f32 %v852, %v2649
        %v2652 = vadd.f32 %v853, %v2650
        %v2653 = vld [vmem:[%s725] sm:$0x1]
        %v2655 = vlaneseq
        %v2656 = vshrl.u32 %v2655, 7
        %v2657 = vsub.s32 0, %v2656
        %v2658 = vrot.slane %v2653, %v2657
        %v2660 = vadd.f32 %v2651, %v2658
        %v2661 = vadd.f32 %v2652, %v2658
        %v2662 = vld [vmem:[%s728] sm:$0x1]
        %v2663 = vld [vmem:[%s731] sm:$0x1]
        %v2664 = vsel %vm856, %v2660, 0.0
        %2665 = vadd.xlane.f32.xlu0 %v2664
        %v2666 = vpop.xlane.xlu0 %2665
        %v2667 = vsel %vm856, %v2661, 0.0
        %2668 = vadd.xlane.f32.xlu0 %v2667
        %v2669 = vpop.xlane.xlu0 %2668
        %v2670 = vmul.f32 %v2666, %v863
        %v2671 = vmul.f32 %v2669, %v863
        %v2672 = vsub.f32 %v2660, %v2670
        %v2673 = vsub.f32 %v2661, %v2671
        %v2674 = vmul.f32 %v2672, %v2672
        %v2675 = vmul.f32 %v2673, %v2673
        %v2676 = vsel %vm856, %v2674, 0.0
        %2677 = vadd.xlane.f32.xlu0 %v2676
        %v2678 = vpop.xlane.xlu0 %2677
        %v2679 = vsel %vm856, %v2675, 0.0
        %2680 = vadd.xlane.f32.xlu0 %v2679
        %v2681 = vpop.xlane.xlu0 %2680
        %v2682 = vmul.f32 %v2678, %v863
        %v2683 = vmul.f32 %v2681, %v863
        %v2684 = vadd.f32 %v2682, 1e-05
        %v2685 = vadd.f32 %v2683, 1e-05
        %v2686 = vrsqrt.pop %v2684
        %v2687 = vrsqrt.pop %v2685
        %v2688 = vmul.f32 %v2672, %v2686
        %v2689 = vmul.f32 %v2673, %v2687
        %v2691 = vlaneseq
        %v2692 = vshrl.u32 %v2691, 7
        %v2693 = vsub.s32 0, %v2692
        %v2694 = vrot.slane %v2662, %v2693
        %v2696 = vmul.f32 %v2688, %v2694
        %v2697 = vmul.f32 %v2689, %v2694
        %v2699 = vlaneseq
        %v2700 = vshrl.u32 %v2699, 7
        %v2701 = vsub.s32 0, %v2700
        %v2702 = vrot.slane %v2663, %v2701
        %v2704 = vadd.f32 %v2696, %v2702
        %v2705 = vadd.f32 %v2697, %v2702
        %v2706 = vld [vmem:[%s736] sm:$0xff]
        %v2707 = vld [vmem:[%s736 + $0x8] sm:$0xff]
        %v2708 = vld [vmem:[%s736 + $0x10] sm:$0xff]
        %v2709 = vld [vmem:[%s736 + $0x18] sm:$0xff]
        %v2710 = vld [vmem:[%s739] sm:$0x1]
        %v2712 = vlaneseq
        %v2713 = vshrl.u32 %v2712, 7
        %v2714 = vsub.s32 0, %v2713
        %v2715 = vrot.slane %v2710, %v2714
        %v2718 = vsel %vm856, %v2704, 0
        %v2721 = vsel %vm856, %v2705, 0
        %2723 = vmatprep.subr.mxu0 0.0
        %2724 = vmatpush1.msra.mxu0 %v2706
        %2725 = vmatprep.subr.mxu0 0.0
        %2726 = vmatpush1.msra.mxu0 %v2707
        %2727 = vmatprep.subr.mxu0 0.0
        %2728 = vmatpush1.msra.mxu0 %v2708
        %2729 = vmatprep.subr.mxu0 0.0
        %2730 = vmatpush1.msra.mxu0 %v2709
        %2731 = vmatprep.subr.mxu0 0.0
        %2732 = vmatpush1.msra.mxu0 0.0
        %2733 = vmatprep.subr.mxu0 0.0
        %2734 = vmatpush1.msra.mxu0 0.0
        %2735 = vmatprep.subr.mxu0 0.0
        %2736 = vmatpush1.msra.mxu0 0.0
        %2737 = vmatprep.subr.mxu0 0.0
        %2738 = vmatpush1.msra.mxu0 0.0
        %2739 = vmatprep.subr.mxu0 0.0
        %2740 = vmatpush1.msra.mxu0 0.0
        %2741 = vmatprep.subr.mxu0 0.0
        %2742 = vmatpush1.msra.mxu0 0.0
        %2743 = vmatprep.subr.mxu0 0.0
        %2744 = vmatpush1.msra.mxu0 0.0
        %2745 = vmatprep.subr.mxu0 0.0
        %2746 = vmatpush1.msra.mxu0 0.0
        %2747 = vmatprep.subr.mxu0 0.0
        %2748 = vmatpush1.msra.mxu0 0.0
        %2749 = vmatprep.subr.mxu0 0.0
        %2750 = vmatpush1.msra.mxu0 0.0
        %2751 = vmatprep.subr.mxu0 0.0
        %2752 = vmatpush1.msra.mxu0 0.0
        %2753 = vmatprep.subr.mxu0 0.0
        %2754 = vmatpush1.msra.mxu0 0.0
        %2755 = vmatprep.subr.mxu0 0.0
        %2756 = vmatpush1.msra.mxu0 0.0
        %2757 = vmatprep.subr.mxu0 0.0
        %2758 = vmatpush1.msra.mxu0 0.0
        %2759 = vmatprep.subr.mxu0 0.0
        %2760 = vmatpush1.msra.mxu0 0.0
        %2761 = vmatprep.subr.mxu0 0.0
        %2762 = vmatpush1.msra.mxu0 0.0
        %2763 = vmatprep.subr.mxu0 0.0
        %2764 = vmatpush1.msra.mxu0 0.0
        %2765 = vmatprep.subr.mxu0 0.0
        %2766 = vmatpush1.msra.mxu0 0.0
        %2767 = vmatprep.subr.mxu0 0.0
        %2768 = vmatpush1.msra.mxu0 0.0
        %2769 = vmatprep.subr.mxu0 0.0
        %2770 = vmatpush1.msra.mxu0 0.0
        %2771 = vmatprep.subr.mxu0 0.0
        %2772 = vmatpush1.msra.mxu0 0.0
        %2773 = vmatprep.subr.mxu0 0.0
        %2774 = vmatpush1.msra.mxu0 0.0
        %2775 = vmatprep.subr.mxu0 0.0
        %2776 = vmatpush1.msra.mxu0 0.0
        %2777 = vmatprep.subr.mxu0 0.0
        %2778 = vmatpush1.msra.mxu0 0.0
        %2779 = vmatprep.subr.mxu0 0.0
        %2780 = vmatpush1.msra.mxu0 0.0
        %2781 = vmatprep.subr.mxu0 0.0
        %2782 = vmatpush1.msra.mxu0 0.0
        %2783 = vmatprep.subr.mxu0 0.0
        %2784 = vmatpush1.msra.mxu0 0.0
        %2785 = vmatprep.subr.mxu0 0.0
        %2786 = vmatpush1.msra.mxu0 0.0
        %2787 = vmatprep.mubr.f32.mxu0 0.0
        %2788 = vmatmul.mubr.f32.gmra.mrb[0].mxu0 %v2718
        %v2789 = vpop.f32.mrb[0].mxu0
        %v2790 = vadd.f32 %v2715, %v2789
        %v2791 = vpop.f32.mrb[0].mxu0
        %2792 = vmatprep.mubr.f32.mxu0 0.0
        %2793 = vmatmul.mubr.f32.gmra.mrb[0].mxu0 %v2721
        %v2794 = vpop.f32.mrb[0].mxu0
        %v2795 = vadd.f32 %v2715, %v2794
        %v2796 = vpop.f32.mrb[0].mxu0
        %2797 = vdwg.mxu0
        %v2798 = vmax.f32 %v2790, 0.0
        %v2799 = vmax.f32 %v2795, 0.0
        %v2800 = vld [vmem:[%s744] sm:$0xff]
        %v2801 = vld [vmem:[%s744 + $0x8] sm:$0xff]
        %v2802 = vld [vmem:[%s744 + $0x10] sm:$0xff]
        %v2803 = vld [vmem:[%s744 + $0x18] sm:$0xff]
        %v2804 = vld [vmem:[%s744 + $0x20] sm:$0xff]
        %v2805 = vld [vmem:[%s744 + $0x28] sm:$0xff]
        %v2806 = vld [vmem:[%s744 + $0x30] sm:$0xff]
        %v2807 = vld [vmem:[%s744 + $0x38] sm:$0xff]
        %v2808 = vld [vmem:[%s747] sm:$0x1]
        %v2810 = vlaneseq
        %v2811 = vshrl.u32 %v2810, 7
        %v2812 = vsub.s32 0, %v2811
        %v2813 = vrot.slane %v2808, %v2812
        %vm2815 = vcmask 523264
        %v2817 = vsel %vm2815, %v2798, 0
        %v2820 = vsel %vm2815, %v2799, 0
        %2822 = vmatprep.subr.mxu0 0.0
        %2823 = vmatpush1.msra.mxu0 %v2800
        %2824 = vmatprep.subr.mxu0 0.0
        %2825 = vmatpush1.msra.mxu0 %v2801
        %2826 = vmatprep.subr.mxu0 0.0
        %2827 = vmatpush1.msra.mxu0 %v2802
        %2828 = vmatprep.subr.mxu0 0.0
        %2829 = vmatpush1.msra.mxu0 %v2803
        %2830 = vmatprep.subr.mxu0 0.0
        %2831 = vmatpush1.msra.mxu0 %v2804
        %2832 = vmatprep.subr.mxu0 0.0
        %2833 = vmatpush1.msra.mxu0 %v2805
        %2834 = vmatprep.subr.mxu0 0.0
        %2835 = vmatpush1.msra.mxu0 %v2806
        %2836 = vmatprep.subr.mxu0 0.0
        %2837 = vmatpush1.msra.mxu0 %v2807
        %2838 = vmatprep.subr.mxu0 0.0
        %2839 = vmatpush1.msra.mxu0 0.0
        %2840 = vmatprep.subr.mxu0 0.0
        %2841 = vmatpush1.msra.mxu0 0.0
        %2842 = vmatprep.subr.mxu0 0.0
        %2843 = vmatpush1.msra.mxu0 0.0
        %2844 = vmatprep.subr.mxu0 0.0
        %2845 = vmatpush1.msra.mxu0 0.0
        %2846 = vmatprep.subr.mxu0 0.0
        %2847 = vmatpush1.msra.mxu0 0.0
        %2848 = vmatprep.subr.mxu0 0.0
        %2849 = vmatpush1.msra.mxu0 0.0
        %2850 = vmatprep.subr.mxu0 0.0
        %2851 = vmatpush1.msra.mxu0 0.0
        %2852 = vmatprep.subr.mxu0 0.0
        %2853 = vmatpush1.msra.mxu0 0.0
        %2854 = vmatprep.subr.mxu0 0.0
        %2855 = vmatpush1.msra.mxu0 0.0
        %2856 = vmatprep.subr.mxu0 0.0
        %2857 = vmatpush1.msra.mxu0 0.0
        %2858 = vmatprep.subr.mxu0 0.0
        %2859 = vmatpush1.msra.mxu0 0.0
        %2860 = vmatprep.subr.mxu0 0.0
        %2861 = vmatpush1.msra.mxu0 0.0
        %2862 = vmatprep.subr.mxu0 0.0
        %2863 = vmatpush1.msra.mxu0 0.0
        %2864 = vmatprep.subr.mxu0 0.0
        %2865 = vmatpush1.msra.mxu0 0.0
        %2866 = vmatprep.subr.mxu0 0.0
        %2867 = vmatpush1.msra.mxu0 0.0
        %2868 = vmatprep.subr.mxu0 0.0
        %2869 = vmatpush1.msra.mxu0 0.0
        %2870 = vmatprep.subr.mxu0 0.0
        %2871 = vmatpush1.msra.mxu0 0.0
        %2872 = vmatprep.subr.mxu0 0.0
        %2873 = vmatpush1.msra.mxu0 0.0
        %2874 = vmatprep.subr.mxu0 0.0
        %2875 = vmatpush1.msra.mxu0 0.0
        %2876 = vmatprep.subr.mxu0 0.0
        %2877 = vmatpush1.msra.mxu0 0.0
        %2878 = vmatprep.subr.mxu0 0.0
        %2879 = vmatpush1.msra.mxu0 0.0
        %2880 = vmatprep.subr.mxu0 0.0
        %2881 = vmatpush1.msra.mxu0 0.0
        %2882 = vmatprep.subr.mxu0 0.0
        %2883 = vmatpush1.msra.mxu0 0.0
        %2884 = vmatprep.subr.mxu0 0.0
        %2885 = vmatpush1.msra.mxu0 0.0
        %2886 = vmatprep.mubr.f32.mxu0 0.0
        %2887 = vmatmul.mubr.f32.gmra.mrb[0].mxu0 %v2817
        %v2888 = vpop.f32.mrb[0].mxu0
        %v2889 = vadd.f32 %v2813, %v2888
        %v2890 = vpop.f32.mrb[0].mxu0
        %2891 = vmatprep.mubr.f32.mxu0 0.0
        %2892 = vmatmul.mubr.f32.gmra.mrb[0].mxu0 %v2820
        %v2893 = vpop.f32.mrb[0].mxu0
        %v2894 = vadd.f32 %v2813, %v2893
        %v2895 = vpop.f32.mrb[0].mxu0
        %2896 = vdwg.mxu0
        %v2897 = vadd.f32 %v2660, %v2889
        %v2898 = vadd.f32 %v2661, %v2894
        %2899 = vst.msk [vmem:[#allocation8] sm:$0xff] %vm856, %v2897
        %2900 = vst.msk [vmem:[#allocation8 + $0x8] sm:$0xff] %vm856, %v2898
        // Predicated region
        $region101: #{tpu_custom_call.1} parent=83 // pred_check
          %p2901 = pneg %p461
        $region102: #{tpu_custom_call.1} parent=83 // pred_check_branch
          %2903 = sbr.rel (%p2901) target = $region104
        $region103: #{tpu_custom_call.1} parent=83 // pred_region
          %s2904 = smul.u32 2, %s34
          %s2906 = ssub.s32 256, 256
          %2907 = vsyncadd [#allocation4], %s2906
          %s2908 = smul.addr %s2904, 128
          %s2909 = scalar_lea.hbm %s16, %s2908
          %s2910 = sshll.u32 [#allocation8], 4
          %s2911 = int_to_ptr.vmem [resolvable:$true] %s2910
          %2916 = dma.vmem_to_hbm [thread:$0]  %s2911, 256, %s2909, [#allocation4], 128, 128, 8
        $region104: #{tpu_custom_call.1} parent=83 // pred_fallthru
          _
        // Predicated region
        $region105: #{tpu_custom_call.1} parent=83 // pred_check
          %p2917 = pneg %p461
        $region106: #{tpu_custom_call.1} parent=83 // pred_check_branch
          %2919 = sbr.rel (%p2917) target = $region108
        $region107: #{tpu_custom_call.1} parent=83 // pred_region
          %2920 = dma.done [#allocation4], 256
        $region108: #{tpu_custom_call.1} parent=83 // pred_fallthru
          _
      $region84: #{tpu_custom_call.1} parent=5 // pred_fallthru
        _
      %p2921 = scmp.le.s32.totalorder 2, %s25
      // Predicated region
      $region109: #{tpu_custom_call.1} parent=5 // pred_check
        %p2922 = pneg %p2921
      $region110: #{tpu_custom_call.1} parent=5 // pred_check_branch
        %2924 = sbr.rel (%p2922) target = $region112
      $region111: #{tpu_custom_call.1} parent=5 // pred_region
        %s2925 = ssub.s32 %s25, 2
      $region112: #{tpu_custom_call.1} parent=5 // pred_fallthru
        _
    $region6: #{tpu_custom_call.1} parent=1 // loop_footer
      %s29 = sadd.s32 1, %s25
    $region7: #{tpu_custom_call.1} parent=1 // loop_footer_branch
      %24 = sbr.rel target = $region3
    $region8: #{tpu_custom_call.1} parent=1 // loop_exit
      _
    %2926 = vsyncpa [#allocation3], 1
    %s2927 = scalar_lea.sflag [#allocation3], 1
    %2928 = vsyncpa %s2927, 1
    %2929 = vsyncpa [#allocation6], 1
    %2930 = vsyncpa [#allocation4], 1
    %s2931 = scalar_lea.sflag [#allocation4], 1
    %2932 = vsyncpa %s2931, 1

</llo_original>
